<compile_context>
chip_gen: v5e
topology: v5e:2x2
jax: 0.10.0
libtpu: 0.0.40
codegen_flags: <defaults>
</compile_context>

<pallas_src>
import math

import jax
import jax.numpy as jnp
from jax import lax
from jax.experimental import pallas as pl
from jax.experimental.pallas import tpu as pltpu

# ---- model hyper-parameters (small, consistent with the module defaults) ----
D_MODEL = 32
N_LAYER = 2
VOCAB = 64
SEQ_LEN = 8
BATCH = 2

EXPAND = 2
D_INNER = EXPAND * D_MODEL                 # 64
D_STATE = 16
D_CONV = 4
DT_RANK = math.ceil(D_MODEL / 16)          # 2
EPS = 1e-5

# approx reciprocal (EUP) for the sigmoid; set False for strict PyTorch parity checks.
APPROX_SIGMOID = True


def _sigmoid(v):
    e = jnp.exp(-v)
    if APPROX_SIGMOID:
        return pl.reciprocal(1.0 + e, approx=True)
    return 1.0 / (1.0 + e)


def _silu(v):
    return v * _sigmoid(v)


def _softplus(v):
    # numerically stable softplus using only exp/log (Mosaic-friendly)
    return jnp.maximum(v, 0.0) + jnp.log(1.0 + jnp.exp(-jnp.abs(v)))


def _layer_norm(x, w, b):
    # torch.nn.LayerNorm: biased variance over last dim
    mu = jnp.mean(x, axis=-1, keepdims=True)
    xc = x - mu
    var = jnp.mean(xc * xc, axis=-1, keepdims=True)
    return xc * lax.rsqrt(var + EPS) * w + b


# ---------------------- fully fused forward-pass kernel ----------------------
def _mixer_fwd_kernel(ids_ref, emb_ref, w_in_ref, w_xp_ref, w_out_ref,
                      w_aux_ref, vecs_ref, out_ref):
    BL = BATCH * SEQ_LEN

    # ---- embedding: dynamic row gather, ids live in SMEM (scalar prefetch) ----
    rows = [emb_ref[pl.ds(ids_ref[i], 1), :] for i in range(BL)]
    hidden = jnp.concatenate(rows, axis=0)                              # (BL, D_MODEL)
    residual = jnp.zeros_like(hidden)                                   # residual=None <=> 0

    # constant causal masks for the conv shifts (hoisted out of every loop);
    # rows are ordered (b*SEQ_LEN + t), mask zeroes rolled-in rows with t < shift.
    t_idx = lax.broadcasted_iota(jnp.int32, (BATCH, SEQ_LEN, D_INNER), 1
                                 ).reshape(BL, D_INNER)
    shift_mask = {s: (t_idx >= s).astype(jnp.float32) for s in range(1, D_CONV)}

    for l in range(N_LAYER):
        vl = vecs_ref[l]                                                # (2, 128)
        ln_w = vl[0:1, 0:D_MODEL]
        ln_b = vl[0:1, D_MODEL:2 * D_MODEL]
        conv_b = vl[0:1, 2 * D_MODEL:2 * D_MODEL + D_INNER]
        b_dt = vl[1:2, 0:D_INNER]
        d_skip = vl[1:2, D_INNER:2 * D_INNER]
        aux = w_aux_ref[l]                                              # (20, 64)
        a_logT = aux[0:D_STATE, :]                                      # (d_state, d_inner)

        # ---- prenorm residual add + LayerNorm ----
        residual = hidden + residual
        h_norm = _layer_norm(residual, ln_w, ln_b)

        # ---- merged in_proj (bias=False): one lane-dense (BL, 2*d_inner) matmul ----
        xz = jnp.dot(h_norm, w_in_ref[l], preferred_element_type=jnp.float32)  # (BL, 128)
        x = xz[:, :D_INNER]
        z = xz[:, D_INNER:]

        # ---- causal depthwise conv1d: XLU rolls + constant causal masks ----
        x_conv = x * aux[D_STATE + D_CONV - 1:D_STATE + D_CONV, :] + conv_b    # shift 0 tap
        for k in range(D_CONV - 1):
            s = D_CONV - 1 - k                                          # causal shift
            tap = aux[D_STATE + k:D_STATE + k + 1, :]                   # (1, d_inner)
            x_conv = x_conv + pltpu.roll(x, s, 0) * shift_mask[s] * tap
        x_act = _silu(x_conv)

        # ---- merged x_proj: [B | C | dt(rank-composed)] one NN matmul -> (BL, 96) ----
        xp = jnp.dot(x_act, w_xp_ref[l], preferred_element_type=jnp.float32)
        b_part = xp[:, 0:D_STATE]                                       # (BL, d_state)
        c_part = xp[:, D_STATE:2 * D_STATE]                             # (BL, d_state)
        dt = _softplus(xp[:, 2 * D_STATE:] + b_dt)                      # (BL, d_inner)

        a_t = -jnp.exp(a_logT)                                          # (d_state, d_inner)
        dtx = dt * x_act                                                # (BL, d_inner)
        bT = jnp.transpose(b_part)                                      # (d_state, BL)
        cT = jnp.transpose(c_part)                                      # (d_state, BL)

        # ---- precompute everything independent of h (EUP exp / outer products are
        #      batch-parallel filler, off the serial recurrence chain) ----
        da = [jnp.exp(a_t * dt[i:i + 1, :]) for i in range(BL)]         # (d_state, d_inner)
        dbx = [bT[:, i:i + 1] * dtx[i:i + 1, :] for i in range(BL)]     # (d_state, d_inner)

        # ---- selective scan: per sequence, h = da*h + dbx ; y_t = C . h ----
        ys = []
        for b in range(BATCH):
            h = jnp.zeros((D_STATE, D_INNER), jnp.float32)
            for t in range(SEQ_LEN):
                i = b * SEQ_LEN + t
                h = da[i] * h + dbx[i]                                  # 2 VPU ops on chain
                ys.append(jnp.sum(cT[:, i:i + 1] * h, axis=0, keepdims=True))
        y = jnp.concatenate(ys, axis=0)                                 # (BL, d_inner)

        y = y + d_skip * x_act                                          # skip term D * x
        y = y * _silu(z)                                                # gate
        hidden = jnp.dot(y, w_out_ref[l], preferred_element_type=jnp.float32)   # out_proj

    # ---- final residual add + LayerNorm (norm_f lives in the last vecs slab) ----
    vf = vecs_ref[N_LAYER]
    final = _layer_norm(hidden + residual,
                        vf[0:1, 0:D_MODEL], vf[0:1, D_MODEL:2 * D_MODEL])   # (BL, D)

    # ---- lane-dense output: (BATCH, SEQ_LEN * D_MODEL) slab via lane concatenation ----
    out_rows = []
    for b in range(BATCH):
        out_rows.append(jnp.concatenate(
            [final[b * SEQ_LEN + t:b * SEQ_LEN + t + 1, :] for t in range(SEQ_LEN)],
            axis=1))
    out_ref[...] = jnp.concatenate(out_rows, axis=0)                    # (B, L*D)


def _full_spec(shape):
    zeros = (0,) * len(shape)
    return pl.BlockSpec(shape, lambda i, ids, _z=zeros: _z)


def mixer_model_forward(params, input_ids):
    B, L = input_ids.shape
    assert B == BATCH and L == SEQ_LEN
    ids_flat = input_ids.reshape(B * L).astype(jnp.int32)
    ordered = [params["embedding"], params["w_in_t"], params["w_xp_t"],
               params["w_out_t"], params["w_aux"], params["vecs"]]
    grid_spec = pltpu.PrefetchScalarGridSpec(
        num_scalar_prefetch=1,
        grid=(1,),
        in_specs=[_full_spec(a.shape) for a in ordered],
        out_specs=pl.BlockSpec((B, L * D_MODEL), lambda i, ids: (0, 0)),
    )
    out_flat = pl.pallas_call(
        _mixer_fwd_kernel,
        grid_spec=grid_spec,
        out_shape=jax.ShapeDtypeStruct((B, L * D_MODEL), jnp.float32),
        compiler_params=pltpu.CompilerParams(dimension_semantics=("arbitrary",)),
    )(ids_flat, *ordered)
    return out_flat.reshape(B, L, D_MODEL)


# ----------------------------- parameter init --------------------------------
def init_params(key):
    keys = jax.random.split(key, 1 + N_LAYER)
    embedding = 0.02 * jax.random.normal(keys[0], (VOCAB, D_MODEL), jnp.float32)

    w_in_t, w_xp_t, w_out_t, w_aux, vecs = [], [], [], [], []
    for i in range(N_LAYER):
        k = jax.random.split(keys[1 + i], 8)
        w_in = (D_MODEL ** -0.5) * jax.random.normal(k[0], (2 * D_INNER, D_MODEL), jnp.float32)
        conv_w = (D_CONV ** -0.5) * jax.random.normal(k[1], (D_CONV, D_INNER), jnp.float32)
        conv_b = 0.1 * (D_CONV ** -0.5) * jax.random.normal(k[2], (1, D_INNER), jnp.float32)
        x_proj = (D_INNER ** -0.5) * jax.random.normal(
            k[3], (DT_RANK + 2 * D_STATE, D_INNER), jnp.float32)
        dt_w = (DT_RANK ** -0.5) * jax.random.normal(k[4], (D_INNER, DT_RANK), jnp.float32)
        # dt bias: inverse-softplus of dt sampled in [1e-3, 1e-1] (Mamba's special init)
        u = jax.random.uniform(k[5], (D_INNER,), jnp.float32)
        dt_init = jnp.exp(u * (math.log(1e-1) - math.log(1e-3)) + math.log(1e-3))
        dt_init = jnp.maximum(dt_init, 1e-4)
        dt_b = dt_init + jnp.log(-jnp.expm1(-dt_init))
        a_log = jnp.log(jnp.tile(jnp.arange(1, D_STATE + 1, dtype=jnp.float32)[None, :],
                                 (D_INNER, 1)))                         # (d_inner, d_state)
        w_out = (D_INNER ** -0.5) / math.sqrt(N_LAYER) * jax.random.normal(
            k[6], (D_MODEL, D_INNER), jnp.float32)                      # rescale_prenorm_residual

        ln_w = jnp.ones((D_MODEL,), jnp.float32)
        ln_b = jnp.zeros((D_MODEL,), jnp.float32)

        w_in_t.append(jnp.transpose(w_in))                              # (d_model, 2*d_inner)
        w_b_t = jnp.transpose(x_proj[DT_RANK:DT_RANK + D_STATE, :])     # (d_inner, d_state)
        w_c_t = jnp.transpose(x_proj[DT_RANK + D_STATE:, :])            # (d_inner, d_state)
        # compose x_proj's dt rows with dt_proj (rank DT_RANK) into one matrix:
        # dt_lin = x @ w_dtin^T @ w_dt^T  ==  x @ (w_dtin^T @ w_dt^T)
        w_dt_comp_t = jnp.dot(jnp.transpose(x_proj[:DT_RANK, :]),
                              jnp.transpose(dt_w))                      # (d_inner, d_inner)
        w_xp_t.append(jnp.concatenate([w_b_t, w_c_t, w_dt_comp_t], axis=1))   # (64, 96)
        w_out_t.append(jnp.transpose(w_out))                            # (d_inner, d_model)
        w_aux.append(jnp.concatenate([jnp.transpose(a_log), conv_w], axis=0))  # (20, 64)
        row0 = jnp.concatenate([ln_w, ln_b, conv_b[0]], axis=0)         # (128,)
        row1 = jnp.concatenate([dt_b, jnp.ones((D_INNER,), jnp.float32)], axis=0)  # (128,)
        vecs.append(jnp.stack([row0, row1], axis=0))                    # (2, 128)

    # final-norm slab (layer index N_LAYER): [norm_f_w | norm_f_b | 0]
    nf_row0 = jnp.concatenate([jnp.ones((D_MODEL,), jnp.float32),
                               jnp.zeros((D_MODEL,), jnp.float32),
                               jnp.zeros((D_INNER,), jnp.float32)], axis=0)
    vecs.append(jnp.stack([nf_row0, jnp.zeros((2 * D_INNER,), jnp.float32)], axis=0))

    return {
        "embedding": embedding,                 # (VOCAB, D_MODEL)
        "w_in_t": jnp.stack(w_in_t, axis=0),    # (N_LAYER, 32, 128)
        "w_xp_t": jnp.stack(w_xp_t, axis=0),    # (N_LAYER, 64, 96)
        "w_out_t": jnp.stack(w_out_t, axis=0),  # (N_LAYER, 64, 32)
        "w_aux": jnp.stack(w_aux, axis=0),      # (N_LAYER, 20, 64)
        "vecs": jnp.stack(vecs, axis=0),        # (N_LAYER+1, 2, 128)
    }


if __name__ == "__main__":
    key = jax.random.PRNGKey(0)
    pkey, ikey = jax.random.split(key)
    params = init_params(pkey)
    input_ids = jax.random.randint(ikey, (BATCH, SEQ_LEN), 0, VOCAB, dtype=jnp.int32)

    out = mixer_model_forward(params, input_ids)
    out = jax.block_until_ready(out)

    assert out.shape == (BATCH, SEQ_LEN, D_MODEL), out.shape
    assert bool(jnp.all(jnp.isfinite(out)))
    print("KERNEL_OK")
</pallas_src>

<mosaic_0001>
module attributes {stable_mosaic.version = 11 : i64} {
  func.func @_mixer_fwd_kernel(%arg0: i32, %arg1: memref<16xi32, #tpu.memory_space<smem>>, %arg2: memref<64x32xf32, #tpu.memory_space<vmem>>, %arg3: memref<2x32x128xf32, #tpu.memory_space<vmem>>, %arg4: memref<2x64x96xf32, #tpu.memory_space<vmem>>, %arg5: memref<2x64x32xf32, #tpu.memory_space<vmem>>, %arg6: memref<2x20x64xf32, #tpu.memory_space<vmem>>, %arg7: memref<3x2x128xf32, #tpu.memory_space<vmem>>, %arg8: memref<2x256xf32, #tpu.memory_space<vmem>>) attributes {dimension_semantics = [#tpu.dimension_semantics<arbitrary>], iteration_bounds = array<i64: 1>, scalar_prefetch = 1 : i64, scratch_operands = 0 : i64, tpu.core_type = #tpu.core_type<tc>, window_params = [{pipeline_mode = #tpu.pipeline_mode<synchronous>, transform_indices = @transform_0, window_bounds = array<i64: 64, 32>}, {pipeline_mode = #tpu.pipeline_mode<synchronous>, transform_indices = @transform_1, window_bounds = array<i64: 2, 32, 128>}, {pipeline_mode = #tpu.pipeline_mode<synchronous>, transform_indices = @transform_2, window_bounds = array<i64: 2, 64, 96>}, {pipeline_mode = #tpu.pipeline_mode<synchronous>, transform_indices = @transform_3, window_bounds = array<i64: 2, 64, 32>}, {pipeline_mode = #tpu.pipeline_mode<synchronous>, transform_indices = @transform_4, window_bounds = array<i64: 2, 20, 64>}, {pipeline_mode = #tpu.pipeline_mode<synchronous>, transform_indices = @transform_5, window_bounds = array<i64: 3, 2, 128>}, {pipeline_mode = #tpu.pipeline_mode<synchronous>, transform_indices = @transform_6, window_bounds = array<i64: 2, 256>}]} {
    %c0 = arith.constant 0 : index
    %0 = memref.load %arg1[%c0] : memref<16xi32, #tpu.memory_space<smem>>
    %1 = arith.index_cast %0 : i32 to index
    %c0_0 = arith.constant 0 : index
    %2 = vector.load %arg2[%1, %c0_0] : memref<64x32xf32, #tpu.memory_space<vmem>>, vector<1x32xf32>
    %c1 = arith.constant 1 : index
    %3 = memref.load %arg1[%c1] : memref<16xi32, #tpu.memory_space<smem>>
    %4 = arith.index_cast %3 : i32 to index
    %c0_1 = arith.constant 0 : index
    %5 = vector.load %arg2[%4, %c0_1] : memref<64x32xf32, #tpu.memory_space<vmem>>, vector<1x32xf32>
    %c2 = arith.constant 2 : index
    %6 = memref.load %arg1[%c2] : memref<16xi32, #tpu.memory_space<smem>>
    %7 = arith.index_cast %6 : i32 to index
    %c0_2 = arith.constant 0 : index
    %8 = vector.load %arg2[%7, %c0_2] : memref<64x32xf32, #tpu.memory_space<vmem>>, vector<1x32xf32>
    %c3 = arith.constant 3 : index
    %9 = memref.load %arg1[%c3] : memref<16xi32, #tpu.memory_space<smem>>
    %10 = arith.index_cast %9 : i32 to index
    %c0_3 = arith.constant 0 : index
    %11 = vector.load %arg2[%10, %c0_3] : memref<64x32xf32, #tpu.memory_space<vmem>>, vector<1x32xf32>
    %c4 = arith.constant 4 : index
    %12 = memref.load %arg1[%c4] : memref<16xi32, #tpu.memory_space<smem>>
    %13 = arith.index_cast %12 : i32 to index
    %c0_4 = arith.constant 0 : index
    %14 = vector.load %arg2[%13, %c0_4] : memref<64x32xf32, #tpu.memory_space<vmem>>, vector<1x32xf32>
    %c5 = arith.constant 5 : index
    %15 = memref.load %arg1[%c5] : memref<16xi32, #tpu.memory_space<smem>>
    %16 = arith.index_cast %15 : i32 to index
    %c0_5 = arith.constant 0 : index
    %17 = vector.load %arg2[%16, %c0_5] : memref<64x32xf32, #tpu.memory_space<vmem>>, vector<1x32xf32>
    %c6 = arith.constant 6 : index
    %18 = memref.load %arg1[%c6] : memref<16xi32, #tpu.memory_space<smem>>
    %19 = arith.index_cast %18 : i32 to index
    %c0_6 = arith.constant 0 : index
    %20 = vector.load %arg2[%19, %c0_6] : memref<64x32xf32, #tpu.memory_space<vmem>>, vector<1x32xf32>
    %c7 = arith.constant 7 : index
    %21 = memref.load %arg1[%c7] : memref<16xi32, #tpu.memory_space<smem>>
    %22 = arith.index_cast %21 : i32 to index
    %c0_7 = arith.constant 0 : index
    %23 = vector.load %arg2[%22, %c0_7] : memref<64x32xf32, #tpu.memory_space<vmem>>, vector<1x32xf32>
    %c8 = arith.constant 8 : index
    %24 = memref.load %arg1[%c8] : memref<16xi32, #tpu.memory_space<smem>>
    %25 = arith.index_cast %24 : i32 to index
    %c0_8 = arith.constant 0 : index
    %26 = vector.load %arg2[%25, %c0_8] : memref<64x32xf32, #tpu.memory_space<vmem>>, vector<1x32xf32>
    %c9 = arith.constant 9 : index
    %27 = memref.load %arg1[%c9] : memref<16xi32, #tpu.memory_space<smem>>
    %28 = arith.index_cast %27 : i32 to index
    %c0_9 = arith.constant 0 : index
    %29 = vector.load %arg2[%28, %c0_9] : memref<64x32xf32, #tpu.memory_space<vmem>>, vector<1x32xf32>
    %c10 = arith.constant 10 : index
    %30 = memref.load %arg1[%c10] : memref<16xi32, #tpu.memory_space<smem>>
    %31 = arith.index_cast %30 : i32 to index
    %c0_10 = arith.constant 0 : index
    %32 = vector.load %arg2[%31, %c0_10] : memref<64x32xf32, #tpu.memory_space<vmem>>, vector<1x32xf32>
    %c11 = arith.constant 11 : index
    %33 = memref.load %arg1[%c11] : memref<16xi32, #tpu.memory_space<smem>>
    %34 = arith.index_cast %33 : i32 to index
    %c0_11 = arith.constant 0 : index
    %35 = vector.load %arg2[%34, %c0_11] : memref<64x32xf32, #tpu.memory_space<vmem>>, vector<1x32xf32>
    %c12 = arith.constant 12 : index
    %36 = memref.load %arg1[%c12] : memref<16xi32, #tpu.memory_space<smem>>
    %37 = arith.index_cast %36 : i32 to index
    %c0_12 = arith.constant 0 : index
    %38 = vector.load %arg2[%37, %c0_12] : memref<64x32xf32, #tpu.memory_space<vmem>>, vector<1x32xf32>
    %c13 = arith.constant 13 : index
    %39 = memref.load %arg1[%c13] : memref<16xi32, #tpu.memory_space<smem>>
    %40 = arith.index_cast %39 : i32 to index
    %c0_13 = arith.constant 0 : index
    %41 = vector.load %arg2[%40, %c0_13] : memref<64x32xf32, #tpu.memory_space<vmem>>, vector<1x32xf32>
    %c14 = arith.constant 14 : index
    %42 = memref.load %arg1[%c14] : memref<16xi32, #tpu.memory_space<smem>>
    %43 = arith.index_cast %42 : i32 to index
    %c0_14 = arith.constant 0 : index
    %44 = vector.load %arg2[%43, %c0_14] : memref<64x32xf32, #tpu.memory_space<vmem>>, vector<1x32xf32>
    %c15 = arith.constant 15 : index
    %45 = memref.load %arg1[%c15] : memref<16xi32, #tpu.memory_space<smem>>
    %46 = arith.index_cast %45 : i32 to index
    %c0_15 = arith.constant 0 : index
    %47 = vector.load %arg2[%46, %c0_15] : memref<64x32xf32, #tpu.memory_space<vmem>>, vector<1x32xf32>
    %48 = tpu.concatenate %2, %5, %8, %11, %14, %17, %20, %23, %26, %29, %32, %35, %38, %41, %44, %47 in 0 : vector<1x32xf32>, vector<1x32xf32>, vector<1x32xf32>, vector<1x32xf32>, vector<1x32xf32>, vector<1x32xf32>, vector<1x32xf32>, vector<1x32xf32>, vector<1x32xf32>, vector<1x32xf32>, vector<1x32xf32>, vector<1x32xf32>, vector<1x32xf32>, vector<1x32xf32>, vector<1x32xf32>, vector<1x32xf32> -> vector<16x32xf32>
    %cst = arith.constant 0.000000e+00 : f32
    %49 = vector.broadcast %cst : f32 to vector<16x32xf32>
    %50 = tpu.iota {dimensions = array<i32: 1>} : vector<2x8x64xi32>
    %51 = vector.shape_cast %50 : vector<2x8x64xi32> to vector<16x64xi32>
    %c1_i32 = arith.constant 1 : i32
    %52 = vector.broadcast %c1_i32 : i32 to vector<16x64xi32>
    %53 = arith.cmpi sge, %51, %52 : vector<16x64xi32>
    %54 = arith.extui %53 : vector<16x64xi1> to vector<16x64xi32>
    %55 = arith.sitofp %54 : vector<16x64xi32> to vector<16x64xf32>
    %c2_i32 = arith.constant 2 : i32
    %56 = vector.broadcast %c2_i32 : i32 to vector<16x64xi32>
    %57 = arith.cmpi sge, %51, %56 : vector<16x64xi32>
    %58 = arith.extui %57 : vector<16x64xi1> to vector<16x64xi32>
    %59 = arith.sitofp %58 : vector<16x64xi32> to vector<16x64xf32>
    %c3_i32 = arith.constant 3 : i32
    %60 = vector.broadcast %c3_i32 : i32 to vector<16x64xi32>
    %61 = arith.cmpi sge, %51, %60 : vector<16x64xi32>
    %62 = arith.extui %61 : vector<16x64xi1> to vector<16x64xi32>
    %63 = arith.sitofp %62 : vector<16x64xi32> to vector<16x64xf32>
    %c0_16 = arith.constant 0 : index
    %c0_17 = arith.constant 0 : index
    %c0_18 = arith.constant 0 : index
    %64 = vector.load %arg7[%c0_16, %c0_17, %c0_18] : memref<3x2x128xf32, #tpu.memory_space<vmem>>, vector<1x2x128xf32>
    %65 = vector.shape_cast %64 : vector<1x2x128xf32> to vector<2x128xf32>
    %66 = vector.extract_strided_slice %65 {offsets = [0, 0], sizes = [1, 32], strides = [1, 1]} : vector<2x128xf32> to vector<1x32xf32>
    %67 = vector.extract_strided_slice %65 {offsets = [0, 32], sizes = [1, 32], strides = [1, 1]} : vector<2x128xf32> to vector<1x32xf32>
    %68 = vector.extract_strided_slice %65 {offsets = [0, 64], sizes = [1, 64], strides = [1, 1]} : vector<2x128xf32> to vector<1x64xf32>
    %69 = vector.extract_strided_slice %65 {offsets = [1, 0], sizes = [1, 64], strides = [1, 1]} : vector<2x128xf32> to vector<1x64xf32>
    %70 = vector.extract_strided_slice %65 {offsets = [1, 64], sizes = [1, 64], strides = [1, 1]} : vector<2x128xf32> to vector<1x64xf32>
    %c0_19 = arith.constant 0 : index
    %c0_20 = arith.constant 0 : index
    %c0_21 = arith.constant 0 : index
    %71 = vector.load %arg6[%c0_19, %c0_20, %c0_21] : memref<2x20x64xf32, #tpu.memory_space<vmem>>, vector<1x20x64xf32>
    %72 = vector.shape_cast %71 : vector<1x20x64xf32> to vector<20x64xf32>
    %73 = vector.extract_strided_slice %72 {offsets = [0, 0], sizes = [16, 64], strides = [1, 1]} : vector<20x64xf32> to vector<16x64xf32>
    %74 = arith.addf %48, %49 : vector<16x32xf32>
    %cst_22 = arith.constant dense<0.000000e+00> : vector<16xf32>
    %75 = vector.multi_reduction <add>, %74, %cst_22 [1] : vector<16x32xf32> to vector<16xf32>
    %76 = vector.shape_cast %75 : vector<16xf32> to vector<16x1xf32>
    %cst_23 = arith.constant 3.200000e+01 : f32
    %77 = vector.broadcast %cst_23 : f32 to vector<16x1xf32>
    %78 = arith.divf %76, %77 : vector<16x1xf32>
    %79 = vector.broadcast %78 : vector<16x1xf32> to vector<16x32xf32>
    %80 = arith.subf %74, %79 : vector<16x32xf32>
    %81 = arith.mulf %80, %80 : vector<16x32xf32>
    %cst_24 = arith.constant dense<0.000000e+00> : vector<16xf32>
    %82 = vector.multi_reduction <add>, %81, %cst_24 [1] : vector<16x32xf32> to vector<16xf32>
    %83 = vector.shape_cast %82 : vector<16xf32> to vector<16x1xf32>
    %cst_25 = arith.constant 3.200000e+01 : f32
    %84 = vector.broadcast %cst_25 : f32 to vector<16x1xf32>
    %85 = arith.divf %83, %84 : vector<16x1xf32>
    %cst_26 = arith.constant 9.99999974E-6 : f32
    %86 = vector.broadcast %cst_26 : f32 to vector<16x1xf32>
    %87 = arith.addf %85, %86 : vector<16x1xf32>
    %88 = math.rsqrt %87 : vector<16x1xf32>
    %89 = vector.broadcast %88 : vector<16x1xf32> to vector<16x32xf32>
    %90 = arith.mulf %80, %89 : vector<16x32xf32>
    %91 = vector.broadcast %66 : vector<1x32xf32> to vector<16x32xf32>
    %92 = arith.mulf %90, %91 : vector<16x32xf32>
    %93 = vector.broadcast %67 : vector<1x32xf32> to vector<16x32xf32>
    %94 = arith.addf %92, %93 : vector<16x32xf32>
    %c0_27 = arith.constant 0 : index
    %c0_28 = arith.constant 0 : index
    %c0_29 = arith.constant 0 : index
    %95 = vector.load %arg3[%c0_27, %c0_28, %c0_29] : memref<2x32x128xf32, #tpu.memory_space<vmem>>, vector<1x32x128xf32>
    %96 = vector.shape_cast %95 : vector<1x32x128xf32> to vector<32x128xf32>
    %cst_30 = arith.constant dense<0.000000e+00> : vector<16x128xf32>
    %97 = tpu.matmul %94, %96, %cst_30 {dimension_numbers = #tpu.dot_dimension_numbers<[1], [0], [0], [1], [0, 0, 1, 1], [], []>} : vector<16x32xf32>, vector<32x128xf32>, vector<16x128xf32> -> vector<16x128xf32>
    %98 = vector.extract_strided_slice %97 {offsets = [0, 0], sizes = [16, 64], strides = [1, 1]} : vector<16x128xf32> to vector<16x64xf32>
    %99 = vector.extract_strided_slice %97 {offsets = [0, 64], sizes = [16, 64], strides = [1, 1]} : vector<16x128xf32> to vector<16x64xf32>
    %100 = vector.extract_strided_slice %72 {offsets = [19, 0], sizes = [1, 64], strides = [1, 1]} : vector<20x64xf32> to vector<1x64xf32>
    %101 = vector.broadcast %100 : vector<1x64xf32> to vector<16x64xf32>
    %102 = arith.mulf %98, %101 : vector<16x64xf32>
    %103 = vector.broadcast %68 : vector<1x64xf32> to vector<16x64xf32>
    %104 = arith.addf %102, %103 : vector<16x64xf32>
    %105 = vector.extract_strided_slice %72 {offsets = [16, 0], sizes = [1, 64], strides = [1, 1]} : vector<20x64xf32> to vector<1x64xf32>
    %c3_i32_31 = arith.constant 3 : i32
    %106 = tpu.dynamic_rotate %98 by %c3_i32_31 dim 0 : vector<16x64xf32>, i32 -> vector<16x64xf32>
    %107 = arith.mulf %106, %63 : vector<16x64xf32>
    %108 = vector.broadcast %105 : vector<1x64xf32> to vector<16x64xf32>
    %109 = arith.mulf %107, %108 : vector<16x64xf32>
    %110 = arith.addf %104, %109 : vector<16x64xf32>
    %111 = vector.extract_strided_slice %72 {offsets = [17, 0], sizes = [1, 64], strides = [1, 1]} : vector<20x64xf32> to vector<1x64xf32>
    %c2_i32_32 = arith.constant 2 : i32
    %112 = tpu.dynamic_rotate %98 by %c2_i32_32 dim 0 : vector<16x64xf32>, i32 -> vector<16x64xf32>
    %113 = arith.mulf %112, %59 : vector<16x64xf32>
    %114 = vector.broadcast %111 : vector<1x64xf32> to vector<16x64xf32>
    %115 = arith.mulf %113, %114 : vector<16x64xf32>
    %116 = arith.addf %110, %115 : vector<16x64xf32>
    %117 = vector.extract_strided_slice %72 {offsets = [18, 0], sizes = [1, 64], strides = [1, 1]} : vector<20x64xf32> to vector<1x64xf32>
    %c1_i32_33 = arith.constant 1 : i32
    %118 = tpu.dynamic_rotate %98 by %c1_i32_33 dim 0 : vector<16x64xf32>, i32 -> vector<16x64xf32>
    %119 = arith.mulf %118, %55 : vector<16x64xf32>
    %120 = vector.broadcast %117 : vector<1x64xf32> to vector<16x64xf32>
    %121 = arith.mulf %119, %120 : vector<16x64xf32>
    %122 = arith.addf %116, %121 : vector<16x64xf32>
    %cst_34 = arith.constant 0.000000e+00 : f32
    %123 = vector.broadcast %cst_34 : f32 to vector<16x64xf32>
    %124 = arith.subf %123, %122 : vector<16x64xf32>
    %125 = math.exp %124 : vector<16x64xf32>
    %cst_35 = arith.constant 1.000000e+00 : f32
    %126 = vector.broadcast %cst_35 : f32 to vector<16x64xf32>
    %127 = arith.addf %126, %125 : vector<16x64xf32>
    %128 = tpu.reciprocal %127 {approx = true} : vector<16x64xf32> -> vector<16x64xf32>
    %129 = arith.mulf %122, %128 : vector<16x64xf32>
    %c0_36 = arith.constant 0 : index
    %c0_37 = arith.constant 0 : index
    %c0_38 = arith.constant 0 : index
    %130 = vector.load %arg4[%c0_36, %c0_37, %c0_38] : memref<2x64x96xf32, #tpu.memory_space<vmem>>, vector<1x64x96xf32>
    %131 = vector.shape_cast %130 : vector<1x64x96xf32> to vector<64x96xf32>
    %cst_39 = arith.constant dense<0.000000e+00> : vector<16x96xf32>
    %132 = tpu.matmul %129, %131, %cst_39 {dimension_numbers = #tpu.dot_dimension_numbers<[1], [0], [0], [1], [0, 0, 1, 1], [], []>} : vector<16x64xf32>, vector<64x96xf32>, vector<16x96xf32> -> vector<16x96xf32>
    %133 = vector.extract_strided_slice %132 {offsets = [0, 0], sizes = [16, 16], strides = [1, 1]} : vector<16x96xf32> to vector<16x16xf32>
    %134 = vector.extract_strided_slice %132 {offsets = [0, 16], sizes = [16, 16], strides = [1, 1]} : vector<16x96xf32> to vector<16x16xf32>
    %135 = vector.extract_strided_slice %132 {offsets = [0, 32], sizes = [16, 64], strides = [1, 1]} : vector<16x96xf32> to vector<16x64xf32>
    %136 = vector.broadcast %69 : vector<1x64xf32> to vector<16x64xf32>
    %137 = arith.addf %135, %136 : vector<16x64xf32>
    %cst_40 = arith.constant 0.000000e+00 : f32
    %138 = vector.broadcast %cst_40 : f32 to vector<16x64xf32>
    %139 = arith.maximumf %137, %138 : vector<16x64xf32>
    %140 = math.absf %137 : vector<16x64xf32>
    %cst_41 = arith.constant 0.000000e+00 : f32
    %141 = vector.broadcast %cst_41 : f32 to vector<16x64xf32>
    %142 = arith.subf %141, %140 : vector<16x64xf32>
    %143 = math.exp %142 : vector<16x64xf32>
    %cst_42 = arith.constant 1.000000e+00 : f32
    %144 = vector.broadcast %cst_42 : f32 to vector<16x64xf32>
    %145 = arith.addf %144, %143 : vector<16x64xf32>
    %146 = math.log %145 : vector<16x64xf32>
    %147 = arith.addf %139, %146 : vector<16x64xf32>
    %148 = math.exp %73 : vector<16x64xf32>
    %cst_43 = arith.constant 0.000000e+00 : f32
    %149 = vector.broadcast %cst_43 : f32 to vector<16x64xf32>
    %150 = arith.subf %149, %148 : vector<16x64xf32>
    %151 = arith.mulf %147, %129 : vector<16x64xf32>
    %152 = tpu.transpose %133, [1, 0] : vector<16x16xf32> -> vector<16x16xf32>
    %153 = tpu.transpose %134, [1, 0] : vector<16x16xf32> -> vector<16x16xf32>
    %154 = vector.extract_strided_slice %147 {offsets = [0, 0], sizes = [1, 64], strides = [1, 1]} : vector<16x64xf32> to vector<1x64xf32>
    %155 = vector.broadcast %154 : vector<1x64xf32> to vector<16x64xf32>
    %156 = arith.mulf %150, %155 : vector<16x64xf32>
    %157 = math.exp %156 : vector<16x64xf32>
    %158 = vector.extract_strided_slice %147 {offsets = [1, 0], sizes = [1, 64], strides = [1, 1]} : vector<16x64xf32> to vector<1x64xf32>
    %159 = vector.broadcast %158 : vector<1x64xf32> to vector<16x64xf32>
    %160 = arith.mulf %150, %159 : vector<16x64xf32>
    %161 = math.exp %160 : vector<16x64xf32>
    %162 = vector.extract_strided_slice %147 {offsets = [2, 0], sizes = [1, 64], strides = [1, 1]} : vector<16x64xf32> to vector<1x64xf32>
    %163 = vector.broadcast %162 : vector<1x64xf32> to vector<16x64xf32>
    %164 = arith.mulf %150, %163 : vector<16x64xf32>
    %165 = math.exp %164 : vector<16x64xf32>
    %166 = vector.extract_strided_slice %147 {offsets = [3, 0], sizes = [1, 64], strides = [1, 1]} : vector<16x64xf32> to vector<1x64xf32>
    %167 = vector.broadcast %166 : vector<1x64xf32> to vector<16x64xf32>
    %168 = arith.mulf %150, %167 : vector<16x64xf32>
    %169 = math.exp %168 : vector<16x64xf32>
    %170 = vector.extract_strided_slice %147 {offsets = [4, 0], sizes = [1, 64], strides = [1, 1]} : vector<16x64xf32> to vector<1x64xf32>
    %171 = vector.broadcast %170 : vector<1x64xf32> to vector<16x64xf32>
    %172 = arith.mulf %150, %171 : vector<16x64xf32>
    %173 = math.exp %172 : vector<16x64xf32>
    %174 = vector.extract_strided_slice %147 {offsets = [5, 0], sizes = [1, 64], strides = [1, 1]} : vector<16x64xf32> to vector<1x64xf32>
    %175 = vector.broadcast %174 : vector<1x64xf32> to vector<16x64xf32>
    %176 = arith.mulf %150, %175 : vector<16x64xf32>
    %177 = math.exp %176 : vector<16x64xf32>
    %178 = vector.extract_strided_slice %147 {offsets = [6, 0], sizes = [1, 64], strides = [1, 1]} : vector<16x64xf32> to vector<1x64xf32>
    %179 = vector.broadcast %178 : vector<1x64xf32> to vector<16x64xf32>
    %180 = arith.mulf %150, %179 : vector<16x64xf32>
    %181 = math.exp %180 : vector<16x64xf32>
    %182 = vector.extract_strided_slice %147 {offsets = [7, 0], sizes = [1, 64], strides = [1, 1]} : vector<16x64xf32> to vector<1x64xf32>
    %183 = vector.broadcast %182 : vector<1x64xf32> to vector<16x64xf32>
    %184 = arith.mulf %150, %183 : vector<16x64xf32>
    %185 = math.exp %184 : vector<16x64xf32>
    %186 = vector.extract_strided_slice %147 {offsets = [8, 0], sizes = [1, 64], strides = [1, 1]} : vector<16x64xf32> to vector<1x64xf32>
    %187 = vector.broadcast %186 : vector<1x64xf32> to vector<16x64xf32>
    %188 = arith.mulf %150, %187 : vector<16x64xf32>
    %189 = math.exp %188 : vector<16x64xf32>
    %190 = vector.extract_strided_slice %147 {offsets = [9, 0], sizes = [1, 64], strides = [1, 1]} : vector<16x64xf32> to vector<1x64xf32>
    %191 = vector.broadcast %190 : vector<1x64xf32> to vector<16x64xf32>
    %192 = arith.mulf %150, %191 : vector<16x64xf32>
    %193 = math.exp %192 : vector<16x64xf32>
    %194 = vector.extract_strided_slice %147 {offsets = [10, 0], sizes = [1, 64], strides = [1, 1]} : vector<16x64xf32> to vector<1x64xf32>
    %195 = vector.broadcast %194 : vector<1x64xf32> to vector<16x64xf32>
    %196 = arith.mulf %150, %195 : vector<16x64xf32>
    %197 = math.exp %196 : vector<16x64xf32>
    %198 = vector.extract_strided_slice %147 {offsets = [11, 0], sizes = [1, 64], strides = [1, 1]} : vector<16x64xf32> to vector<1x64xf32>
    %199 = vector.broadcast %198 : vector<1x64xf32> to vector<16x64xf32>
    %200 = arith.mulf %150, %199 : vector<16x64xf32>
    %201 = math.exp %200 : vector<16x64xf32>
    %202 = vector.extract_strided_slice %147 {offsets = [12, 0], sizes = [1, 64], strides = [1, 1]} : vector<16x64xf32> to vector<1x64xf32>
    %203 = vector.broadcast %202 : vector<1x64xf32> to vector<16x64xf32>
    %204 = arith.mulf %150, %203 : vector<16x64xf32>
    %205 = math.exp %204 : vector<16x64xf32>
    %206 = vector.extract_strided_slice %147 {offsets = [13, 0], sizes = [1, 64], strides = [1, 1]} : vector<16x64xf32> to vector<1x64xf32>
    %207 = vector.broadcast %206 : vector<1x64xf32> to vector<16x64xf32>
    %208 = arith.mulf %150, %207 : vector<16x64xf32>
    %209 = math.exp %208 : vector<16x64xf32>
    %210 = vector.extract_strided_slice %147 {offsets = [14, 0], sizes = [1, 64], strides = [1, 1]} : vector<16x64xf32> to vector<1x64xf32>
    %211 = vector.broadcast %210 : vector<1x64xf32> to vector<16x64xf32>
    %212 = arith.mulf %150, %211 : vector<16x64xf32>
    %213 = math.exp %212 : vector<16x64xf32>
    %214 = vector.extract_strided_slice %147 {offsets = [15, 0], sizes = [1, 64], strides = [1, 1]} : vector<16x64xf32> to vector<1x64xf32>
    %215 = vector.broadcast %214 : vector<1x64xf32> to vector<16x64xf32>
    %216 = arith.mulf %150, %215 : vector<16x64xf32>
    %217 = math.exp %216 : vector<16x64xf32>
    %218 = vector.extract_strided_slice %152 {offsets = [0, 0], sizes = [16, 1], strides = [1, 1]} : vector<16x16xf32> to vector<16x1xf32>
    %219 = vector.extract_strided_slice %151 {offsets = [0, 0], sizes = [1, 64], strides = [1, 1]} : vector<16x64xf32> to vector<1x64xf32>
    %220 = vector.broadcast %218 : vector<16x1xf32> to vector<16x64xf32>
    %221 = vector.broadcast %219 : vector<1x64xf32> to vector<16x64xf32>
    %222 = arith.mulf %220, %221 : vector<16x64xf32>
    %223 = vector.extract_strided_slice %152 {offsets = [0, 1], sizes = [16, 1], strides = [1, 1]} : vector<16x16xf32> to vector<16x1xf32>
    %224 = vector.extract_strided_slice %151 {offsets = [1, 0], sizes = [1, 64], strides = [1, 1]} : vector<16x64xf32> to vector<1x64xf32>
    %225 = vector.broadcast %223 : vector<16x1xf32> to vector<16x64xf32>
    %226 = vector.broadcast %224 : vector<1x64xf32> to vector<16x64xf32>
    %227 = arith.mulf %225, %226 : vector<16x64xf32>
    %228 = vector.extract_strided_slice %152 {offsets = [0, 2], sizes = [16, 1], strides = [1, 1]} : vector<16x16xf32> to vector<16x1xf32>
    %229 = vector.extract_strided_slice %151 {offsets = [2, 0], sizes = [1, 64], strides = [1, 1]} : vector<16x64xf32> to vector<1x64xf32>
    %230 = vector.broadcast %228 : vector<16x1xf32> to vector<16x64xf32>
    %231 = vector.broadcast %229 : vector<1x64xf32> to vector<16x64xf32>
    %232 = arith.mulf %230, %231 : vector<16x64xf32>
    %233 = vector.extract_strided_slice %152 {offsets = [0, 3], sizes = [16, 1], strides = [1, 1]} : vector<16x16xf32> to vector<16x1xf32>
    %234 = vector.extract_strided_slice %151 {offsets = [3, 0], sizes = [1, 64], strides = [1, 1]} : vector<16x64xf32> to vector<1x64xf32>
    %235 = vector.broadcast %233 : vector<16x1xf32> to vector<16x64xf32>
    %236 = vector.broadcast %234 : vector<1x64xf32> to vector<16x64xf32>
    %237 = arith.mulf %235, %236 : vector<16x64xf32>
    %238 = vector.extract_strided_slice %152 {offsets = [0, 4], sizes = [16, 1], strides = [1, 1]} : vector<16x16xf32> to vector<16x1xf32>
    %239 = vector.extract_strided_slice %151 {offsets = [4, 0], sizes = [1, 64], strides = [1, 1]} : vector<16x64xf32> to vector<1x64xf32>
    %240 = vector.broadcast %238 : vector<16x1xf32> to vector<16x64xf32>
    %241 = vector.broadcast %239 : vector<1x64xf32> to vector<16x64xf32>
    %242 = arith.mulf %240, %241 : vector<16x64xf32>
    %243 = vector.extract_strided_slice %152 {offsets = [0, 5], sizes = [16, 1], strides = [1, 1]} : vector<16x16xf32> to vector<16x1xf32>
    %244 = vector.extract_strided_slice %151 {offsets = [5, 0], sizes = [1, 64], strides = [1, 1]} : vector<16x64xf32> to vector<1x64xf32>
    %245 = vector.broadcast %243 : vector<16x1xf32> to vector<16x64xf32>
    %246 = vector.broadcast %244 : vector<1x64xf32> to vector<16x64xf32>
    %247 = arith.mulf %245, %246 : vector<16x64xf32>
    %248 = vector.extract_strided_slice %152 {offsets = [0, 6], sizes = [16, 1], strides = [1, 1]} : vector<16x16xf32> to vector<16x1xf32>
    %249 = vector.extract_strided_slice %151 {offsets = [6, 0], sizes = [1, 64], strides = [1, 1]} : vector<16x64xf32> to vector<1x64xf32>
    %250 = vector.broadcast %248 : vector<16x1xf32> to vector<16x64xf32>
    %251 = vector.broadcast %249 : vector<1x64xf32> to vector<16x64xf32>
    %252 = arith.mulf %250, %251 : vector<16x64xf32>
    %253 = vector.extract_strided_slice %152 {offsets = [0, 7], sizes = [16, 1], strides = [1, 1]} : vector<16x16xf32> to vector<16x1xf32>
    %254 = vector.extract_strided_slice %151 {offsets = [7, 0], sizes = [1, 64], strides = [1, 1]} : vector<16x64xf32> to vector<1x64xf32>
    %255 = vector.broadcast %253 : vector<16x1xf32> to vector<16x64xf32>
    %256 = vector.broadcast %254 : vector<1x64xf32> to vector<16x64xf32>
    %257 = arith.mulf %255, %256 : vector<16x64xf32>
    %258 = vector.extract_strided_slice %152 {offsets = [0, 8], sizes = [16, 1], strides = [1, 1]} : vector<16x16xf32> to vector<16x1xf32>
    %259 = vector.extract_strided_slice %151 {offsets = [8, 0], sizes = [1, 64], strides = [1, 1]} : vector<16x64xf32> to vector<1x64xf32>
    %260 = vector.broadcast %258 : vector<16x1xf32> to vector<16x64xf32>
    %261 = vector.broadcast %259 : vector<1x64xf32> to vector<16x64xf32>
    %262 = arith.mulf %260, %261 : vector<16x64xf32>
    %263 = vector.extract_strided_slice %152 {offsets = [0, 9], sizes = [16, 1], strides = [1, 1]} : vector<16x16xf32> to vector<16x1xf32>
    %264 = vector.extract_strided_slice %151 {offsets = [9, 0], sizes = [1, 64], strides = [1, 1]} : vector<16x64xf32> to vector<1x64xf32>
    %265 = vector.broadcast %263 : vector<16x1xf32> to vector<16x64xf32>
    %266 = vector.broadcast %264 : vector<1x64xf32> to vector<16x64xf32>
    %267 = arith.mulf %265, %266 : vector<16x64xf32>
    %268 = vector.extract_strided_slice %152 {offsets = [0, 10], sizes = [16, 1], strides = [1, 1]} : vector<16x16xf32> to vector<16x1xf32>
    %269 = vector.extract_strided_slice %151 {offsets = [10, 0], sizes = [1, 64], strides = [1, 1]} : vector<16x64xf32> to vector<1x64xf32>
    %270 = vector.broadcast %268 : vector<16x1xf32> to vector<16x64xf32>
    %271 = vector.broadcast %269 : vector<1x64xf32> to vector<16x64xf32>
    %272 = arith.mulf %270, %271 : vector<16x64xf32>
    %273 = vector.extract_strided_slice %152 {offsets = [0, 11], sizes = [16, 1], strides = [1, 1]} : vector<16x16xf32> to vector<16x1xf32>
    %274 = vector.extract_strided_slice %151 {offsets = [11, 0], sizes = [1, 64], strides = [1, 1]} : vector<16x64xf32> to vector<1x64xf32>
    %275 = vector.broadcast %273 : vector<16x1xf32> to vector<16x64xf32>
    %276 = vector.broadcast %274 : vector<1x64xf32> to vector<16x64xf32>
    %277 = arith.mulf %275, %276 : vector<16x64xf32>
    %278 = vector.extract_strided_slice %152 {offsets = [0, 12], sizes = [16, 1], strides = [1, 1]} : vector<16x16xf32> to vector<16x1xf32>
    %279 = vector.extract_strided_slice %151 {offsets = [12, 0], sizes = [1, 64], strides = [1, 1]} : vector<16x64xf32> to vector<1x64xf32>
    %280 = vector.broadcast %278 : vector<16x1xf32> to vector<16x64xf32>
    %281 = vector.broadcast %279 : vector<1x64xf32> to vector<16x64xf32>
    %282 = arith.mulf %280, %281 : vector<16x64xf32>
    %283 = vector.extract_strided_slice %152 {offsets = [0, 13], sizes = [16, 1], strides = [1, 1]} : vector<16x16xf32> to vector<16x1xf32>
    %284 = vector.extract_strided_slice %151 {offsets = [13, 0], sizes = [1, 64], strides = [1, 1]} : vector<16x64xf32> to vector<1x64xf32>
    %285 = vector.broadcast %283 : vector<16x1xf32> to vector<16x64xf32>
    %286 = vector.broadcast %284 : vector<1x64xf32> to vector<16x64xf32>
    %287 = arith.mulf %285, %286 : vector<16x64xf32>
    %288 = vector.extract_strided_slice %152 {offsets = [0, 14], sizes = [16, 1], strides = [1, 1]} : vector<16x16xf32> to vector<16x1xf32>
    %289 = vector.extract_strided_slice %151 {offsets = [14, 0], sizes = [1, 64], strides = [1, 1]} : vector<16x64xf32> to vector<1x64xf32>
    %290 = vector.broadcast %288 : vector<16x1xf32> to vector<16x64xf32>
    %291 = vector.broadcast %289 : vector<1x64xf32> to vector<16x64xf32>
    %292 = arith.mulf %290, %291 : vector<16x64xf32>
    %293 = vector.extract_strided_slice %152 {offsets = [0, 15], sizes = [16, 1], strides = [1, 1]} : vector<16x16xf32> to vector<16x1xf32>
    %294 = vector.extract_strided_slice %151 {offsets = [15, 0], sizes = [1, 64], strides = [1, 1]} : vector<16x64xf32> to vector<1x64xf32>
    %295 = vector.broadcast %293 : vector<16x1xf32> to vector<16x64xf32>
    %296 = vector.broadcast %294 : vector<1x64xf32> to vector<16x64xf32>
    %297 = arith.mulf %295, %296 : vector<16x64xf32>
    %cst_44 = arith.constant 0.000000e+00 : f32
    %298 = vector.broadcast %cst_44 : f32 to vector<16x64xf32>
    %299 = arith.mulf %157, %298 : vector<16x64xf32>
    %300 = arith.addf %299, %222 : vector<16x64xf32>
    %301 = vector.extract_strided_slice %153 {offsets = [0, 0], sizes = [16, 1], strides = [1, 1]} : vector<16x16xf32> to vector<16x1xf32>
    %302 = vector.broadcast %301 : vector<16x1xf32> to vector<16x64xf32>
    %303 = arith.mulf %302, %300 : vector<16x64xf32>
    %cst_45 = arith.constant dense<0.000000e+00> : vector<64xf32>
    %304 = vector.multi_reduction <add>, %303, %cst_45 [0] : vector<16x64xf32> to vector<64xf32>
    %305 = vector.shape_cast %304 : vector<64xf32> to vector<1x64xf32>
    %306 = arith.mulf %161, %300 : vector<16x64xf32>
    %307 = arith.addf %306, %227 : vector<16x64xf32>
    %308 = vector.extract_strided_slice %153 {offsets = [0, 1], sizes = [16, 1], strides = [1, 1]} : vector<16x16xf32> to vector<16x1xf32>
    %309 = vector.broadcast %308 : vector<16x1xf32> to vector<16x64xf32>
    %310 = arith.mulf %309, %307 : vector<16x64xf32>
    %cst_46 = arith.constant dense<0.000000e+00> : vector<64xf32>
    %311 = vector.multi_reduction <add>, %310, %cst_46 [0] : vector<16x64xf32> to vector<64xf32>
    %312 = vector.shape_cast %311 : vector<64xf32> to vector<1x64xf32>
    %313 = arith.mulf %165, %307 : vector<16x64xf32>
    %314 = arith.addf %313, %232 : vector<16x64xf32>
    %315 = vector.extract_strided_slice %153 {offsets = [0, 2], sizes = [16, 1], strides = [1, 1]} : vector<16x16xf32> to vector<16x1xf32>
    %316 = vector.broadcast %315 : vector<16x1xf32> to vector<16x64xf32>
    %317 = arith.mulf %316, %314 : vector<16x64xf32>
    %cst_47 = arith.constant dense<0.000000e+00> : vector<64xf32>
    %318 = vector.multi_reduction <add>, %317, %cst_47 [0] : vector<16x64xf32> to vector<64xf32>
    %319 = vector.shape_cast %318 : vector<64xf32> to vector<1x64xf32>
    %320 = arith.mulf %169, %314 : vector<16x64xf32>
    %321 = arith.addf %320, %237 : vector<16x64xf32>
    %322 = vector.extract_strided_slice %153 {offsets = [0, 3], sizes = [16, 1], strides = [1, 1]} : vector<16x16xf32> to vector<16x1xf32>
    %323 = vector.broadcast %322 : vector<16x1xf32> to vector<16x64xf32>
    %324 = arith.mulf %323, %321 : vector<16x64xf32>
    %cst_48 = arith.constant dense<0.000000e+00> : vector<64xf32>
    %325 = vector.multi_reduction <add>, %324, %cst_48 [0] : vector<16x64xf32> to vector<64xf32>
    %326 = vector.shape_cast %325 : vector<64xf32> to vector<1x64xf32>
    %327 = arith.mulf %173, %321 : vector<16x64xf32>
    %328 = arith.addf %327, %242 : vector<16x64xf32>
    %329 = vector.extract_strided_slice %153 {offsets = [0, 4], sizes = [16, 1], strides = [1, 1]} : vector<16x16xf32> to vector<16x1xf32>
    %330 = vector.broadcast %329 : vector<16x1xf32> to vector<16x64xf32>
    %331 = arith.mulf %330, %328 : vector<16x64xf32>
    %cst_49 = arith.constant dense<0.000000e+00> : vector<64xf32>
    %332 = vector.multi_reduction <add>, %331, %cst_49 [0] : vector<16x64xf32> to vector<64xf32>
    %333 = vector.shape_cast %332 : vector<64xf32> to vector<1x64xf32>
    %334 = arith.mulf %177, %328 : vector<16x64xf32>
    %335 = arith.addf %334, %247 : vector<16x64xf32>
    %336 = vector.extract_strided_slice %153 {offsets = [0, 5], sizes = [16, 1], strides = [1, 1]} : vector<16x16xf32> to vector<16x1xf32>
    %337 = vector.broadcast %336 : vector<16x1xf32> to vector<16x64xf32>
    %338 = arith.mulf %337, %335 : vector<16x64xf32>
    %cst_50 = arith.constant dense<0.000000e+00> : vector<64xf32>
    %339 = vector.multi_reduction <add>, %338, %cst_50 [0] : vector<16x64xf32> to vector<64xf32>
    %340 = vector.shape_cast %339 : vector<64xf32> to vector<1x64xf32>
    %341 = arith.mulf %181, %335 : vector<16x64xf32>
    %342 = arith.addf %341, %252 : vector<16x64xf32>
    %343 = vector.extract_strided_slice %153 {offsets = [0, 6], sizes = [16, 1], strides = [1, 1]} : vector<16x16xf32> to vector<16x1xf32>
    %344 = vector.broadcast %343 : vector<16x1xf32> to vector<16x64xf32>
    %345 = arith.mulf %344, %342 : vector<16x64xf32>
    %cst_51 = arith.constant dense<0.000000e+00> : vector<64xf32>
    %346 = vector.multi_reduction <add>, %345, %cst_51 [0] : vector<16x64xf32> to vector<64xf32>
    %347 = vector.shape_cast %346 : vector<64xf32> to vector<1x64xf32>
    %348 = arith.mulf %185, %342 : vector<16x64xf32>
    %349 = arith.addf %348, %257 : vector<16x64xf32>
    %350 = vector.extract_strided_slice %153 {offsets = [0, 7], sizes = [16, 1], strides = [1, 1]} : vector<16x16xf32> to vector<16x1xf32>
    %351 = vector.broadcast %350 : vector<16x1xf32> to vector<16x64xf32>
    %352 = arith.mulf %351, %349 : vector<16x64xf32>
    %cst_52 = arith.constant dense<0.000000e+00> : vector<64xf32>
    %353 = vector.multi_reduction <add>, %352, %cst_52 [0] : vector<16x64xf32> to vector<64xf32>
    %354 = vector.shape_cast %353 : vector<64xf32> to vector<1x64xf32>
    %cst_53 = arith.constant 0.000000e+00 : f32
    %355 = vector.broadcast %cst_53 : f32 to vector<16x64xf32>
    %356 = arith.mulf %189, %355 : vector<16x64xf32>
    %357 = arith.addf %356, %262 : vector<16x64xf32>
    %358 = vector.extract_strided_slice %153 {offsets = [0, 8], sizes = [16, 1], strides = [1, 1]} : vector<16x16xf32> to vector<16x1xf32>
    %359 = vector.broadcast %358 : vector<16x1xf32> to vector<16x64xf32>
    %360 = arith.mulf %359, %357 : vector<16x64xf32>
    %cst_54 = arith.constant dense<0.000000e+00> : vector<64xf32>
    %361 = vector.multi_reduction <add>, %360, %cst_54 [0] : vector<16x64xf32> to vector<64xf32>
    %362 = vector.shape_cast %361 : vector<64xf32> to vector<1x64xf32>
    %363 = arith.mulf %193, %357 : vector<16x64xf32>
    %364 = arith.addf %363, %267 : vector<16x64xf32>
    %365 = vector.extract_strided_slice %153 {offsets = [0, 9], sizes = [16, 1], strides = [1, 1]} : vector<16x16xf32> to vector<16x1xf32>
    %366 = vector.broadcast %365 : vector<16x1xf32> to vector<16x64xf32>
    %367 = arith.mulf %366, %364 : vector<16x64xf32>
    %cst_55 = arith.constant dense<0.000000e+00> : vector<64xf32>
    %368 = vector.multi_reduction <add>, %367, %cst_55 [0] : vector<16x64xf32> to vector<64xf32>
    %369 = vector.shape_cast %368 : vector<64xf32> to vector<1x64xf32>
    %370 = arith.mulf %197, %364 : vector<16x64xf32>
    %371 = arith.addf %370, %272 : vector<16x64xf32>
    %372 = vector.extract_strided_slice %153 {offsets = [0, 10], sizes = [16, 1], strides = [1, 1]} : vector<16x16xf32> to vector<16x1xf32>
    %373 = vector.broadcast %372 : vector<16x1xf32> to vector<16x64xf32>
    %374 = arith.mulf %373, %371 : vector<16x64xf32>
    %cst_56 = arith.constant dense<0.000000e+00> : vector<64xf32>
    %375 = vector.multi_reduction <add>, %374, %cst_56 [0] : vector<16x64xf32> to vector<64xf32>
    %376 = vector.shape_cast %375 : vector<64xf32> to vector<1x64xf32>
    %377 = arith.mulf %201, %371 : vector<16x64xf32>
    %378 = arith.addf %377, %277 : vector<16x64xf32>
    %379 = vector.extract_strided_slice %153 {offsets = [0, 11], sizes = [16, 1], strides = [1, 1]} : vector<16x16xf32> to vector<16x1xf32>
    %380 = vector.broadcast %379 : vector<16x1xf32> to vector<16x64xf32>
    %381 = arith.mulf %380, %378 : vector<16x64xf32>
    %cst_57 = arith.constant dense<0.000000e+00> : vector<64xf32>
    %382 = vector.multi_reduction <add>, %381, %cst_57 [0] : vector<16x64xf32> to vector<64xf32>
    %383 = vector.shape_cast %382 : vector<64xf32> to vector<1x64xf32>
    %384 = arith.mulf %205, %378 : vector<16x64xf32>
    %385 = arith.addf %384, %282 : vector<16x64xf32>
    %386 = vector.extract_strided_slice %153 {offsets = [0, 12], sizes = [16, 1], strides = [1, 1]} : vector<16x16xf32> to vector<16x1xf32>
    %387 = vector.broadcast %386 : vector<16x1xf32> to vector<16x64xf32>
    %388 = arith.mulf %387, %385 : vector<16x64xf32>
    %cst_58 = arith.constant dense<0.000000e+00> : vector<64xf32>
    %389 = vector.multi_reduction <add>, %388, %cst_58 [0] : vector<16x64xf32> to vector<64xf32>
    %390 = vector.shape_cast %389 : vector<64xf32> to vector<1x64xf32>
    %391 = arith.mulf %209, %385 : vector<16x64xf32>
    %392 = arith.addf %391, %287 : vector<16x64xf32>
    %393 = vector.extract_strided_slice %153 {offsets = [0, 13], sizes = [16, 1], strides = [1, 1]} : vector<16x16xf32> to vector<16x1xf32>
    %394 = vector.broadcast %393 : vector<16x1xf32> to vector<16x64xf32>
    %395 = arith.mulf %394, %392 : vector<16x64xf32>
    %cst_59 = arith.constant dense<0.000000e+00> : vector<64xf32>
    %396 = vector.multi_reduction <add>, %395, %cst_59 [0] : vector<16x64xf32> to vector<64xf32>
    %397 = vector.shape_cast %396 : vector<64xf32> to vector<1x64xf32>
    %398 = arith.mulf %213, %392 : vector<16x64xf32>
    %399 = arith.addf %398, %292 : vector<16x64xf32>
    %400 = vector.extract_strided_slice %153 {offsets = [0, 14], sizes = [16, 1], strides = [1, 1]} : vector<16x16xf32> to vector<16x1xf32>
    %401 = vector.broadcast %400 : vector<16x1xf32> to vector<16x64xf32>
    %402 = arith.mulf %401, %399 : vector<16x64xf32>
    %cst_60 = arith.constant dense<0.000000e+00> : vector<64xf32>
    %403 = vector.multi_reduction <add>, %402, %cst_60 [0] : vector<16x64xf32> to vector<64xf32>
    %404 = vector.shape_cast %403 : vector<64xf32> to vector<1x64xf32>
    %405 = arith.mulf %217, %399 : vector<16x64xf32>
    %406 = arith.addf %405, %297 : vector<16x64xf32>
    %407 = vector.extract_strided_slice %153 {offsets = [0, 15], sizes = [16, 1], strides = [1, 1]} : vector<16x16xf32> to vector<16x1xf32>
    %408 = vector.broadcast %407 : vector<16x1xf32> to vector<16x64xf32>
    %409 = arith.mulf %408, %406 : vector<16x64xf32>
    %cst_61 = arith.constant dense<0.000000e+00> : vector<64xf32>
    %410 = vector.multi_reduction <add>, %409, %cst_61 [0] : vector<16x64xf32> to vector<64xf32>
    %411 = vector.shape_cast %410 : vector<64xf32> to vector<1x64xf32>
    %412 = tpu.concatenate %305, %312, %319, %326, %333, %340, %347, %354, %362, %369, %376, %383, %390, %397, %404, %411 in 0 : vector<1x64xf32>, vector<1x64xf32>, vector<1x64xf32>, vector<1x64xf32>, vector<1x64xf32>, vector<1x64xf32>, vector<1x64xf32>, vector<1x64xf32>, vector<1x64xf32>, vector<1x64xf32>, vector<1x64xf32>, vector<1x64xf32>, vector<1x64xf32>, vector<1x64xf32>, vector<1x64xf32>, vector<1x64xf32> -> vector<16x64xf32>
    %413 = vector.broadcast %70 : vector<1x64xf32> to vector<16x64xf32>
    %414 = arith.mulf %413, %129 : vector<16x64xf32>
    %415 = arith.addf %412, %414 : vector<16x64xf32>
    %cst_62 = arith.constant 0.000000e+00 : f32
    %416 = vector.broadcast %cst_62 : f32 to vector<16x64xf32>
    %417 = arith.subf %416, %99 : vector<16x64xf32>
    %418 = math.exp %417 : vector<16x64xf32>
    %cst_63 = arith.constant 1.000000e+00 : f32
    %419 = vector.broadcast %cst_63 : f32 to vector<16x64xf32>
    %420 = arith.addf %419, %418 : vector<16x64xf32>
    %421 = tpu.reciprocal %420 {approx = true} : vector<16x64xf32> -> vector<16x64xf32>
    %422 = arith.mulf %99, %421 : vector<16x64xf32>
    %423 = arith.mulf %415, %422 : vector<16x64xf32>
    %c0_64 = arith.constant 0 : index
    %c0_65 = arith.constant 0 : index
    %c0_66 = arith.constant 0 : index
    %424 = vector.load %arg5[%c0_64, %c0_65, %c0_66] : memref<2x64x32xf32, #tpu.memory_space<vmem>>, vector<1x64x32xf32>
    %425 = vector.shape_cast %424 : vector<1x64x32xf32> to vector<64x32xf32>
    %cst_67 = arith.constant dense<0.000000e+00> : vector<16x32xf32>
    %426 = tpu.matmul %423, %425, %cst_67 {dimension_numbers = #tpu.dot_dimension_numbers<[1], [0], [0], [1], [0, 0, 1, 1], [], []>} : vector<16x64xf32>, vector<64x32xf32>, vector<16x32xf32> -> vector<16x32xf32>
    %c1_68 = arith.constant 1 : index
    %c0_69 = arith.constant 0 : index
    %c0_70 = arith.constant 0 : index
    %427 = vector.load %arg7[%c1_68, %c0_69, %c0_70] : memref<3x2x128xf32, #tpu.memory_space<vmem>>, vector<1x2x128xf32>
    %428 = vector.shape_cast %427 : vector<1x2x128xf32> to vector<2x128xf32>
    %429 = vector.extract_strided_slice %428 {offsets = [0, 0], sizes = [1, 32], strides = [1, 1]} : vector<2x128xf32> to vector<1x32xf32>
    %430 = vector.extract_strided_slice %428 {offsets = [0, 32], sizes = [1, 32], strides = [1, 1]} : vector<2x128xf32> to vector<1x32xf32>
    %431 = vector.extract_strided_slice %428 {offsets = [0, 64], sizes = [1, 64], strides = [1, 1]} : vector<2x128xf32> to vector<1x64xf32>
    %432 = vector.extract_strided_slice %428 {offsets = [1, 0], sizes = [1, 64], strides = [1, 1]} : vector<2x128xf32> to vector<1x64xf32>
    %433 = vector.extract_strided_slice %428 {offsets = [1, 64], sizes = [1, 64], strides = [1, 1]} : vector<2x128xf32> to vector<1x64xf32>
    %c1_71 = arith.constant 1 : index
    %c0_72 = arith.constant 0 : index
    %c0_73 = arith.constant 0 : index
    %434 = vector.load %arg6[%c1_71, %c0_72, %c0_73] : memref<2x20x64xf32, #tpu.memory_space<vmem>>, vector<1x20x64xf32>
    %435 = vector.shape_cast %434 : vector<1x20x64xf32> to vector<20x64xf32>
    %436 = vector.extract_strided_slice %435 {offsets = [0, 0], sizes = [16, 64], strides = [1, 1]} : vector<20x64xf32> to vector<16x64xf32>
    %437 = arith.addf %426, %74 : vector<16x32xf32>
    %cst_74 = arith.constant dense<0.000000e+00> : vector<16xf32>
    %438 = vector.multi_reduction <add>, %437, %cst_74 [1] : vector<16x32xf32> to vector<16xf32>
    %439 = vector.shape_cast %438 : vector<16xf32> to vector<16x1xf32>
    %cst_75 = arith.constant 3.200000e+01 : f32
    %440 = vector.broadcast %cst_75 : f32 to vector<16x1xf32>
    %441 = arith.divf %439, %440 : vector<16x1xf32>
    %442 = vector.broadcast %441 : vector<16x1xf32> to vector<16x32xf32>
    %443 = arith.subf %437, %442 : vector<16x32xf32>
    %444 = arith.mulf %443, %443 : vector<16x32xf32>
    %cst_76 = arith.constant dense<0.000000e+00> : vector<16xf32>
    %445 = vector.multi_reduction <add>, %444, %cst_76 [1] : vector<16x32xf32> to vector<16xf32>
    %446 = vector.shape_cast %445 : vector<16xf32> to vector<16x1xf32>
    %cst_77 = arith.constant 3.200000e+01 : f32
    %447 = vector.broadcast %cst_77 : f32 to vector<16x1xf32>
    %448 = arith.divf %446, %447 : vector<16x1xf32>
    %cst_78 = arith.constant 9.99999974E-6 : f32
    %449 = vector.broadcast %cst_78 : f32 to vector<16x1xf32>
    %450 = arith.addf %448, %449 : vector<16x1xf32>
    %451 = math.rsqrt %450 : vector<16x1xf32>
    %452 = vector.broadcast %451 : vector<16x1xf32> to vector<16x32xf32>
    %453 = arith.mulf %443, %452 : vector<16x32xf32>
    %454 = vector.broadcast %429 : vector<1x32xf32> to vector<16x32xf32>
    %455 = arith.mulf %453, %454 : vector<16x32xf32>
    %456 = vector.broadcast %430 : vector<1x32xf32> to vector<16x32xf32>
    %457 = arith.addf %455, %456 : vector<16x32xf32>
    %c1_79 = arith.constant 1 : index
    %c0_80 = arith.constant 0 : index
    %c0_81 = arith.constant 0 : index
    %458 = vector.load %arg3[%c1_79, %c0_80, %c0_81] : memref<2x32x128xf32, #tpu.memory_space<vmem>>, vector<1x32x128xf32>
    %459 = vector.shape_cast %458 : vector<1x32x128xf32> to vector<32x128xf32>
    %cst_82 = arith.constant dense<0.000000e+00> : vector<16x128xf32>
    %460 = tpu.matmul %457, %459, %cst_82 {dimension_numbers = #tpu.dot_dimension_numbers<[1], [0], [0], [1], [0, 0, 1, 1], [], []>} : vector<16x32xf32>, vector<32x128xf32>, vector<16x128xf32> -> vector<16x128xf32>
    %461 = vector.extract_strided_slice %460 {offsets = [0, 0], sizes = [16, 64], strides = [1, 1]} : vector<16x128xf32> to vector<16x64xf32>
    %462 = vector.extract_strided_slice %460 {offsets = [0, 64], sizes = [16, 64], strides = [1, 1]} : vector<16x128xf32> to vector<16x64xf32>
    %463 = vector.extract_strided_slice %435 {offsets = [19, 0], sizes = [1, 64], strides = [1, 1]} : vector<20x64xf32> to vector<1x64xf32>
    %464 = vector.broadcast %463 : vector<1x64xf32> to vector<16x64xf32>
    %465 = arith.mulf %461, %464 : vector<16x64xf32>
    %466 = vector.broadcast %431 : vector<1x64xf32> to vector<16x64xf32>
    %467 = arith.addf %465, %466 : vector<16x64xf32>
    %468 = vector.extract_strided_slice %435 {offsets = [16, 0], sizes = [1, 64], strides = [1, 1]} : vector<20x64xf32> to vector<1x64xf32>
    %c3_i32_83 = arith.constant 3 : i32
    %469 = tpu.dynamic_rotate %461 by %c3_i32_83 dim 0 : vector<16x64xf32>, i32 -> vector<16x64xf32>
    %470 = arith.mulf %469, %63 : vector<16x64xf32>
    %471 = vector.broadcast %468 : vector<1x64xf32> to vector<16x64xf32>
    %472 = arith.mulf %470, %471 : vector<16x64xf32>
    %473 = arith.addf %467, %472 : vector<16x64xf32>
    %474 = vector.extract_strided_slice %435 {offsets = [17, 0], sizes = [1, 64], strides = [1, 1]} : vector<20x64xf32> to vector<1x64xf32>
    %c2_i32_84 = arith.constant 2 : i32
    %475 = tpu.dynamic_rotate %461 by %c2_i32_84 dim 0 : vector<16x64xf32>, i32 -> vector<16x64xf32>
    %476 = arith.mulf %475, %59 : vector<16x64xf32>
    %477 = vector.broadcast %474 : vector<1x64xf32> to vector<16x64xf32>
    %478 = arith.mulf %476, %477 : vector<16x64xf32>
    %479 = arith.addf %473, %478 : vector<16x64xf32>
    %480 = vector.extract_strided_slice %435 {offsets = [18, 0], sizes = [1, 64], strides = [1, 1]} : vector<20x64xf32> to vector<1x64xf32>
    %c1_i32_85 = arith.constant 1 : i32
    %481 = tpu.dynamic_rotate %461 by %c1_i32_85 dim 0 : vector<16x64xf32>, i32 -> vector<16x64xf32>
    %482 = arith.mulf %481, %55 : vector<16x64xf32>
    %483 = vector.broadcast %480 : vector<1x64xf32> to vector<16x64xf32>
    %484 = arith.mulf %482, %483 : vector<16x64xf32>
    %485 = arith.addf %479, %484 : vector<16x64xf32>
    %cst_86 = arith.constant 0.000000e+00 : f32
    %486 = vector.broadcast %cst_86 : f32 to vector<16x64xf32>
    %487 = arith.subf %486, %485 : vector<16x64xf32>
    %488 = math.exp %487 : vector<16x64xf32>
    %cst_87 = arith.constant 1.000000e+00 : f32
    %489 = vector.broadcast %cst_87 : f32 to vector<16x64xf32>
    %490 = arith.addf %489, %488 : vector<16x64xf32>
    %491 = tpu.reciprocal %490 {approx = true} : vector<16x64xf32> -> vector<16x64xf32>
    %492 = arith.mulf %485, %491 : vector<16x64xf32>
    %c1_88 = arith.constant 1 : index
    %c0_89 = arith.constant 0 : index
    %c0_90 = arith.constant 0 : index
    %493 = vector.load %arg4[%c1_88, %c0_89, %c0_90] : memref<2x64x96xf32, #tpu.memory_space<vmem>>, vector<1x64x96xf32>
    %494 = vector.shape_cast %493 : vector<1x64x96xf32> to vector<64x96xf32>
    %cst_91 = arith.constant dense<0.000000e+00> : vector<16x96xf32>
    %495 = tpu.matmul %492, %494, %cst_91 {dimension_numbers = #tpu.dot_dimension_numbers<[1], [0], [0], [1], [0, 0, 1, 1], [], []>} : vector<16x64xf32>, vector<64x96xf32>, vector<16x96xf32> -> vector<16x96xf32>
    %496 = vector.extract_strided_slice %495 {offsets = [0, 0], sizes = [16, 16], strides = [1, 1]} : vector<16x96xf32> to vector<16x16xf32>
    %497 = vector.extract_strided_slice %495 {offsets = [0, 16], sizes = [16, 16], strides = [1, 1]} : vector<16x96xf32> to vector<16x16xf32>
    %498 = vector.extract_strided_slice %495 {offsets = [0, 32], sizes = [16, 64], strides = [1, 1]} : vector<16x96xf32> to vector<16x64xf32>
    %499 = vector.broadcast %432 : vector<1x64xf32> to vector<16x64xf32>
    %500 = arith.addf %498, %499 : vector<16x64xf32>
    %cst_92 = arith.constant 0.000000e+00 : f32
    %501 = vector.broadcast %cst_92 : f32 to vector<16x64xf32>
    %502 = arith.maximumf %500, %501 : vector<16x64xf32>
    %503 = math.absf %500 : vector<16x64xf32>
    %cst_93 = arith.constant 0.000000e+00 : f32
    %504 = vector.broadcast %cst_93 : f32 to vector<16x64xf32>
    %505 = arith.subf %504, %503 : vector<16x64xf32>
    %506 = math.exp %505 : vector<16x64xf32>
    %cst_94 = arith.constant 1.000000e+00 : f32
    %507 = vector.broadcast %cst_94 : f32 to vector<16x64xf32>
    %508 = arith.addf %507, %506 : vector<16x64xf32>
    %509 = math.log %508 : vector<16x64xf32>
    %510 = arith.addf %502, %509 : vector<16x64xf32>
    %511 = math.exp %436 : vector<16x64xf32>
    %cst_95 = arith.constant 0.000000e+00 : f32
    %512 = vector.broadcast %cst_95 : f32 to vector<16x64xf32>
    %513 = arith.subf %512, %511 : vector<16x64xf32>
    %514 = arith.mulf %510, %492 : vector<16x64xf32>
    %515 = tpu.transpose %496, [1, 0] : vector<16x16xf32> -> vector<16x16xf32>
    %516 = tpu.transpose %497, [1, 0] : vector<16x16xf32> -> vector<16x16xf32>
    %517 = vector.extract_strided_slice %510 {offsets = [0, 0], sizes = [1, 64], strides = [1, 1]} : vector<16x64xf32> to vector<1x64xf32>
    %518 = vector.broadcast %517 : vector<1x64xf32> to vector<16x64xf32>
    %519 = arith.mulf %513, %518 : vector<16x64xf32>
    %520 = math.exp %519 : vector<16x64xf32>
    %521 = vector.extract_strided_slice %510 {offsets = [1, 0], sizes = [1, 64], strides = [1, 1]} : vector<16x64xf32> to vector<1x64xf32>
    %522 = vector.broadcast %521 : vector<1x64xf32> to vector<16x64xf32>
    %523 = arith.mulf %513, %522 : vector<16x64xf32>
    %524 = math.exp %523 : vector<16x64xf32>
    %525 = vector.extract_strided_slice %510 {offsets = [2, 0], sizes = [1, 64], strides = [1, 1]} : vector<16x64xf32> to vector<1x64xf32>
    %526 = vector.broadcast %525 : vector<1x64xf32> to vector<16x64xf32>
    %527 = arith.mulf %513, %526 : vector<16x64xf32>
    %528 = math.exp %527 : vector<16x64xf32>
    %529 = vector.extract_strided_slice %510 {offsets = [3, 0], sizes = [1, 64], strides = [1, 1]} : vector<16x64xf32> to vector<1x64xf32>
    %530 = vector.broadcast %529 : vector<1x64xf32> to vector<16x64xf32>
    %531 = arith.mulf %513, %530 : vector<16x64xf32>
    %532 = math.exp %531 : vector<16x64xf32>
    %533 = vector.extract_strided_slice %510 {offsets = [4, 0], sizes = [1, 64], strides = [1, 1]} : vector<16x64xf32> to vector<1x64xf32>
    %534 = vector.broadcast %533 : vector<1x64xf32> to vector<16x64xf32>
    %535 = arith.mulf %513, %534 : vector<16x64xf32>
    %536 = math.exp %535 : vector<16x64xf32>
    %537 = vector.extract_strided_slice %510 {offsets = [5, 0], sizes = [1, 64], strides = [1, 1]} : vector<16x64xf32> to vector<1x64xf32>
    %538 = vector.broadcast %537 : vector<1x64xf32> to vector<16x64xf32>
    %539 = arith.mulf %513, %538 : vector<16x64xf32>
    %540 = math.exp %539 : vector<16x64xf32>
    %541 = vector.extract_strided_slice %510 {offsets = [6, 0], sizes = [1, 64], strides = [1, 1]} : vector<16x64xf32> to vector<1x64xf32>
    %542 = vector.broadcast %541 : vector<1x64xf32> to vector<16x64xf32>
    %543 = arith.mulf %513, %542 : vector<16x64xf32>
    %544 = math.exp %543 : vector<16x64xf32>
    %545 = vector.extract_strided_slice %510 {offsets = [7, 0], sizes = [1, 64], strides = [1, 1]} : vector<16x64xf32> to vector<1x64xf32>
    %546 = vector.broadcast %545 : vector<1x64xf32> to vector<16x64xf32>
    %547 = arith.mulf %513, %546 : vector<16x64xf32>
    %548 = math.exp %547 : vector<16x64xf32>
    %549 = vector.extract_strided_slice %510 {offsets = [8, 0], sizes = [1, 64], strides = [1, 1]} : vector<16x64xf32> to vector<1x64xf32>
    %550 = vector.broadcast %549 : vector<1x64xf32> to vector<16x64xf32>
    %551 = arith.mulf %513, %550 : vector<16x64xf32>
    %552 = math.exp %551 : vector<16x64xf32>
    %553 = vector.extract_strided_slice %510 {offsets = [9, 0], sizes = [1, 64], strides = [1, 1]} : vector<16x64xf32> to vector<1x64xf32>
    %554 = vector.broadcast %553 : vector<1x64xf32> to vector<16x64xf32>
    %555 = arith.mulf %513, %554 : vector<16x64xf32>
    %556 = math.exp %555 : vector<16x64xf32>
    %557 = vector.extract_strided_slice %510 {offsets = [10, 0], sizes = [1, 64], strides = [1, 1]} : vector<16x64xf32> to vector<1x64xf32>
    %558 = vector.broadcast %557 : vector<1x64xf32> to vector<16x64xf32>
    %559 = arith.mulf %513, %558 : vector<16x64xf32>
    %560 = math.exp %559 : vector<16x64xf32>
    %561 = vector.extract_strided_slice %510 {offsets = [11, 0], sizes = [1, 64], strides = [1, 1]} : vector<16x64xf32> to vector<1x64xf32>
    %562 = vector.broadcast %561 : vector<1x64xf32> to vector<16x64xf32>
    %563 = arith.mulf %513, %562 : vector<16x64xf32>
    %564 = math.exp %563 : vector<16x64xf32>
    %565 = vector.extract_strided_slice %510 {offsets = [12, 0], sizes = [1, 64], strides = [1, 1]} : vector<16x64xf32> to vector<1x64xf32>
    %566 = vector.broadcast %565 : vector<1x64xf32> to vector<16x64xf32>
    %567 = arith.mulf %513, %566 : vector<16x64xf32>
    %568 = math.exp %567 : vector<16x64xf32>
    %569 = vector.extract_strided_slice %510 {offsets = [13, 0], sizes = [1, 64], strides = [1, 1]} : vector<16x64xf32> to vector<1x64xf32>
    %570 = vector.broadcast %569 : vector<1x64xf32> to vector<16x64xf32>
    %571 = arith.mulf %513, %570 : vector<16x64xf32>
    %572 = math.exp %571 : vector<16x64xf32>
    %573 = vector.extract_strided_slice %510 {offsets = [14, 0], sizes = [1, 64], strides = [1, 1]} : vector<16x64xf32> to vector<1x64xf32>
    %574 = vector.broadcast %573 : vector<1x64xf32> to vector<16x64xf32>
    %575 = arith.mulf %513, %574 : vector<16x64xf32>
    %576 = math.exp %575 : vector<16x64xf32>
    %577 = vector.extract_strided_slice %510 {offsets = [15, 0], sizes = [1, 64], strides = [1, 1]} : vector<16x64xf32> to vector<1x64xf32>
    %578 = vector.broadcast %577 : vector<1x64xf32> to vector<16x64xf32>
    %579 = arith.mulf %513, %578 : vector<16x64xf32>
    %580 = math.exp %579 : vector<16x64xf32>
    %581 = vector.extract_strided_slice %515 {offsets = [0, 0], sizes = [16, 1], strides = [1, 1]} : vector<16x16xf32> to vector<16x1xf32>
    %582 = vector.extract_strided_slice %514 {offsets = [0, 0], sizes = [1, 64], strides = [1, 1]} : vector<16x64xf32> to vector<1x64xf32>
    %583 = vector.broadcast %581 : vector<16x1xf32> to vector<16x64xf32>
    %584 = vector.broadcast %582 : vector<1x64xf32> to vector<16x64xf32>
    %585 = arith.mulf %583, %584 : vector<16x64xf32>
    %586 = vector.extract_strided_slice %515 {offsets = [0, 1], sizes = [16, 1], strides = [1, 1]} : vector<16x16xf32> to vector<16x1xf32>
    %587 = vector.extract_strided_slice %514 {offsets = [1, 0], sizes = [1, 64], strides = [1, 1]} : vector<16x64xf32> to vector<1x64xf32>
    %588 = vector.broadcast %586 : vector<16x1xf32> to vector<16x64xf32>
    %589 = vector.broadcast %587 : vector<1x64xf32> to vector<16x64xf32>
    %590 = arith.mulf %588, %589 : vector<16x64xf32>
    %591 = vector.extract_strided_slice %515 {offsets = [0, 2], sizes = [16, 1], strides = [1, 1]} : vector<16x16xf32> to vector<16x1xf32>
    %592 = vector.extract_strided_slice %514 {offsets = [2, 0], sizes = [1, 64], strides = [1, 1]} : vector<16x64xf32> to vector<1x64xf32>
    %593 = vector.broadcast %591 : vector<16x1xf32> to vector<16x64xf32>
    %594 = vector.broadcast %592 : vector<1x64xf32> to vector<16x64xf32>
    %595 = arith.mulf %593, %594 : vector<16x64xf32>
    %596 = vector.extract_strided_slice %515 {offsets = [0, 3], sizes = [16, 1], strides = [1, 1]} : vector<16x16xf32> to vector<16x1xf32>
    %597 = vector.extract_strided_slice %514 {offsets = [3, 0], sizes = [1, 64], strides = [1, 1]} : vector<16x64xf32> to vector<1x64xf32>
    %598 = vector.broadcast %596 : vector<16x1xf32> to vector<16x64xf32>
    %599 = vector.broadcast %597 : vector<1x64xf32> to vector<16x64xf32>
    %600 = arith.mulf %598, %599 : vector<16x64xf32>
    %601 = vector.extract_strided_slice %515 {offsets = [0, 4], sizes = [16, 1], strides = [1, 1]} : vector<16x16xf32> to vector<16x1xf32>
    %602 = vector.extract_strided_slice %514 {offsets = [4, 0], sizes = [1, 64], strides = [1, 1]} : vector<16x64xf32> to vector<1x64xf32>
    %603 = vector.broadcast %601 : vector<16x1xf32> to vector<16x64xf32>
    %604 = vector.broadcast %602 : vector<1x64xf32> to vector<16x64xf32>
    %605 = arith.mulf %603, %604 : vector<16x64xf32>
    %606 = vector.extract_strided_slice %515 {offsets = [0, 5], sizes = [16, 1], strides = [1, 1]} : vector<16x16xf32> to vector<16x1xf32>
    %607 = vector.extract_strided_slice %514 {offsets = [5, 0], sizes = [1, 64], strides = [1, 1]} : vector<16x64xf32> to vector<1x64xf32>
    %608 = vector.broadcast %606 : vector<16x1xf32> to vector<16x64xf32>
    %609 = vector.broadcast %607 : vector<1x64xf32> to vector<16x64xf32>
    %610 = arith.mulf %608, %609 : vector<16x64xf32>
    %611 = vector.extract_strided_slice %515 {offsets = [0, 6], sizes = [16, 1], strides = [1, 1]} : vector<16x16xf32> to vector<16x1xf32>
    %612 = vector.extract_strided_slice %514 {offsets = [6, 0], sizes = [1, 64], strides = [1, 1]} : vector<16x64xf32> to vector<1x64xf32>
    %613 = vector.broadcast %611 : vector<16x1xf32> to vector<16x64xf32>
    %614 = vector.broadcast %612 : vector<1x64xf32> to vector<16x64xf32>
    %615 = arith.mulf %613, %614 : vector<16x64xf32>
    %616 = vector.extract_strided_slice %515 {offsets = [0, 7], sizes = [16, 1], strides = [1, 1]} : vector<16x16xf32> to vector<16x1xf32>
    %617 = vector.extract_strided_slice %514 {offsets = [7, 0], sizes = [1, 64], strides = [1, 1]} : vector<16x64xf32> to vector<1x64xf32>
    %618 = vector.broadcast %616 : vector<16x1xf32> to vector<16x64xf32>
    %619 = vector.broadcast %617 : vector<1x64xf32> to vector<16x64xf32>
    %620 = arith.mulf %618, %619 : vector<16x64xf32>
    %621 = vector.extract_strided_slice %515 {offsets = [0, 8], sizes = [16, 1], strides = [1, 1]} : vector<16x16xf32> to vector<16x1xf32>
    %622 = vector.extract_strided_slice %514 {offsets = [8, 0], sizes = [1, 64], strides = [1, 1]} : vector<16x64xf32> to vector<1x64xf32>
    %623 = vector.broadcast %621 : vector<16x1xf32> to vector<16x64xf32>
    %624 = vector.broadcast %622 : vector<1x64xf32> to vector<16x64xf32>
    %625 = arith.mulf %623, %624 : vector<16x64xf32>
    %626 = vector.extract_strided_slice %515 {offsets = [0, 9], sizes = [16, 1], strides = [1, 1]} : vector<16x16xf32> to vector<16x1xf32>
    %627 = vector.extract_strided_slice %514 {offsets = [9, 0], sizes = [1, 64], strides = [1, 1]} : vector<16x64xf32> to vector<1x64xf32>
    %628 = vector.broadcast %626 : vector<16x1xf32> to vector<16x64xf32>
    %629 = vector.broadcast %627 : vector<1x64xf32> to vector<16x64xf32>
    %630 = arith.mulf %628, %629 : vector<16x64xf32>
    %631 = vector.extract_strided_slice %515 {offsets = [0, 10], sizes = [16, 1], strides = [1, 1]} : vector<16x16xf32> to vector<16x1xf32>
    %632 = vector.extract_strided_slice %514 {offsets = [10, 0], sizes = [1, 64], strides = [1, 1]} : vector<16x64xf32> to vector<1x64xf32>
    %633 = vector.broadcast %631 : vector<16x1xf32> to vector<16x64xf32>
    %634 = vector.broadcast %632 : vector<1x64xf32> to vector<16x64xf32>
    %635 = arith.mulf %633, %634 : vector<16x64xf32>
    %636 = vector.extract_strided_slice %515 {offsets = [0, 11], sizes = [16, 1], strides = [1, 1]} : vector<16x16xf32> to vector<16x1xf32>
    %637 = vector.extract_strided_slice %514 {offsets = [11, 0], sizes = [1, 64], strides = [1, 1]} : vector<16x64xf32> to vector<1x64xf32>
    %638 = vector.broadcast %636 : vector<16x1xf32> to vector<16x64xf32>
    %639 = vector.broadcast %637 : vector<1x64xf32> to vector<16x64xf32>
    %640 = arith.mulf %638, %639 : vector<16x64xf32>
    %641 = vector.extract_strided_slice %515 {offsets = [0, 12], sizes = [16, 1], strides = [1, 1]} : vector<16x16xf32> to vector<16x1xf32>
    %642 = vector.extract_strided_slice %514 {offsets = [12, 0], sizes = [1, 64], strides = [1, 1]} : vector<16x64xf32> to vector<1x64xf32>
    %643 = vector.broadcast %641 : vector<16x1xf32> to vector<16x64xf32>
    %644 = vector.broadcast %642 : vector<1x64xf32> to vector<16x64xf32>
    %645 = arith.mulf %643, %644 : vector<16x64xf32>
    %646 = vector.extract_strided_slice %515 {offsets = [0, 13], sizes = [16, 1], strides = [1, 1]} : vector<16x16xf32> to vector<16x1xf32>
    %647 = vector.extract_strided_slice %514 {offsets = [13, 0], sizes = [1, 64], strides = [1, 1]} : vector<16x64xf32> to vector<1x64xf32>
    %648 = vector.broadcast %646 : vector<16x1xf32> to vector<16x64xf32>
    %649 = vector.broadcast %647 : vector<1x64xf32> to vector<16x64xf32>
    %650 = arith.mulf %648, %649 : vector<16x64xf32>
    %651 = vector.extract_strided_slice %515 {offsets = [0, 14], sizes = [16, 1], strides = [1, 1]} : vector<16x16xf32> to vector<16x1xf32>
    %652 = vector.extract_strided_slice %514 {offsets = [14, 0], sizes = [1, 64], strides = [1, 1]} : vector<16x64xf32> to vector<1x64xf32>
    %653 = vector.broadcast %651 : vector<16x1xf32> to vector<16x64xf32>
    %654 = vector.broadcast %652 : vector<1x64xf32> to vector<16x64xf32>
    %655 = arith.mulf %653, %654 : vector<16x64xf32>
    %656 = vector.extract_strided_slice %515 {offsets = [0, 15], sizes = [16, 1], strides = [1, 1]} : vector<16x16xf32> to vector<16x1xf32>
    %657 = vector.extract_strided_slice %514 {offsets = [15, 0], sizes = [1, 64], strides = [1, 1]} : vector<16x64xf32> to vector<1x64xf32>
    %658 = vector.broadcast %656 : vector<16x1xf32> to vector<16x64xf32>
    %659 = vector.broadcast %657 : vector<1x64xf32> to vector<16x64xf32>
    %660 = arith.mulf %658, %659 : vector<16x64xf32>
    %cst_96 = arith.constant 0.000000e+00 : f32
    %661 = vector.broadcast %cst_96 : f32 to vector<16x64xf32>
    %662 = arith.mulf %520, %661 : vector<16x64xf32>
    %663 = arith.addf %662, %585 : vector<16x64xf32>
    %664 = vector.extract_strided_slice %516 {offsets = [0, 0], sizes = [16, 1], strides = [1, 1]} : vector<16x16xf32> to vector<16x1xf32>
    %665 = vector.broadcast %664 : vector<16x1xf32> to vector<16x64xf32>
    %666 = arith.mulf %665, %663 : vector<16x64xf32>
    %cst_97 = arith.constant dense<0.000000e+00> : vector<64xf32>
    %667 = vector.multi_reduction <add>, %666, %cst_97 [0] : vector<16x64xf32> to vector<64xf32>
    %668 = vector.shape_cast %667 : vector<64xf32> to vector<1x64xf32>
    %669 = arith.mulf %524, %663 : vector<16x64xf32>
    %670 = arith.addf %669, %590 : vector<16x64xf32>
    %671 = vector.extract_strided_slice %516 {offsets = [0, 1], sizes = [16, 1], strides = [1, 1]} : vector<16x16xf32> to vector<16x1xf32>
    %672 = vector.broadcast %671 : vector<16x1xf32> to vector<16x64xf32>
    %673 = arith.mulf %672, %670 : vector<16x64xf32>
    %cst_98 = arith.constant dense<0.000000e+00> : vector<64xf32>
    %674 = vector.multi_reduction <add>, %673, %cst_98 [0] : vector<16x64xf32> to vector<64xf32>
    %675 = vector.shape_cast %674 : vector<64xf32> to vector<1x64xf32>
    %676 = arith.mulf %528, %670 : vector<16x64xf32>
    %677 = arith.addf %676, %595 : vector<16x64xf32>
    %678 = vector.extract_strided_slice %516 {offsets = [0, 2], sizes = [16, 1], strides = [1, 1]} : vector<16x16xf32> to vector<16x1xf32>
    %679 = vector.broadcast %678 : vector<16x1xf32> to vector<16x64xf32>
    %680 = arith.mulf %679, %677 : vector<16x64xf32>
    %cst_99 = arith.constant dense<0.000000e+00> : vector<64xf32>
    %681 = vector.multi_reduction <add>, %680, %cst_99 [0] : vector<16x64xf32> to vector<64xf32>
    %682 = vector.shape_cast %681 : vector<64xf32> to vector<1x64xf32>
    %683 = arith.mulf %532, %677 : vector<16x64xf32>
    %684 = arith.addf %683, %600 : vector<16x64xf32>
    %685 = vector.extract_strided_slice %516 {offsets = [0, 3], sizes = [16, 1], strides = [1, 1]} : vector<16x16xf32> to vector<16x1xf32>
    %686 = vector.broadcast %685 : vector<16x1xf32> to vector<16x64xf32>
    %687 = arith.mulf %686, %684 : vector<16x64xf32>
    %cst_100 = arith.constant dense<0.000000e+00> : vector<64xf32>
    %688 = vector.multi_reduction <add>, %687, %cst_100 [0] : vector<16x64xf32> to vector<64xf32>
    %689 = vector.shape_cast %688 : vector<64xf32> to vector<1x64xf32>
    %690 = arith.mulf %536, %684 : vector<16x64xf32>
    %691 = arith.addf %690, %605 : vector<16x64xf32>
    %692 = vector.extract_strided_slice %516 {offsets = [0, 4], sizes = [16, 1], strides = [1, 1]} : vector<16x16xf32> to vector<16x1xf32>
    %693 = vector.broadcast %692 : vector<16x1xf32> to vector<16x64xf32>
    %694 = arith.mulf %693, %691 : vector<16x64xf32>
    %cst_101 = arith.constant dense<0.000000e+00> : vector<64xf32>
    %695 = vector.multi_reduction <add>, %694, %cst_101 [0] : vector<16x64xf32> to vector<64xf32>
    %696 = vector.shape_cast %695 : vector<64xf32> to vector<1x64xf32>
    %697 = arith.mulf %540, %691 : vector<16x64xf32>
    %698 = arith.addf %697, %610 : vector<16x64xf32>
    %699 = vector.extract_strided_slice %516 {offsets = [0, 5], sizes = [16, 1], strides = [1, 1]} : vector<16x16xf32> to vector<16x1xf32>
    %700 = vector.broadcast %699 : vector<16x1xf32> to vector<16x64xf32>
    %701 = arith.mulf %700, %698 : vector<16x64xf32>
    %cst_102 = arith.constant dense<0.000000e+00> : vector<64xf32>
    %702 = vector.multi_reduction <add>, %701, %cst_102 [0] : vector<16x64xf32> to vector<64xf32>
    %703 = vector.shape_cast %702 : vector<64xf32> to vector<1x64xf32>
    %704 = arith.mulf %544, %698 : vector<16x64xf32>
    %705 = arith.addf %704, %615 : vector<16x64xf32>
    %706 = vector.extract_strided_slice %516 {offsets = [0, 6], sizes = [16, 1], strides = [1, 1]} : vector<16x16xf32> to vector<16x1xf32>
    %707 = vector.broadcast %706 : vector<16x1xf32> to vector<16x64xf32>
    %708 = arith.mulf %707, %705 : vector<16x64xf32>
    %cst_103 = arith.constant dense<0.000000e+00> : vector<64xf32>
    %709 = vector.multi_reduction <add>, %708, %cst_103 [0] : vector<16x64xf32> to vector<64xf32>
    %710 = vector.shape_cast %709 : vector<64xf32> to vector<1x64xf32>
    %711 = arith.mulf %548, %705 : vector<16x64xf32>
    %712 = arith.addf %711, %620 : vector<16x64xf32>
    %713 = vector.extract_strided_slice %516 {offsets = [0, 7], sizes = [16, 1], strides = [1, 1]} : vector<16x16xf32> to vector<16x1xf32>
    %714 = vector.broadcast %713 : vector<16x1xf32> to vector<16x64xf32>
    %715 = arith.mulf %714, %712 : vector<16x64xf32>
    %cst_104 = arith.constant dense<0.000000e+00> : vector<64xf32>
    %716 = vector.multi_reduction <add>, %715, %cst_104 [0] : vector<16x64xf32> to vector<64xf32>
    %717 = vector.shape_cast %716 : vector<64xf32> to vector<1x64xf32>
    %cst_105 = arith.constant 0.000000e+00 : f32
    %718 = vector.broadcast %cst_105 : f32 to vector<16x64xf32>
    %719 = arith.mulf %552, %718 : vector<16x64xf32>
    %720 = arith.addf %719, %625 : vector<16x64xf32>
    %721 = vector.extract_strided_slice %516 {offsets = [0, 8], sizes = [16, 1], strides = [1, 1]} : vector<16x16xf32> to vector<16x1xf32>
    %722 = vector.broadcast %721 : vector<16x1xf32> to vector<16x64xf32>
    %723 = arith.mulf %722, %720 : vector<16x64xf32>
    %cst_106 = arith.constant dense<0.000000e+00> : vector<64xf32>
    %724 = vector.multi_reduction <add>, %723, %cst_106 [0] : vector<16x64xf32> to vector<64xf32>
    %725 = vector.shape_cast %724 : vector<64xf32> to vector<1x64xf32>
    %726 = arith.mulf %556, %720 : vector<16x64xf32>
    %727 = arith.addf %726, %630 : vector<16x64xf32>
    %728 = vector.extract_strided_slice %516 {offsets = [0, 9], sizes = [16, 1], strides = [1, 1]} : vector<16x16xf32> to vector<16x1xf32>
    %729 = vector.broadcast %728 : vector<16x1xf32> to vector<16x64xf32>
    %730 = arith.mulf %729, %727 : vector<16x64xf32>
    %cst_107 = arith.constant dense<0.000000e+00> : vector<64xf32>
    %731 = vector.multi_reduction <add>, %730, %cst_107 [0] : vector<16x64xf32> to vector<64xf32>
    %732 = vector.shape_cast %731 : vector<64xf32> to vector<1x64xf32>
    %733 = arith.mulf %560, %727 : vector<16x64xf32>
    %734 = arith.addf %733, %635 : vector<16x64xf32>
    %735 = vector.extract_strided_slice %516 {offsets = [0, 10], sizes = [16, 1], strides = [1, 1]} : vector<16x16xf32> to vector<16x1xf32>
    %736 = vector.broadcast %735 : vector<16x1xf32> to vector<16x64xf32>
    %737 = arith.mulf %736, %734 : vector<16x64xf32>
    %cst_108 = arith.constant dense<0.000000e+00> : vector<64xf32>
    %738 = vector.multi_reduction <add>, %737, %cst_108 [0] : vector<16x64xf32> to vector<64xf32>
    %739 = vector.shape_cast %738 : vector<64xf32> to vector<1x64xf32>
    %740 = arith.mulf %564, %734 : vector<16x64xf32>
    %741 = arith.addf %740, %640 : vector<16x64xf32>
    %742 = vector.extract_strided_slice %516 {offsets = [0, 11], sizes = [16, 1], strides = [1, 1]} : vector<16x16xf32> to vector<16x1xf32>
    %743 = vector.broadcast %742 : vector<16x1xf32> to vector<16x64xf32>
    %744 = arith.mulf %743, %741 : vector<16x64xf32>
    %cst_109 = arith.constant dense<0.000000e+00> : vector<64xf32>
    %745 = vector.multi_reduction <add>, %744, %cst_109 [0] : vector<16x64xf32> to vector<64xf32>
    %746 = vector.shape_cast %745 : vector<64xf32> to vector<1x64xf32>
    %747 = arith.mulf %568, %741 : vector<16x64xf32>
    %748 = arith.addf %747, %645 : vector<16x64xf32>
    %749 = vector.extract_strided_slice %516 {offsets = [0, 12], sizes = [16, 1], strides = [1, 1]} : vector<16x16xf32> to vector<16x1xf32>
    %750 = vector.broadcast %749 : vector<16x1xf32> to vector<16x64xf32>
    %751 = arith.mulf %750, %748 : vector<16x64xf32>
    %cst_110 = arith.constant dense<0.000000e+00> : vector<64xf32>
    %752 = vector.multi_reduction <add>, %751, %cst_110 [0] : vector<16x64xf32> to vector<64xf32>
    %753 = vector.shape_cast %752 : vector<64xf32> to vector<1x64xf32>
    %754 = arith.mulf %572, %748 : vector<16x64xf32>
    %755 = arith.addf %754, %650 : vector<16x64xf32>
    %756 = vector.extract_strided_slice %516 {offsets = [0, 13], sizes = [16, 1], strides = [1, 1]} : vector<16x16xf32> to vector<16x1xf32>
    %757 = vector.broadcast %756 : vector<16x1xf32> to vector<16x64xf32>
    %758 = arith.mulf %757, %755 : vector<16x64xf32>
    %cst_111 = arith.constant dense<0.000000e+00> : vector<64xf32>
    %759 = vector.multi_reduction <add>, %758, %cst_111 [0] : vector<16x64xf32> to vector<64xf32>
    %760 = vector.shape_cast %759 : vector<64xf32> to vector<1x64xf32>
    %761 = arith.mulf %576, %755 : vector<16x64xf32>
    %762 = arith.addf %761, %655 : vector<16x64xf32>
    %763 = vector.extract_strided_slice %516 {offsets = [0, 14], sizes = [16, 1], strides = [1, 1]} : vector<16x16xf32> to vector<16x1xf32>
    %764 = vector.broadcast %763 : vector<16x1xf32> to vector<16x64xf32>
    %765 = arith.mulf %764, %762 : vector<16x64xf32>
    %cst_112 = arith.constant dense<0.000000e+00> : vector<64xf32>
    %766 = vector.multi_reduction <add>, %765, %cst_112 [0] : vector<16x64xf32> to vector<64xf32>
    %767 = vector.shape_cast %766 : vector<64xf32> to vector<1x64xf32>
    %768 = arith.mulf %580, %762 : vector<16x64xf32>
    %769 = arith.addf %768, %660 : vector<16x64xf32>
    %770 = vector.extract_strided_slice %516 {offsets = [0, 15], sizes = [16, 1], strides = [1, 1]} : vector<16x16xf32> to vector<16x1xf32>
    %771 = vector.broadcast %770 : vector<16x1xf32> to vector<16x64xf32>
    %772 = arith.mulf %771, %769 : vector<16x64xf32>
    %cst_113 = arith.constant dense<0.000000e+00> : vector<64xf32>
    %773 = vector.multi_reduction <add>, %772, %cst_113 [0] : vector<16x64xf32> to vector<64xf32>
    %774 = vector.shape_cast %773 : vector<64xf32> to vector<1x64xf32>
    %775 = tpu.concatenate %668, %675, %682, %689, %696, %703, %710, %717, %725, %732, %739, %746, %753, %760, %767, %774 in 0 : vector<1x64xf32>, vector<1x64xf32>, vector<1x64xf32>, vector<1x64xf32>, vector<1x64xf32>, vector<1x64xf32>, vector<1x64xf32>, vector<1x64xf32>, vector<1x64xf32>, vector<1x64xf32>, vector<1x64xf32>, vector<1x64xf32>, vector<1x64xf32>, vector<1x64xf32>, vector<1x64xf32>, vector<1x64xf32> -> vector<16x64xf32>
    %776 = vector.broadcast %433 : vector<1x64xf32> to vector<16x64xf32>
    %777 = arith.mulf %776, %492 : vector<16x64xf32>
    %778 = arith.addf %775, %777 : vector<16x64xf32>
    %cst_114 = arith.constant 0.000000e+00 : f32
    %779 = vector.broadcast %cst_114 : f32 to vector<16x64xf32>
    %780 = arith.subf %779, %462 : vector<16x64xf32>
    %781 = math.exp %780 : vector<16x64xf32>
    %cst_115 = arith.constant 1.000000e+00 : f32
    %782 = vector.broadcast %cst_115 : f32 to vector<16x64xf32>
    %783 = arith.addf %782, %781 : vector<16x64xf32>
    %784 = tpu.reciprocal %783 {approx = true} : vector<16x64xf32> -> vector<16x64xf32>
    %785 = arith.mulf %462, %784 : vector<16x64xf32>
    %786 = arith.mulf %778, %785 : vector<16x64xf32>
    %c1_116 = arith.constant 1 : index
    %c0_117 = arith.constant 0 : index
    %c0_118 = arith.constant 0 : index
    %787 = vector.load %arg5[%c1_116, %c0_117, %c0_118] : memref<2x64x32xf32, #tpu.memory_space<vmem>>, vector<1x64x32xf32>
    %788 = vector.shape_cast %787 : vector<1x64x32xf32> to vector<64x32xf32>
    %cst_119 = arith.constant dense<0.000000e+00> : vector<16x32xf32>
    %789 = tpu.matmul %786, %788, %cst_119 {dimension_numbers = #tpu.dot_dimension_numbers<[1], [0], [0], [1], [0, 0, 1, 1], [], []>} : vector<16x64xf32>, vector<64x32xf32>, vector<16x32xf32> -> vector<16x32xf32>
    %c2_120 = arith.constant 2 : index
    %c0_121 = arith.constant 0 : index
    %c0_122 = arith.constant 0 : index
    %790 = vector.load %arg7[%c2_120, %c0_121, %c0_122] : memref<3x2x128xf32, #tpu.memory_space<vmem>>, vector<1x2x128xf32>
    %791 = vector.shape_cast %790 : vector<1x2x128xf32> to vector<2x128xf32>
    %792 = arith.addf %789, %437 : vector<16x32xf32>
    %793 = vector.extract_strided_slice %791 {offsets = [0, 0], sizes = [1, 32], strides = [1, 1]} : vector<2x128xf32> to vector<1x32xf32>
    %794 = vector.extract_strided_slice %791 {offsets = [0, 32], sizes = [1, 32], strides = [1, 1]} : vector<2x128xf32> to vector<1x32xf32>
    %cst_123 = arith.constant dense<0.000000e+00> : vector<16xf32>
    %795 = vector.multi_reduction <add>, %792, %cst_123 [1] : vector<16x32xf32> to vector<16xf32>
    %796 = vector.shape_cast %795 : vector<16xf32> to vector<16x1xf32>
    %cst_124 = arith.constant 3.200000e+01 : f32
    %797 = vector.broadcast %cst_124 : f32 to vector<16x1xf32>
    %798 = arith.divf %796, %797 : vector<16x1xf32>
    %799 = vector.broadcast %798 : vector<16x1xf32> to vector<16x32xf32>
    %800 = arith.subf %792, %799 : vector<16x32xf32>
    %801 = arith.mulf %800, %800 : vector<16x32xf32>
    %cst_125 = arith.constant dense<0.000000e+00> : vector<16xf32>
    %802 = vector.multi_reduction <add>, %801, %cst_125 [1] : vector<16x32xf32> to vector<16xf32>
    %803 = vector.shape_cast %802 : vector<16xf32> to vector<16x1xf32>
    %cst_126 = arith.constant 3.200000e+01 : f32
    %804 = vector.broadcast %cst_126 : f32 to vector<16x1xf32>
    %805 = arith.divf %803, %804 : vector<16x1xf32>
    %cst_127 = arith.constant 9.99999974E-6 : f32
    %806 = vector.broadcast %cst_127 : f32 to vector<16x1xf32>
    %807 = arith.addf %805, %806 : vector<16x1xf32>
    %808 = math.rsqrt %807 : vector<16x1xf32>
    %809 = vector.broadcast %808 : vector<16x1xf32> to vector<16x32xf32>
    %810 = arith.mulf %800, %809 : vector<16x32xf32>
    %811 = vector.broadcast %793 : vector<1x32xf32> to vector<16x32xf32>
    %812 = arith.mulf %810, %811 : vector<16x32xf32>
    %813 = vector.broadcast %794 : vector<1x32xf32> to vector<16x32xf32>
    %814 = arith.addf %812, %813 : vector<16x32xf32>
    %815 = vector.extract_strided_slice %814 {offsets = [0, 0], sizes = [1, 32], strides = [1, 1]} : vector<16x32xf32> to vector<1x32xf32>
    %816 = vector.extract_strided_slice %814 {offsets = [1, 0], sizes = [1, 32], strides = [1, 1]} : vector<16x32xf32> to vector<1x32xf32>
    %817 = vector.extract_strided_slice %814 {offsets = [2, 0], sizes = [1, 32], strides = [1, 1]} : vector<16x32xf32> to vector<1x32xf32>
    %818 = vector.extract_strided_slice %814 {offsets = [3, 0], sizes = [1, 32], strides = [1, 1]} : vector<16x32xf32> to vector<1x32xf32>
    %819 = vector.extract_strided_slice %814 {offsets = [4, 0], sizes = [1, 32], strides = [1, 1]} : vector<16x32xf32> to vector<1x32xf32>
    %820 = vector.extract_strided_slice %814 {offsets = [5, 0], sizes = [1, 32], strides = [1, 1]} : vector<16x32xf32> to vector<1x32xf32>
    %821 = vector.extract_strided_slice %814 {offsets = [6, 0], sizes = [1, 32], strides = [1, 1]} : vector<16x32xf32> to vector<1x32xf32>
    %822 = vector.extract_strided_slice %814 {offsets = [7, 0], sizes = [1, 32], strides = [1, 1]} : vector<16x32xf32> to vector<1x32xf32>
    %823 = tpu.concatenate %815, %816, %817, %818, %819, %820, %821, %822 in 1 : vector<1x32xf32>, vector<1x32xf32>, vector<1x32xf32>, vector<1x32xf32>, vector<1x32xf32>, vector<1x32xf32>, vector<1x32xf32>, vector<1x32xf32> -> vector<1x256xf32>
    %824 = vector.extract_strided_slice %814 {offsets = [8, 0], sizes = [1, 32], strides = [1, 1]} : vector<16x32xf32> to vector<1x32xf32>
    %825 = vector.extract_strided_slice %814 {offsets = [9, 0], sizes = [1, 32], strides = [1, 1]} : vector<16x32xf32> to vector<1x32xf32>
    %826 = vector.extract_strided_slice %814 {offsets = [10, 0], sizes = [1, 32], strides = [1, 1]} : vector<16x32xf32> to vector<1x32xf32>
    %827 = vector.extract_strided_slice %814 {offsets = [11, 0], sizes = [1, 32], strides = [1, 1]} : vector<16x32xf32> to vector<1x32xf32>
    %828 = vector.extract_strided_slice %814 {offsets = [12, 0], sizes = [1, 32], strides = [1, 1]} : vector<16x32xf32> to vector<1x32xf32>
    %829 = vector.extract_strided_slice %814 {offsets = [13, 0], sizes = [1, 32], strides = [1, 1]} : vector<16x32xf32> to vector<1x32xf32>
    %830 = vector.extract_strided_slice %814 {offsets = [14, 0], sizes = [1, 32], strides = [1, 1]} : vector<16x32xf32> to vector<1x32xf32>
    %831 = vector.extract_strided_slice %814 {offsets = [15, 0], sizes = [1, 32], strides = [1, 1]} : vector<16x32xf32> to vector<1x32xf32>
    %832 = tpu.concatenate %824, %825, %826, %827, %828, %829, %830, %831 in 1 : vector<1x32xf32>, vector<1x32xf32>, vector<1x32xf32>, vector<1x32xf32>, vector<1x32xf32>, vector<1x32xf32>, vector<1x32xf32>, vector<1x32xf32> -> vector<1x256xf32>
    %833 = tpu.concatenate %823, %832 in 0 : vector<1x256xf32>, vector<1x256xf32> -> vector<2x256xf32>
    %c0_128 = arith.constant 0 : index
    %c0_129 = arith.constant 0 : index
    %834 = vector.load %arg8[%c0_128, %c0_129] : memref<2x256xf32, #tpu.memory_space<vmem>>, vector<2x256xf32>
    tpu.vector_store %arg8[%c0_128, %c0_129], %833 {strides = array<i32>} : memref<2x256xf32, #tpu.memory_space<vmem>>, vector<2x256xf32>,
    return
  }
  func.func @transform_0(%arg0: i32, %arg1: memref<16xi32, #tpu.memory_space<smem>>) -> (i32, i32) {
    %c0_i32 = arith.constant 0 : i32
    %c0_i32_0 = arith.constant 0 : i32
    %c0_i32_1 = arith.constant 0 : i32
    return %c0_i32, %c0_i32_0 : i32, i32
  }
  func.func @transform_1(%arg0: i32, %arg1: memref<16xi32, #tpu.memory_space<smem>>) -> (i32, i32, i32) {
    %c0_i32 = arith.constant 0 : i32
    %c0_i32_0 = arith.constant 0 : i32
    %c0_i32_1 = arith.constant 0 : i32
    %c0_i32_2 = arith.constant 0 : i32
    return %c0_i32, %c0_i32_0, %c0_i32_1 : i32, i32, i32
  }
  func.func @transform_2(%arg0: i32, %arg1: memref<16xi32, #tpu.memory_space<smem>>) -> (i32, i32, i32) {
    %c0_i32 = arith.constant 0 : i32
    %c0_i32_0 = arith.constant 0 : i32
    %c0_i32_1 = arith.constant 0 : i32
    %c0_i32_2 = arith.constant 0 : i32
    return %c0_i32, %c0_i32_0, %c0_i32_1 : i32, i32, i32
  }
  func.func @transform_3(%arg0: i32, %arg1: memref<16xi32, #tpu.memory_space<smem>>) -> (i32, i32, i32) {
    %c0_i32 = arith.constant 0 : i32
    %c0_i32_0 = arith.constant 0 : i32
    %c0_i32_1 = arith.constant 0 : i32
    %c0_i32_2 = arith.constant 0 : i32
    return %c0_i32, %c0_i32_0, %c0_i32_1 : i32, i32, i32
  }
  func.func @transform_4(%arg0: i32, %arg1: memref<16xi32, #tpu.memory_space<smem>>) -> (i32, i32, i32) {
    %c0_i32 = arith.constant 0 : i32
    %c0_i32_0 = arith.constant 0 : i32
    %c0_i32_1 = arith.constant 0 : i32
    %c0_i32_2 = arith.constant 0 : i32
    return %c0_i32, %c0_i32_0, %c0_i32_1 : i32, i32, i32
  }
  func.func @transform_5(%arg0: i32, %arg1: memref<16xi32, #tpu.memory_space<smem>>) -> (i32, i32, i32) {
    %c0_i32 = arith.constant 0 : i32
    %c0_i32_0 = arith.constant 0 : i32
    %c0_i32_1 = arith.constant 0 : i32
    %c0_i32_2 = arith.constant 0 : i32
    return %c0_i32, %c0_i32_0, %c0_i32_1 : i32, i32, i32
  }
  func.func @transform_6(%arg0: i32, %arg1: memref<16xi32, #tpu.memory_space<smem>>) -> (i32, i32) {
    %c0_i32 = arith.constant 0 : i32
    %c0_i32_0 = arith.constant 0 : i32
    %c0_i32_1 = arith.constant 0 : i32
    return %c0_i32, %c0_i32_0 : i32, i32
  }
}

</mosaic_0001>

<llo_original>
// kernel: tpu_custom_call.1
$region0: #{tpu_custom_call.1}
  #allocation0 [shape = 'u32[]', space=smem, size = 0x4, offset = 0x4, fixed_abs, tag = 'smem constant byte address 0x4 - core index']
  #allocation1 [shape = 'u32[72,128]{1,0:T(1,128)}', space=vmem, size = 0x9000, scoped, tag = 'internal scratch']
  #allocation2 [shape = 's32[1]{0}', space=sflag, size = 0x4, scoped, tag = 'scoped memory for tpu_custom_call.1']
  #allocation3 [shape = 'u8[512]{0}', space=smem, size = 0x200, scoped, tag = 'prefetched SMEM operand 0']
  %s0 = inlined_call_operand.vmem [shape: s32[16], index: 0, kind: input, shape index: {}]
  %s1 = inlined_call_operand.vmem [shape: f32[64,32], index: 1, kind: input, shape index: {}]
  %s2 = inlined_call_operand.vmem [shape: f32[2,32,128], index: 2, kind: input, shape index: {}]
  %s3 = inlined_call_operand.vmem [shape: f32[2,64,96], index: 3, kind: input, shape index: {}]
  %s4 = inlined_call_operand.vmem [shape: f32[2,64,32], index: 4, kind: input, shape index: {}]
  %s5 = inlined_call_operand.vmem [shape: f32[2,20,64], index: 5, kind: input, shape index: {}]
  %s6 = inlined_call_operand.vmem [shape: f32[3,2,128], index: 6, kind: input, shape index: {}]
  %s7 = inlined_call_operand.hbm [shape: f32[2,256], index: 7, kind: output, shape index: {}]
  %s8 = sld [smem:[#allocation0]]
  $region34: #{tpu_custom_call.1} parent=0
    _
  %s10 = ssub.s32 1, %s8
  %s11 = scalar_select 0, %s10, %s8
  %s13 = sshll.u32 %s0, 4
  %s14 = int_to_ptr.vmem [resolvable:$true] %s13
  %16 = dma.vmem_to_smem %s14, 16, [#allocation3], [#allocation2]
  %18 = dma.done [#allocation2], 16
  %19 = sfence
  $region1: #{tpu_custom_call.1} parent=0
    #allocation4 [shape = 'u8[2048]{0}', space=vmem, size = 0x800, scoped, tag = 'output window, operand 0, single buffered']
    #allocation5 [shape = 's32[1]{0}', space=sflag, size = 0x4, scoped, tag = 'scoped memory for tpu_custom_call.1']
    %20 = vsyncpa [#allocation5], 0
    // Predicated region
    $region2: #{tpu_custom_call.1} parent=1 // pred_check
      _
    $region3: #{tpu_custom_call.1} parent=1 // pred_check_branch
      %22 = sbr.rel (0) target = $region5
    $region4: #{tpu_custom_call.1} parent=1 // pred_region
      _
    $region5: #{tpu_custom_call.1} parent=1 // pred_fallthru
      _
    // Predicated region
    $region6: #{tpu_custom_call.1} parent=1 // pred_check
      _
    $region7: #{tpu_custom_call.1} parent=1 // pred_check_branch
      %24 = sbr.rel (0) target = $region9
    $region8: #{tpu_custom_call.1} parent=1 // pred_region
      _
    $region9: #{tpu_custom_call.1} parent=1 // pred_fallthru
      _
    // Predicated region
    $region10: #{tpu_custom_call.1} parent=1 // pred_check
      _
    $region11: #{tpu_custom_call.1} parent=1 // pred_check_branch
      %26 = sbr.rel (0) target = $region13
    $region12: #{tpu_custom_call.1} parent=1 // pred_region
      _
    $region13: #{tpu_custom_call.1} parent=1 // pred_fallthru
      _
    // Predicated region
    $region14: #{tpu_custom_call.1} parent=1 // pred_check
      _
    $region15: #{tpu_custom_call.1} parent=1 // pred_check_branch
      %28 = sbr.rel (0) target = $region17
    $region16: #{tpu_custom_call.1} parent=1 // pred_region
      _
    $region17: #{tpu_custom_call.1} parent=1 // pred_fallthru
      _
    // Predicated region
    $region18: #{tpu_custom_call.1} parent=1 // pred_check
      _
    $region19: #{tpu_custom_call.1} parent=1 // pred_check_branch
      %30 = sbr.rel (0) target = $region21
    $region20: #{tpu_custom_call.1} parent=1 // pred_region
      _
    $region21: #{tpu_custom_call.1} parent=1 // pred_fallthru
      _
    // Predicated region
    $region22: #{tpu_custom_call.1} parent=1 // pred_check
      _
    $region23: #{tpu_custom_call.1} parent=1 // pred_check_branch
      %32 = sbr.rel (0) target = $region25
    $region24: #{tpu_custom_call.1} parent=1 // pred_region
      _
    $region25: #{tpu_custom_call.1} parent=1 // pred_fallthru
      _
    %s33 = sld [smem:[#allocation3]]
    %s34 = scalar_lea.vmem %s1, %s33
    %v35 = vld [vmem:[%s34] sm:$0x1]
    %s36 = sld [smem:[#allocation3 + $0x1]]
    %s37 = scalar_lea.vmem %s1, %s36
    %v38 = vld [vmem:[%s37] sm:$0x1]
    %s39 = sld [smem:[#allocation3 + $0x2]]
    %s40 = scalar_lea.vmem %s1, %s39
    %v41 = vld [vmem:[%s40] sm:$0x1]
    %s42 = sld [smem:[#allocation3 + $0x3]]
    %s43 = scalar_lea.vmem %s1, %s42
    %v44 = vld [vmem:[%s43] sm:$0x1]
    %s45 = sld [smem:[#allocation3 + $0x4]]
    %s46 = scalar_lea.vmem %s1, %s45
    %v47 = vld [vmem:[%s46] sm:$0x1]
    %s48 = sld [smem:[#allocation3 + $0x5]]
    %s49 = scalar_lea.vmem %s1, %s48
    %v50 = vld [vmem:[%s49] sm:$0x1]
    %s51 = sld [smem:[#allocation3 + $0x6]]
    %s52 = scalar_lea.vmem %s1, %s51
    %v53 = vld [vmem:[%s52] sm:$0x1]
    %s54 = sld [smem:[#allocation3 + $0x7]]
    %s55 = scalar_lea.vmem %s1, %s54
    %v56 = vld [vmem:[%s55] sm:$0x1]
    %s57 = sld [smem:[#allocation3 + $0x8]]
    %s58 = scalar_lea.vmem %s1, %s57
    %v59 = vld [vmem:[%s58] sm:$0x1]
    %s60 = sld [smem:[#allocation3 + $0x9]]
    %s61 = scalar_lea.vmem %s1, %s60
    %v62 = vld [vmem:[%s61] sm:$0x1]
    %s63 = sld [smem:[#allocation3 + $0xa]]
    %s64 = scalar_lea.vmem %s1, %s63
    %v65 = vld [vmem:[%s64] sm:$0x1]
    %s66 = sld [smem:[#allocation3 + $0xb]]
    %s67 = scalar_lea.vmem %s1, %s66
    %v68 = vld [vmem:[%s67] sm:$0x1]
    %s69 = sld [smem:[#allocation3 + $0xc]]
    %s70 = scalar_lea.vmem %s1, %s69
    %v71 = vld [vmem:[%s70] sm:$0x1]
    %s72 = sld [smem:[#allocation3 + $0xd]]
    %s73 = scalar_lea.vmem %s1, %s72
    %v74 = vld [vmem:[%s73] sm:$0x1]
    %s75 = sld [smem:[#allocation3 + $0xe]]
    %s76 = scalar_lea.vmem %s1, %s75
    %v77 = vld [vmem:[%s76] sm:$0x1]
    %s78 = sld [smem:[#allocation3 + $0xf]]
    %s79 = scalar_lea.vmem %s1, %s78
    %v80 = vld [vmem:[%s79] sm:$0x1]
    %v82 = vrot.slane %v38, 7
    %v85 = vrot.slane %v41, 6
    %v88 = vrot.slane %v44, 5
    %v91 = vrot.slane %v47, 4
    %v94 = vrot.slane %v50, 3
    %v97 = vrot.slane %v53, 2
    %v100 = vrot.slane %v56, 1
    %v103 = vrot.slane %v62, 7
    %v106 = vrot.slane %v65, 6
    %v109 = vrot.slane %v68, 5
    %v112 = vrot.slane %v71, 4
    %v115 = vrot.slane %v74, 3
    %v118 = vrot.slane %v77, 2
    %v121 = vrot.slane %v80, 1
    %vm123 = vcmask 1040384
    %v124 = vsel %vm123, %v35, %v82
    %vm125 = vcmask 1041408
    %v126 = vsel %vm125, %v124, %v85
    %vm127 = vcmask 1042432
    %v128 = vsel %vm127, %v126, %v88
    %vm129 = vcmask 1043456
    %v130 = vsel %vm129, %v128, %v91
    %vm131 = vcmask 1044480
    %v132 = vsel %vm131, %v130, %v94
    %vm133 = vcmask 1045504
    %v134 = vsel %vm133, %v132, %v97
    %vm135 = vcmask 1046528
    %v136 = vsel %vm135, %v134, %v100
    %v137 = vsel %vm123, %v59, %v103
    %v138 = vsel %vm125, %v137, %v106
    %v139 = vsel %vm127, %v138, %v109
    %v140 = vsel %vm129, %v139, %v112
    %v141 = vsel %vm131, %v140, %v115
    %v142 = vsel %vm133, %v141, %v118
    %v143 = vsel %vm135, %v142, %v121
    %v144 = vlaneseq
    %v145 = vshrl.u32 %v144, 7
    %vm146 = vcmp.ge.s32.totalorder %v145, 1
    %v147 = vsel %vm146, 1, 0
    %v148 = vcvt.s32.f32 %v147
    %vm149 = vcmp.ge.s32.totalorder %v145, 2
    %v150 = vsel %vm149, 1, 0
    %v151 = vcvt.s32.f32 %v150
    %vm152 = vcmp.ge.s32.totalorder %v145, 3
    %v153 = vsel %vm152, 1, 0
    %v154 = vcvt.s32.f32 %v153
    %v155 = vld [vmem:[%s6] sm:$0x3]
    %v156 = vld [vmem:[%s5] sm:$0xff]
    %v157 = vld [vmem:[%s5 + $0x8] sm:$0xff]
    %v158 = vld [vmem:[%s5 + $0x10] sm:$0xf]
    %v159 = vadd.f32 %v136, 0.0
    %v160 = vadd.f32 %v143, 0.0
    %vm161 = vcmask 261120
    %v162 = vsel %vm161, %v159, 0.0
    %163 = vadd.xlane.f32.xlu0 %v162
    %v164 = vpop.xlane.xlu0 %163
    %v165 = vsel %vm161, %v160, 0.0
    %166 = vadd.xlane.f32.xlu0 %v165
    %v167 = vpop.xlane.xlu0 %166
    %v168 = vrcp.pop 32.0
    %v169 = vmul.f32 32.0, %v168
    %v170 = vsub.f32 1.0, %v169
    %v171 = vmul.f32 %v168, %v170
    %v172 = vadd.f32 %v168, %v171
    %vm173 = vweird.f32 %v168
    %v174 = vsel %vm173, %v168, %v172
    %v175 = vmul.f32 %v164, %v174
    %v176 = vmul.f32 %v167, %v174
    %v177 = vsub.f32 %v159, %v175
    %v178 = vsub.f32 %v160, %v176
    %v179 = vmul.f32 %v177, %v177
    %v180 = vmul.f32 %v178, %v178
    %v181 = vsel %vm161, %v179, 0.0
    %182 = vadd.xlane.f32.xlu0 %v181
    %v183 = vpop.xlane.xlu0 %182
    %v184 = vsel %vm161, %v180, 0.0
    %185 = vadd.xlane.f32.xlu0 %v184
    %v186 = vpop.xlane.xlu0 %185
    %v187 = vmul.f32 %v183, %v174
    %v188 = vmul.f32 %v186, %v174
    %v189 = vadd.f32 %v187, 1e-05
    %v190 = vadd.f32 %v188, 1e-05
    %v191 = vrsqrt.pop %v189
    %v192 = vmul.f32 %v191, %v189
    %v193 = vmul.f32 %v192, %v191
    %v194 = vmul.f32 0.5, %v193
    %v195 = vsub.f32 1.5, %v194
    %v196 = vmul.f32 %v191, %v195
    %vm197 = vweird.f32 %v189
    %vm198 = vweird.f32 %v191
    %vm199 = vmor %vm197, %vm198
    %v200 = vsel %vm199, %v191, %v196
    %v201 = vrsqrt.pop %v190
    %v202 = vmul.f32 %v201, %v190
    %v203 = vmul.f32 %v202, %v201
    %v204 = vmul.f32 0.5, %v203
    %v205 = vsub.f32 1.5, %v204
    %v206 = vmul.f32 %v201, %v205
    %vm207 = vweird.f32 %v190
    %vm208 = vweird.f32 %v201
    %vm209 = vmor %vm207, %vm208
    %v210 = vsel %vm209, %v201, %v206
    %v211 = vmul.f32 %v177, %v200
    %v212 = vmul.f32 %v178, %v210
    %v213 = vperm.slane %v155, 0
    %v214 = vmul.f32 %v211, %v213
    %v215 = vmul.f32 %v212, %v213
    %217 = vrot.lane.b32.xlu0 %v213, 96
    %v218 = vpop.permute.xlu0 %217
    %v220 = vadd.f32 %v214, %v218
    %v221 = vadd.f32 %v215, %v218
    %v222 = vld [vmem:[%s2] sm:$0xff]
    %v223 = vld [vmem:[%s2 + $0x8] sm:$0xff]
    %v224 = vld [vmem:[%s2 + $0x10] sm:$0xff]
    %v225 = vld [vmem:[%s2 + $0x18] sm:$0xff]
    %v227 = vsel %vm161, %v220, 0
    %v230 = vsel %vm161, %v221, 0
    %232 = vmatpush.msra.mxu0 0.0
    %233 = vmatpush.msra.mxu0 0.0
    %234 = vmatpush.msra.mxu0 0.0
    %235 = vmatpush.msra.mxu0 0.0
    %236 = vmatpush.msra.mxu0 0.0
    %237 = vmatpush.msra.mxu0 0.0
    %238 = vmatpush.msra.mxu0 0.0
    %239 = vmatpush.msra.mxu0 0.0
    %240 = vmatpush.msra.mxu0 0.0
    %241 = vmatpush.msra.mxu0 0.0
    %242 = vmatpush.msra.mxu0 0.0
    %243 = vmatpush.msra.mxu0 0.0
    %244 = vmatpush.msra.mxu0 %v225
    %245 = vmatpush.msra.mxu0 %v224
    %246 = vmatpush.msra.mxu0 %v223
    %247 = vmatpush.msra.mxu0 %v222
    %248 = vmatmul.f32.gmra.mxu0 %v227
    %v249 = vpop.f32.mrf.mxu0
    %v250 = vadd.f32 0.0, %v249
    %251 = vmatmul.f32.gmra.mxu0 %v230
    %v252 = vpop.f32.mrf.mxu0
    %v253 = vadd.f32 0.0, %v252
    %254 = vdwg.mxu0
    %v255 = vperm.slane %v158, 3
    %v256 = vmul.f32 %v250, %v255
    %v257 = vmul.f32 %v253, %v255
    %258 = vrot.lane.b32.xlu0 %v213, 64
    %v259 = vpop.permute.xlu0 %258
    %v261 = vadd.f32 %v256, %v259
    %v262 = vadd.f32 %v257, %v259
    %v263 = vrot.slane %v250, 5
    %v264 = vrot.slane %v253, 5
    %vm265 = vcmp.lt.s32.totalorder %v145, 3
    %v266 = vsel %vm265, %v263, %v264
    %v267 = vsel %vm265, %v264, %v263
    %v268 = vmul.f32 %v267, %v154
    %v269 = vmul.f32 %v266, %v154
    %v270 = vperm.slane %v158, 0
    %v271 = vmul.f32 %v268, %v270
    %v272 = vmul.f32 %v269, %v270
    %v273 = vadd.f32 %v261, %v271
    %v274 = vadd.f32 %v262, %v272
    %v275 = vrot.slane %v250, 6
    %v276 = vrot.slane %v253, 6
    %vm277 = vcmp.lt.s32.totalorder %v145, 2
    %v278 = vsel %vm277, %v275, %v276
    %v279 = vsel %vm277, %v276, %v275
    %v280 = vmul.f32 %v279, %v151
    %v281 = vmul.f32 %v278, %v151
    %v282 = vperm.slane %v158, 1
    %v283 = vmul.f32 %v280, %v282
    %v284 = vmul.f32 %v281, %v282
    %v285 = vadd.f32 %v273, %v283
    %v286 = vadd.f32 %v274, %v284
    %v287 = vrot.slane %v250, 7
    %v288 = vrot.slane %v253, 7
    %vm289 = vcmp.lt.s32.totalorder %v145, 1
    %v290 = vsel %vm289, %v287, %v288
    %v291 = vsel %vm289, %v288, %v287
    %v292 = vmul.f32 %v291, %v148
    %v293 = vmul.f32 %v290, %v148
    %v294 = vperm.slane %v158, 2
    %v295 = vmul.f32 %v292, %v294
    %v296 = vmul.f32 %v293, %v294
    %v297 = vadd.f32 %v285, %v295
    %v298 = vadd.f32 %v286, %v296
    %v299 = vsub.f32 0.0, %v297
    %v300 = vsub.f32 0.0, %v298
    %v301 = vmul.f32 %v299, 1.442695
    %v302 = vpow.pop %v301
    %v303 = vmul.f32 %v300, 1.442695
    %v304 = vpow.pop %v303
    %v305 = vadd.f32 %v302, 1.0
    %v306 = vadd.f32 %v304, 1.0
    %v307 = vrcp.pop %v305
    %v308 = vrcp.pop %v306
    %v309 = vmul.f32 %v297, %v307
    %v310 = vmul.f32 %v298, %v308
    %v311 = vld [vmem:[%s3] sm:$0xff]
    %v312 = vld [vmem:[%s3 + $0x8] sm:$0xff]
    %v313 = vld [vmem:[%s3 + $0x10] sm:$0xff]
    %v314 = vld [vmem:[%s3 + $0x18] sm:$0xff]
    %v315 = vld [vmem:[%s3 + $0x20] sm:$0xff]
    %v316 = vld [vmem:[%s3 + $0x28] sm:$0xff]
    %v317 = vld [vmem:[%s3 + $0x30] sm:$0xff]
    %v318 = vld [vmem:[%s3 + $0x38] sm:$0xff]
    %vm319 = vcmask 523264
    %v321 = vsel %vm319, %v309, 0
    %v324 = vsel %vm319, %v310, 0
    %326 = vmatpush.msra.mxu0 0.0
    %327 = vmatpush.msra.mxu0 0.0
    %328 = vmatpush.msra.mxu0 0.0
    %329 = vmatpush.msra.mxu0 0.0
    %330 = vmatpush.msra.mxu0 0.0
    %331 = vmatpush.msra.mxu0 0.0
    %332 = vmatpush.msra.mxu0 0.0
    %333 = vmatpush.msra.mxu0 0.0
    %334 = vmatpush.msra.mxu0 %v318
    %335 = vmatpush.msra.mxu0 %v317
    %336 = vmatpush.msra.mxu0 %v316
    %337 = vmatpush.msra.mxu0 %v315
    %338 = vmatpush.msra.mxu0 %v314
    %339 = vmatpush.msra.mxu0 %v313
    %340 = vmatpush.msra.mxu0 %v312
    %341 = vmatpush.msra.mxu0 %v311
    %342 = vmatmul.f32.gmra.mxu0 %v321
    %v343 = vpop.f32.mrf.mxu0
    %v344 = vadd.f32 0.0, %v343
    %345 = vmatmul.f32.gmra.mxu0 %v324
    %v346 = vpop.f32.mrf.mxu0
    %v347 = vadd.f32 0.0, %v346
    %348 = vdwg.mxu0
    %v349 = vperm.slane %v155, 1
    %351 = vrot.lane.b32.xlu0 %v349, 32
    %v352 = vpop.permute.xlu0 %351
    %v354 = vadd.f32 %v344, %v352
    %v355 = vadd.f32 %v347, %v352
    %v356 = vmax.f32 %v354, 0.0
    %v357 = vmax.f32 %v355, 0.0
    %v358 = vand.u32 2147483647, %v354
    %v359 = vand.u32 2147483647, %v355
    %v360 = vsub.f32 0.0, %v358
    %v361 = vsub.f32 0.0, %v359
    %v362 = vmul.f32 %v360, 1.442695
    %v363 = vpow.pop %v362
    %v364 = vmul.f32 %v361, 1.442695
    %v365 = vpow.pop %v364
    %v366 = vadd.f32 %v363, 1.0
    %v367 = vadd.f32 %v365, 1.0
    %v368 = vlog2.pop %v366
    %v369 = vmul.f32 %v368, 0.6931472
    %v370 = vlog2.pop %v367
    %v371 = vmul.f32 %v370, 0.6931472
    %v372 = vadd.f32 %v356, %v369
    %v373 = vadd.f32 %v357, %v371
    %v374 = vmul.f32 %v156, 1.442695
    %v375 = vpow.pop %v374
    %v376 = vmul.f32 %v157, 1.442695
    %v377 = vpow.pop %v376
    %v378 = vsub.f32 0.0, %v375
    %v379 = vsub.f32 0.0, %v377
    %380 = vrot.lane.b32.xlu0 %v309, 32
    %v381 = vpop.permute.xlu0 %380
    %382 = vrot.lane.b32.xlu0 %v310, 32
    %v383 = vpop.permute.xlu0 %382
    %v386 = vmul.f32 %v372, %v381
    %v387 = vmul.f32 %v373, %v383
    %388 = vxpose.xlu0.b32.start [1/16] %v344, 128
    %389 = vxpose.xlu0.b32.cont [2/16] %v347, 128
    %390 = vxpose.xlu0.b32.cont [3/16] 0.0, 128
    %391 = vxpose.xlu0.b32.cont [4/16] 0.0, 128
    %392 = vxpose.xlu0.b32.cont [5/16] 0.0, 128
    %393 = vxpose.xlu0.b32.cont [6/16] 0.0, 128
    %394 = vxpose.xlu0.b32.cont [7/16] 0.0, 128
    %395 = vxpose.xlu0.b32.cont [8/16] 0.0, 128
    %396 = vxpose.xlu0.b32.cont [9/16] 0.0, 128
    %397 = vxpose.xlu0.b32.cont [10/16] 0.0, 128
    %398 = vxpose.xlu0.b32.cont [11/16] 0.0, 128
    %399 = vxpose.xlu0.b32.cont [12/16] 0.0, 128
    %400 = vxpose.xlu0.b32.cont [13/16] 0.0, 128
    %401 = vxpose.xlu0.b32.cont [14/16] 0.0, 128
    %402 = vxpose.xlu0.b32.cont [15/16] 0.0, 128
    %403 = vxpose.xlu0.b32.end [16/16] 0.0, 128
    %v404 = vpop.trf.xlu0
    %v405 = vpop.trf.xlu0
    %v406 = vpop.trf.xlu0
    %v407 = vpop.trf.xlu0
    %v408 = vpop.trf.xlu0
    %v409 = vpop.trf.xlu0
    %v410 = vpop.trf.xlu0
    %v411 = vpop.trf.xlu0
    %v412 = vpop.trf.xlu0
    %v413 = vpop.trf.xlu0
    %v414 = vpop.trf.xlu0
    %v415 = vpop.trf.xlu0
    %v416 = vpop.trf.xlu0
    %v417 = vpop.trf.xlu0
    %v418 = vpop.trf.xlu0
    %v419 = vpop.trf.xlu0
    %422 = vrot.lane.b32.xlu0 %v344, 112
    %v423 = vpop.permute.xlu0 %422
    %424 = vrot.lane.b32.xlu0 %v347, 112
    %v425 = vpop.permute.xlu0 %424
    %428 = vxpose.xlu0.b32.start [1/16] %v423, 128
    %429 = vxpose.xlu0.b32.cont [2/16] %v425, 128
    %430 = vxpose.xlu0.b32.cont [3/16] 0.0, 128
    %431 = vxpose.xlu0.b32.cont [4/16] 0.0, 128
    %432 = vxpose.xlu0.b32.cont [5/16] 0.0, 128
    %433 = vxpose.xlu0.b32.cont [6/16] 0.0, 128
    %434 = vxpose.xlu0.b32.cont [7/16] 0.0, 128
    %435 = vxpose.xlu0.b32.cont [8/16] 0.0, 128
    %436 = vxpose.xlu0.b32.cont [9/16] 0.0, 128
    %437 = vxpose.xlu0.b32.cont [10/16] 0.0, 128
    %438 = vxpose.xlu0.b32.cont [11/16] 0.0, 128
    %439 = vxpose.xlu0.b32.cont [12/16] 0.0, 128
    %440 = vxpose.xlu0.b32.cont [13/16] 0.0, 128
    %441 = vxpose.xlu0.b32.cont [14/16] 0.0, 128
    %442 = vxpose.xlu0.b32.cont [15/16] 0.0, 128
    %443 = vxpose.xlu0.b32.end [16/16] 0.0, 128
    %v444 = vpop.trf.xlu0
    %v445 = vpop.trf.xlu0
    %v446 = vpop.trf.xlu0
    %v447 = vpop.trf.xlu0
    %v448 = vpop.trf.xlu0
    %v449 = vpop.trf.xlu0
    %v450 = vpop.trf.xlu0
    %v451 = vpop.trf.xlu0
    %v452 = vpop.trf.xlu0
    %v453 = vpop.trf.xlu0
    %v454 = vpop.trf.xlu0
    %v455 = vpop.trf.xlu0
    %v456 = vpop.trf.xlu0
    %v457 = vpop.trf.xlu0
    %v458 = vpop.trf.xlu0
    %v459 = vpop.trf.xlu0
    %v460 = vperm.slane %v372, 0
    %462 = vrot.lane.b32.xlu0 %v460, 96
    %v463 = vpop.permute.xlu0 %462
    %v465 = vmul.f32 %v378, %v463
    %v466 = vmul.f32 %v379, %v463
    %v467 = vmul.f32 %v465, 1.442695
    %v468 = vpow.pop %v467
    %v469 = vmul.f32 %v466, 1.442695
    %v470 = vpow.pop %v469
    %v471 = vperm.slane %v372, 1
    %473 = vrot.lane.b32.xlu0 %v471, 96
    %v474 = vpop.permute.xlu0 %473
    %v476 = vmul.f32 %v378, %v474
    %v477 = vmul.f32 %v379, %v474
    %v478 = vmul.f32 %v476, 1.442695
    %v479 = vpow.pop %v478
    %v480 = vmul.f32 %v477, 1.442695
    %v481 = vpow.pop %v480
    %v482 = vperm.slane %v372, 2
    %484 = vrot.lane.b32.xlu0 %v482, 96
    %v485 = vpop.permute.xlu0 %484
    %v487 = vmul.f32 %v378, %v485
    %v488 = vmul.f32 %v379, %v485
    %v489 = vmul.f32 %v487, 1.442695
    %v490 = vpow.pop %v489
    %v491 = vmul.f32 %v488, 1.442695
    %v492 = vpow.pop %v491
    %v493 = vperm.slane %v372, 3
    %495 = vrot.lane.b32.xlu0 %v493, 96
    %v496 = vpop.permute.xlu0 %495
    %v498 = vmul.f32 %v378, %v496
    %v499 = vmul.f32 %v379, %v496
    %v500 = vmul.f32 %v498, 1.442695
    %v501 = vpow.pop %v500
    %v502 = vmul.f32 %v499, 1.442695
    %v503 = vpow.pop %v502
    %v504 = vperm.slane %v372, 4
    %506 = vrot.lane.b32.xlu0 %v504, 96
    %v507 = vpop.permute.xlu0 %506
    %v509 = vmul.f32 %v378, %v507
    %v510 = vmul.f32 %v379, %v507
    %v511 = vmul.f32 %v509, 1.442695
    %v512 = vpow.pop %v511
    %v513 = vmul.f32 %v510, 1.442695
    %v514 = vpow.pop %v513
    %v515 = vperm.slane %v372, 5
    %517 = vrot.lane.b32.xlu0 %v515, 96
    %v518 = vpop.permute.xlu0 %517
    %v520 = vmul.f32 %v378, %v518
    %v521 = vmul.f32 %v379, %v518
    %v522 = vmul.f32 %v520, 1.442695
    %v523 = vpow.pop %v522
    %v524 = vmul.f32 %v521, 1.442695
    %v525 = vpow.pop %v524
    %v526 = vperm.slane %v372, 6
    %528 = vrot.lane.b32.xlu0 %v526, 96
    %v529 = vpop.permute.xlu0 %528
    %v531 = vmul.f32 %v378, %v529
    %v532 = vmul.f32 %v379, %v529
    %v533 = vmul.f32 %v531, 1.442695
    %v534 = vpow.pop %v533
    %v535 = vmul.f32 %v532, 1.442695
    %v536 = vpow.pop %v535
    %v537 = vperm.slane %v372, 7
    %539 = vrot.lane.b32.xlu0 %v537, 96
    %v540 = vpop.permute.xlu0 %539
    %v542 = vmul.f32 %v378, %v540
    %v543 = vmul.f32 %v379, %v540
    %v544 = vmul.f32 %v542, 1.442695
    %v545 = vpow.pop %v544
    %v546 = vmul.f32 %v543, 1.442695
    %v547 = vpow.pop %v546
    %v548 = vperm.slane %v373, 0
    %550 = vrot.lane.b32.xlu0 %v548, 96
    %v551 = vpop.permute.xlu0 %550
    %v553 = vmul.f32 %v378, %v551
    %v554 = vmul.f32 %v379, %v551
    %v555 = vmul.f32 %v553, 1.442695
    %v556 = vpow.pop %v555
    %v557 = vmul.f32 %v554, 1.442695
    %v558 = vpow.pop %v557
    %v559 = vperm.slane %v373, 1
    %561 = vrot.lane.b32.xlu0 %v559, 96
    %v562 = vpop.permute.xlu0 %561
    %v564 = vmul.f32 %v378, %v562
    %v565 = vmul.f32 %v379, %v562
    %v566 = vmul.f32 %v564, 1.442695
    %v567 = vpow.pop %v566
    %v568 = vmul.f32 %v565, 1.442695
    %v569 = vpow.pop %v568
    %v570 = vperm.slane %v373, 2
    %572 = vrot.lane.b32.xlu0 %v570, 96
    %v573 = vpop.permute.xlu0 %572
    %v575 = vmul.f32 %v378, %v573
    %v576 = vmul.f32 %v379, %v573
    %v577 = vmul.f32 %v575, 1.442695
    %v578 = vpow.pop %v577
    %v579 = vmul.f32 %v576, 1.442695
    %v580 = vpow.pop %v579
    %v581 = vperm.slane %v373, 3
    %583 = vrot.lane.b32.xlu0 %v581, 96
    %v584 = vpop.permute.xlu0 %583
    %v586 = vmul.f32 %v378, %v584
    %v587 = vmul.f32 %v379, %v584
    %v588 = vmul.f32 %v586, 1.442695
    %v589 = vpow.pop %v588
    %v590 = vmul.f32 %v587, 1.442695
    %v591 = vpow.pop %v590
    %v592 = vperm.slane %v373, 4
    %594 = vrot.lane.b32.xlu0 %v592, 96
    %v595 = vpop.permute.xlu0 %594
    %v597 = vmul.f32 %v378, %v595
    %v598 = vmul.f32 %v379, %v595
    %v599 = vmul.f32 %v597, 1.442695
    %v600 = vpow.pop %v599
    %v601 = vmul.f32 %v598, 1.442695
    %v602 = vpow.pop %v601
    %v603 = vperm.slane %v373, 5
    %605 = vrot.lane.b32.xlu0 %v603, 96
    %v606 = vpop.permute.xlu0 %605
    %v608 = vmul.f32 %v378, %v606
    %v609 = vmul.f32 %v379, %v606
    %v610 = vmul.f32 %v608, 1.442695
    %v611 = vpow.pop %v610
    %v612 = vmul.f32 %v609, 1.442695
    %v613 = vpow.pop %v612
    %v614 = vperm.slane %v373, 6
    %616 = vrot.lane.b32.xlu0 %v614, 96
    %v617 = vpop.permute.xlu0 %616
    %v619 = vmul.f32 %v378, %v617
    %v620 = vmul.f32 %v379, %v617
    %v621 = vmul.f32 %v619, 1.442695
    %v622 = vpow.pop %v621
    %v623 = vmul.f32 %v620, 1.442695
    %v624 = vpow.pop %v623
    %v625 = vperm.slane %v373, 7
    %627 = vrot.lane.b32.xlu0 %v625, 96
    %v628 = vpop.permute.xlu0 %627
    %v630 = vmul.f32 %v378, %v628
    %v631 = vmul.f32 %v379, %v628
    %v632 = vmul.f32 %v630, 1.442695
    %v633 = vpow.pop %v632
    %v634 = vmul.f32 %v631, 1.442695
    %v635 = vpow.pop %v634
    %637 = vset.pattern.permute.xlu0 0
    %638 = vperm.xlu0 %637, %v404
    %v639 = vpop.permute.xlu0 %638
    %642 = vset.pattern.permute.xlu0 0
    %643 = vperm.xlu0 %642, %v405
    %v644 = vpop.permute.xlu0 %643
    %v646 = vperm.slane %v386, 0
    %v647 = vmul.f32 %v639, %v646
    %v648 = vmul.f32 %v644, %v646
    %649 = vset.pattern.permute.xlu0 1
    %650 = vperm.xlu0 %649, %v404
    %v651 = vpop.permute.xlu0 %650
    %653 = vset.pattern.permute.xlu0 1
    %654 = vperm.xlu0 %653, %v405
    %v655 = vpop.permute.xlu0 %654
    %v657 = vperm.slane %v386, 1
    %v658 = vmul.f32 %v651, %v657
    %v659 = vmul.f32 %v655, %v657
    %660 = vset.pattern.permute.xlu0 2
    %661 = vperm.xlu0 %660, %v404
    %v662 = vpop.permute.xlu0 %661
    %664 = vset.pattern.permute.xlu0 2
    %665 = vperm.xlu0 %664, %v405
    %v666 = vpop.permute.xlu0 %665
    %v668 = vperm.slane %v386, 2
    %v669 = vmul.f32 %v662, %v668
    %v670 = vmul.f32 %v666, %v668
    %671 = vset.pattern.permute.xlu0 3
    %672 = vperm.xlu0 %671, %v404
    %v673 = vpop.permute.xlu0 %672
    %675 = vset.pattern.permute.xlu0 3
    %676 = vperm.xlu0 %675, %v405
    %v677 = vpop.permute.xlu0 %676
    %v679 = vperm.slane %v386, 3
    %v680 = vmul.f32 %v673, %v679
    %v681 = vmul.f32 %v677, %v679
    %682 = vset.pattern.permute.xlu0 4
    %683 = vperm.xlu0 %682, %v404
    %v684 = vpop.permute.xlu0 %683
    %686 = vset.pattern.permute.xlu0 4
    %687 = vperm.xlu0 %686, %v405
    %v688 = vpop.permute.xlu0 %687
    %v690 = vperm.slane %v386, 4
    %v691 = vmul.f32 %v684, %v690
    %v692 = vmul.f32 %v688, %v690
    %693 = vset.pattern.permute.xlu0 5
    %694 = vperm.xlu0 %693, %v404
    %v695 = vpop.permute.xlu0 %694
    %697 = vset.pattern.permute.xlu0 5
    %698 = vperm.xlu0 %697, %v405
    %v699 = vpop.permute.xlu0 %698
    %v701 = vperm.slane %v386, 5
    %v702 = vmul.f32 %v695, %v701
    %v703 = vmul.f32 %v699, %v701
    %704 = vset.pattern.permute.xlu0 6
    %705 = vperm.xlu0 %704, %v404
    %v706 = vpop.permute.xlu0 %705
    %708 = vset.pattern.permute.xlu0 6
    %709 = vperm.xlu0 %708, %v405
    %v710 = vpop.permute.xlu0 %709
    %v712 = vperm.slane %v386, 6
    %v713 = vmul.f32 %v706, %v712
    %v714 = vmul.f32 %v710, %v712
    %715 = vset.pattern.permute.xlu0 7
    %716 = vperm.xlu0 %715, %v404
    %v717 = vpop.permute.xlu0 %716
    %719 = vset.pattern.permute.xlu0 7
    %720 = vperm.xlu0 %719, %v405
    %v721 = vpop.permute.xlu0 %720
    %v723 = vperm.slane %v386, 7
    %v724 = vmul.f32 %v717, %v723
    %v725 = vmul.f32 %v721, %v723
    %726 = vset.pattern.permute.xlu0 8
    %727 = vperm.xlu0 %726, %v404
    %v728 = vpop.permute.xlu0 %727
    %730 = vset.pattern.permute.xlu0 8
    %731 = vperm.xlu0 %730, %v405
    %v732 = vpop.permute.xlu0 %731
    %v734 = vperm.slane %v387, 0
    %v735 = vmul.f32 %v728, %v734
    %v736 = vmul.f32 %v732, %v734
    %737 = vset.pattern.permute.xlu0 9
    %738 = vperm.xlu0 %737, %v404
    %v739 = vpop.permute.xlu0 %738
    %741 = vset.pattern.permute.xlu0 9
    %742 = vperm.xlu0 %741, %v405
    %v743 = vpop.permute.xlu0 %742
    %v745 = vperm.slane %v387, 1
    %v746 = vmul.f32 %v739, %v745
    %v747 = vmul.f32 %v743, %v745
    %748 = vset.pattern.permute.xlu0 10
    %749 = vperm.xlu0 %748, %v404
    %v750 = vpop.permute.xlu0 %749
    %752 = vset.pattern.permute.xlu0 10
    %753 = vperm.xlu0 %752, %v405
    %v754 = vpop.permute.xlu0 %753
    %v756 = vperm.slane %v387, 2
    %v757 = vmul.f32 %v750, %v756
    %v758 = vmul.f32 %v754, %v756
    %759 = vset.pattern.permute.xlu0 11
    %760 = vperm.xlu0 %759, %v404
    %v761 = vpop.permute.xlu0 %760
    %763 = vset.pattern.permute.xlu0 11
    %764 = vperm.xlu0 %763, %v405
    %v765 = vpop.permute.xlu0 %764
    %v767 = vperm.slane %v387, 3
    %v768 = vmul.f32 %v761, %v767
    %v769 = vmul.f32 %v765, %v767
    %770 = vset.pattern.permute.xlu0 12
    %771 = vperm.xlu0 %770, %v404
    %v772 = vpop.permute.xlu0 %771
    %774 = vset.pattern.permute.xlu0 12
    %775 = vperm.xlu0 %774, %v405
    %v776 = vpop.permute.xlu0 %775
    %v778 = vperm.slane %v387, 4
    %v779 = vmul.f32 %v772, %v778
    %v780 = vmul.f32 %v776, %v778
    %781 = vset.pattern.permute.xlu0 13
    %782 = vperm.xlu0 %781, %v404
    %v783 = vpop.permute.xlu0 %782
    %785 = vset.pattern.permute.xlu0 13
    %786 = vperm.xlu0 %785, %v405
    %v787 = vpop.permute.xlu0 %786
    %v789 = vperm.slane %v387, 5
    %v790 = vmul.f32 %v783, %v789
    %v791 = vmul.f32 %v787, %v789
    %792 = vset.pattern.permute.xlu0 14
    %793 = vperm.xlu0 %792, %v404
    %v794 = vpop.permute.xlu0 %793
    %796 = vset.pattern.permute.xlu0 14
    %797 = vperm.xlu0 %796, %v405
    %v798 = vpop.permute.xlu0 %797
    %v800 = vperm.slane %v387, 6
    %v801 = vmul.f32 %v794, %v800
    %v802 = vmul.f32 %v798, %v800
    %803 = vset.pattern.permute.xlu0 15
    %804 = vperm.xlu0 %803, %v404
    %v805 = vpop.permute.xlu0 %804
    %807 = vset.pattern.permute.xlu0 15
    %808 = vperm.xlu0 %807, %v405
    %v809 = vpop.permute.xlu0 %808
    %v811 = vperm.slane %v387, 7
    %v812 = vmul.f32 %v805, %v811
    %v813 = vmul.f32 %v809, %v811
    %v814 = vmul.f32 %v468, 0.0
    %v815 = vmul.f32 %v470, 0.0
    %818 = vrot.lane.b32.xlu0 %v647, 96
    %v819 = vpop.permute.xlu0 %818
    %820 = vrot.lane.b32.xlu0 %v648, 96
    %v821 = vpop.permute.xlu0 %820
    %v824 = vadd.f32 %v814, %v819
    %v825 = vadd.f32 %v815, %v821
    %827 = vset.pattern.permute.xlu0 0
    %828 = vperm.xlu0 %827, %v444
    %v829 = vpop.permute.xlu0 %828
    %832 = vset.pattern.permute.xlu0 0
    %833 = vperm.xlu0 %832, %v445
    %v834 = vpop.permute.xlu0 %833
    %v836 = vmul.f32 %v829, %v824
    %v837 = vmul.f32 %v834, %v825
    %v838 = vsel %vm319, %v836, 0.0
    %v839 = vsel %vm319, %v837, 0.0
    %v840 = vadd.f32 %v838, %v839
    %v841 = vrot.slane %v840, 4
    %v842 = vadd.f32 %v840, %v841
    %v843 = vrot.slane %v842, 2
    %v844 = vadd.f32 %v842, %v843
    %v845 = vrot.slane %v844, 1
    %v846 = vadd.f32 %v844, %v845
    %v847 = vmul.f32 %v479, %v824
    %v848 = vmul.f32 %v481, %v825
    %851 = vrot.lane.b32.xlu0 %v658, 96
    %v852 = vpop.permute.xlu0 %851
    %853 = vrot.lane.b32.xlu0 %v659, 96
    %v854 = vpop.permute.xlu0 %853
    %v857 = vadd.f32 %v847, %v852
    %v858 = vadd.f32 %v848, %v854
    %859 = vset.pattern.permute.xlu0 1
    %860 = vperm.xlu0 %859, %v444
    %v861 = vpop.permute.xlu0 %860
    %863 = vset.pattern.permute.xlu0 1
    %864 = vperm.xlu0 %863, %v445
    %v865 = vpop.permute.xlu0 %864
    %v867 = vmul.f32 %v861, %v857
    %v868 = vmul.f32 %v865, %v858
    %v869 = vsel %vm319, %v867, 0.0
    %v870 = vsel %vm319, %v868, 0.0
    %v871 = vadd.f32 %v869, %v870
    %v872 = vrot.slane %v871, 4
    %v873 = vadd.f32 %v871, %v872
    %v874 = vrot.slane %v873, 2
    %v875 = vadd.f32 %v873, %v874
    %v876 = vrot.slane %v875, 1
    %v877 = vadd.f32 %v875, %v876
    %v878 = vmul.f32 %v490, %v857
    %v879 = vmul.f32 %v492, %v858
    %882 = vrot.lane.b32.xlu0 %v669, 96
    %v883 = vpop.permute.xlu0 %882
    %884 = vrot.lane.b32.xlu0 %v670, 96
    %v885 = vpop.permute.xlu0 %884
    %v888 = vadd.f32 %v878, %v883
    %v889 = vadd.f32 %v879, %v885
    %890 = vset.pattern.permute.xlu0 2
    %891 = vperm.xlu0 %890, %v444
    %v892 = vpop.permute.xlu0 %891
    %894 = vset.pattern.permute.xlu0 2
    %895 = vperm.xlu0 %894, %v445
    %v896 = vpop.permute.xlu0 %895
    %v898 = vmul.f32 %v892, %v888
    %v899 = vmul.f32 %v896, %v889
    %v900 = vsel %vm319, %v898, 0.0
    %v901 = vsel %vm319, %v899, 0.0
    %v902 = vadd.f32 %v900, %v901
    %v903 = vrot.slane %v902, 4
    %v904 = vadd.f32 %v902, %v903
    %v905 = vrot.slane %v904, 2
    %v906 = vadd.f32 %v904, %v905
    %v907 = vrot.slane %v906, 1
    %v908 = vadd.f32 %v906, %v907
    %v909 = vmul.f32 %v501, %v888
    %v910 = vmul.f32 %v503, %v889
    %913 = vrot.lane.b32.xlu0 %v680, 96
    %v914 = vpop.permute.xlu0 %913
    %915 = vrot.lane.b32.xlu0 %v681, 96
    %v916 = vpop.permute.xlu0 %915
    %v919 = vadd.f32 %v909, %v914
    %v920 = vadd.f32 %v910, %v916
    %921 = vset.pattern.permute.xlu0 3
    %922 = vperm.xlu0 %921, %v444
    %v923 = vpop.permute.xlu0 %922
    %925 = vset.pattern.permute.xlu0 3
    %926 = vperm.xlu0 %925, %v445
    %v927 = vpop.permute.xlu0 %926
    %v929 = vmul.f32 %v923, %v919
    %v930 = vmul.f32 %v927, %v920
    %v931 = vsel %vm319, %v929, 0.0
    %v932 = vsel %vm319, %v930, 0.0
    %v933 = vadd.f32 %v931, %v932
    %v934 = vrot.slane %v933, 4
    %v935 = vadd.f32 %v933, %v934
    %v936 = vrot.slane %v935, 2
    %v937 = vadd.f32 %v935, %v936
    %v938 = vrot.slane %v937, 1
    %v939 = vadd.f32 %v937, %v938
    %v940 = vmul.f32 %v512, %v919
    %v941 = vmul.f32 %v514, %v920
    %944 = vrot.lane.b32.xlu0 %v691, 96
    %v945 = vpop.permute.xlu0 %944
    %946 = vrot.lane.b32.xlu0 %v692, 96
    %v947 = vpop.permute.xlu0 %946
    %v950 = vadd.f32 %v940, %v945
    %v951 = vadd.f32 %v941, %v947
    %952 = vset.pattern.permute.xlu0 4
    %953 = vperm.xlu0 %952, %v444
    %v954 = vpop.permute.xlu0 %953
    %956 = vset.pattern.permute.xlu0 4
    %957 = vperm.xlu0 %956, %v445
    %v958 = vpop.permute.xlu0 %957
    %v960 = vmul.f32 %v954, %v950
    %v961 = vmul.f32 %v958, %v951
    %v962 = vsel %vm319, %v960, 0.0
    %v963 = vsel %vm319, %v961, 0.0
    %v964 = vadd.f32 %v962, %v963
    %v965 = vrot.slane %v964, 4
    %v966 = vadd.f32 %v964, %v965
    %v967 = vrot.slane %v966, 2
    %v968 = vadd.f32 %v966, %v967
    %v969 = vrot.slane %v968, 1
    %v970 = vadd.f32 %v968, %v969
    %v971 = vmul.f32 %v523, %v950
    %v972 = vmul.f32 %v525, %v951
    %975 = vrot.lane.b32.xlu0 %v702, 96
    %v976 = vpop.permute.xlu0 %975
    %977 = vrot.lane.b32.xlu0 %v703, 96
    %v978 = vpop.permute.xlu0 %977
    %v981 = vadd.f32 %v971, %v976
    %v982 = vadd.f32 %v972, %v978
    %983 = vset.pattern.permute.xlu0 5
    %984 = vperm.xlu0 %983, %v444
    %v985 = vpop.permute.xlu0 %984
    %987 = vset.pattern.permute.xlu0 5
    %988 = vperm.xlu0 %987, %v445
    %v989 = vpop.permute.xlu0 %988
    %v991 = vmul.f32 %v985, %v981
    %v992 = vmul.f32 %v989, %v982
    %v993 = vsel %vm319, %v991, 0.0
    %v994 = vsel %vm319, %v992, 0.0
    %v995 = vadd.f32 %v993, %v994
    %v996 = vrot.slane %v995, 4
    %v997 = vadd.f32 %v995, %v996
    %v998 = vrot.slane %v997, 2
    %v999 = vadd.f32 %v997, %v998
    %v1000 = vrot.slane %v999, 1
    %v1001 = vadd.f32 %v999, %v1000
    %v1002 = vmul.f32 %v534, %v981
    %v1003 = vmul.f32 %v536, %v982
    %1006 = vrot.lane.b32.xlu0 %v713, 96
    %v1007 = vpop.permute.xlu0 %1006
    %1008 = vrot.lane.b32.xlu0 %v714, 96
    %v1009 = vpop.permute.xlu0 %1008
    %v1012 = vadd.f32 %v1002, %v1007
    %v1013 = vadd.f32 %v1003, %v1009
    %1014 = vset.pattern.permute.xlu0 6
    %1015 = vperm.xlu0 %1014, %v444
    %v1016 = vpop.permute.xlu0 %1015
    %1018 = vset.pattern.permute.xlu0 6
    %1019 = vperm.xlu0 %1018, %v445
    %v1020 = vpop.permute.xlu0 %1019
    %v1022 = vmul.f32 %v1016, %v1012
    %v1023 = vmul.f32 %v1020, %v1013
    %v1024 = vsel %vm319, %v1022, 0.0
    %v1025 = vsel %vm319, %v1023, 0.0
    %v1026 = vadd.f32 %v1024, %v1025
    %v1027 = vrot.slane %v1026, 4
    %v1028 = vadd.f32 %v1026, %v1027
    %v1029 = vrot.slane %v1028, 2
    %v1030 = vadd.f32 %v1028, %v1029
    %v1031 = vrot.slane %v1030, 1
    %v1032 = vadd.f32 %v1030, %v1031
    %v1033 = vmul.f32 %v545, %v1012
    %v1034 = vmul.f32 %v547, %v1013
    %1037 = vrot.lane.b32.xlu0 %v724, 96
    %v1038 = vpop.permute.xlu0 %1037
    %1039 = vrot.lane.b32.xlu0 %v725, 96
    %v1040 = vpop.permute.xlu0 %1039
    %v1043 = vadd.f32 %v1033, %v1038
    %v1044 = vadd.f32 %v1034, %v1040
    %1045 = vset.pattern.permute.xlu0 7
    %1046 = vperm.xlu0 %1045, %v444
    %v1047 = vpop.permute.xlu0 %1046
    %1049 = vset.pattern.permute.xlu0 7
    %1050 = vperm.xlu0 %1049, %v445
    %v1051 = vpop.permute.xlu0 %1050
    %v1053 = vmul.f32 %v1047, %v1043
    %v1054 = vmul.f32 %v1051, %v1044
    %v1055 = vsel %vm319, %v1053, 0.0
    %v1056 = vsel %vm319, %v1054, 0.0
    %v1057 = vadd.f32 %v1055, %v1056
    %v1058 = vrot.slane %v1057, 4
    %v1059 = vadd.f32 %v1057, %v1058
    %v1060 = vrot.slane %v1059, 2
    %v1061 = vadd.f32 %v1059, %v1060
    %v1062 = vrot.slane %v1061, 1
    %v1063 = vadd.f32 %v1061, %v1062
    %v1064 = vmul.f32 %v556, 0.0
    %v1065 = vmul.f32 %v558, 0.0
    %1068 = vrot.lane.b32.xlu0 %v735, 96
    %v1069 = vpop.permute.xlu0 %1068
    %1070 = vrot.lane.b32.xlu0 %v736, 96
    %v1071 = vpop.permute.xlu0 %1070
    %v1074 = vadd.f32 %v1064, %v1069
    %v1075 = vadd.f32 %v1065, %v1071
    %1076 = vset.pattern.permute.xlu0 8
    %1077 = vperm.xlu0 %1076, %v444
    %v1078 = vpop.permute.xlu0 %1077
    %1080 = vset.pattern.permute.xlu0 8
    %1081 = vperm.xlu0 %1080, %v445
    %v1082 = vpop.permute.xlu0 %1081
    %v1084 = vmul.f32 %v1078, %v1074
    %v1085 = vmul.f32 %v1082, %v1075
    %v1086 = vsel %vm319, %v1084, 0.0
    %v1087 = vsel %vm319, %v1085, 0.0
    %v1088 = vadd.f32 %v1086, %v1087
    %v1089 = vrot.slane %v1088, 4
    %v1090 = vadd.f32 %v1088, %v1089
    %v1091 = vrot.slane %v1090, 2
    %v1092 = vadd.f32 %v1090, %v1091
    %v1093 = vrot.slane %v1092, 1
    %v1094 = vadd.f32 %v1092, %v1093
    %v1095 = vmul.f32 %v567, %v1074
    %v1096 = vmul.f32 %v569, %v1075
    %1099 = vrot.lane.b32.xlu0 %v746, 96
    %v1100 = vpop.permute.xlu0 %1099
    %1101 = vrot.lane.b32.xlu0 %v747, 96
    %v1102 = vpop.permute.xlu0 %1101
    %v1105 = vadd.f32 %v1095, %v1100
    %v1106 = vadd.f32 %v1096, %v1102
    %1107 = vset.pattern.permute.xlu0 9
    %1108 = vperm.xlu0 %1107, %v444
    %v1109 = vpop.permute.xlu0 %1108
    %1111 = vset.pattern.permute.xlu0 9
    %1112 = vperm.xlu0 %1111, %v445
    %v1113 = vpop.permute.xlu0 %1112
    %v1115 = vmul.f32 %v1109, %v1105
    %v1116 = vmul.f32 %v1113, %v1106
    %v1117 = vsel %vm319, %v1115, 0.0
    %v1118 = vsel %vm319, %v1116, 0.0
    %v1119 = vadd.f32 %v1117, %v1118
    %v1120 = vrot.slane %v1119, 4
    %v1121 = vadd.f32 %v1119, %v1120
    %v1122 = vrot.slane %v1121, 2
    %v1123 = vadd.f32 %v1121, %v1122
    %v1124 = vrot.slane %v1123, 1
    %v1125 = vadd.f32 %v1123, %v1124
    %v1126 = vmul.f32 %v578, %v1105
    %v1127 = vmul.f32 %v580, %v1106
    %1130 = vrot.lane.b32.xlu0 %v757, 96
    %v1131 = vpop.permute.xlu0 %1130
    %1132 = vrot.lane.b32.xlu0 %v758, 96
    %v1133 = vpop.permute.xlu0 %1132
    %v1136 = vadd.f32 %v1126, %v1131
    %v1137 = vadd.f32 %v1127, %v1133
    %1138 = vset.pattern.permute.xlu0 10
    %1139 = vperm.xlu0 %1138, %v444
    %v1140 = vpop.permute.xlu0 %1139
    %1142 = vset.pattern.permute.xlu0 10
    %1143 = vperm.xlu0 %1142, %v445
    %v1144 = vpop.permute.xlu0 %1143
    %v1146 = vmul.f32 %v1140, %v1136
    %v1147 = vmul.f32 %v1144, %v1137
    %v1148 = vsel %vm319, %v1146, 0.0
    %v1149 = vsel %vm319, %v1147, 0.0
    %v1150 = vadd.f32 %v1148, %v1149
    %v1151 = vrot.slane %v1150, 4
    %v1152 = vadd.f32 %v1150, %v1151
    %v1153 = vrot.slane %v1152, 2
    %v1154 = vadd.f32 %v1152, %v1153
    %v1155 = vrot.slane %v1154, 1
    %v1156 = vadd.f32 %v1154, %v1155
    %v1157 = vmul.f32 %v589, %v1136
    %v1158 = vmul.f32 %v591, %v1137
    %1161 = vrot.lane.b32.xlu0 %v768, 96
    %v1162 = vpop.permute.xlu0 %1161
    %1163 = vrot.lane.b32.xlu0 %v769, 96
    %v1164 = vpop.permute.xlu0 %1163
    %v1167 = vadd.f32 %v1157, %v1162
    %v1168 = vadd.f32 %v1158, %v1164
    %1169 = vset.pattern.permute.xlu0 11
    %1170 = vperm.xlu0 %1169, %v444
    %v1171 = vpop.permute.xlu0 %1170
    %1173 = vset.pattern.permute.xlu0 11
    %1174 = vperm.xlu0 %1173, %v445
    %v1175 = vpop.permute.xlu0 %1174
    %v1177 = vmul.f32 %v1171, %v1167
    %v1178 = vmul.f32 %v1175, %v1168
    %v1179 = vsel %vm319, %v1177, 0.0
    %v1180 = vsel %vm319, %v1178, 0.0
    %v1181 = vadd.f32 %v1179, %v1180
    %v1182 = vrot.slane %v1181, 4
    %v1183 = vadd.f32 %v1181, %v1182
    %v1184 = vrot.slane %v1183, 2
    %v1185 = vadd.f32 %v1183, %v1184
    %v1186 = vrot.slane %v1185, 1
    %v1187 = vadd.f32 %v1185, %v1186
    %v1188 = vmul.f32 %v600, %v1167
    %v1189 = vmul.f32 %v602, %v1168
    %1192 = vrot.lane.b32.xlu0 %v779, 96
    %v1193 = vpop.permute.xlu0 %1192
    %1194 = vrot.lane.b32.xlu0 %v780, 96
    %v1195 = vpop.permute.xlu0 %1194
    %v1198 = vadd.f32 %v1188, %v1193
    %v1199 = vadd.f32 %v1189, %v1195
    %1200 = vset.pattern.permute.xlu0 12
    %1201 = vperm.xlu0 %1200, %v444
    %v1202 = vpop.permute.xlu0 %1201
    %1204 = vset.pattern.permute.xlu0 12
    %1205 = vperm.xlu0 %1204, %v445
    %v1206 = vpop.permute.xlu0 %1205
    %v1208 = vmul.f32 %v1202, %v1198
    %v1209 = vmul.f32 %v1206, %v1199
    %v1210 = vsel %vm319, %v1208, 0.0
    %v1211 = vsel %vm319, %v1209, 0.0
    %v1212 = vadd.f32 %v1210, %v1211
    %v1213 = vrot.slane %v1212, 4
    %v1214 = vadd.f32 %v1212, %v1213
    %v1215 = vrot.slane %v1214, 2
    %v1216 = vadd.f32 %v1214, %v1215
    %v1217 = vrot.slane %v1216, 1
    %v1218 = vadd.f32 %v1216, %v1217
    %v1219 = vmul.f32 %v611, %v1198
    %v1220 = vmul.f32 %v613, %v1199
    %1223 = vrot.lane.b32.xlu0 %v790, 96
    %v1224 = vpop.permute.xlu0 %1223
    %1225 = vrot.lane.b32.xlu0 %v791, 96
    %v1226 = vpop.permute.xlu0 %1225
    %v1229 = vadd.f32 %v1219, %v1224
    %v1230 = vadd.f32 %v1220, %v1226
    %1231 = vset.pattern.permute.xlu0 13
    %1232 = vperm.xlu0 %1231, %v444
    %v1233 = vpop.permute.xlu0 %1232
    %1235 = vset.pattern.permute.xlu0 13
    %1236 = vperm.xlu0 %1235, %v445
    %v1237 = vpop.permute.xlu0 %1236
    %v1239 = vmul.f32 %v1233, %v1229
    %v1240 = vmul.f32 %v1237, %v1230
    %v1241 = vsel %vm319, %v1239, 0.0
    %v1242 = vsel %vm319, %v1240, 0.0
    %v1243 = vadd.f32 %v1241, %v1242
    %v1244 = vrot.slane %v1243, 4
    %v1245 = vadd.f32 %v1243, %v1244
    %v1246 = vrot.slane %v1245, 2
    %v1247 = vadd.f32 %v1245, %v1246
    %v1248 = vrot.slane %v1247, 1
    %v1249 = vadd.f32 %v1247, %v1248
    %v1250 = vmul.f32 %v622, %v1229
    %v1251 = vmul.f32 %v624, %v1230
    %1254 = vrot.lane.b32.xlu0 %v801, 96
    %v1255 = vpop.permute.xlu0 %1254
    %1256 = vrot.lane.b32.xlu0 %v802, 96
    %v1257 = vpop.permute.xlu0 %1256
    %v1260 = vadd.f32 %v1250, %v1255
    %v1261 = vadd.f32 %v1251, %v1257
    %1262 = vset.pattern.permute.xlu0 14
    %1263 = vperm.xlu0 %1262, %v444
    %v1264 = vpop.permute.xlu0 %1263
    %1266 = vset.pattern.permute.xlu0 14
    %1267 = vperm.xlu0 %1266, %v445
    %v1268 = vpop.permute.xlu0 %1267
    %v1270 = vmul.f32 %v1264, %v1260
    %v1271 = vmul.f32 %v1268, %v1261
    %v1272 = vsel %vm319, %v1270, 0.0
    %v1273 = vsel %vm319, %v1271, 0.0
    %v1274 = vadd.f32 %v1272, %v1273
    %v1275 = vrot.slane %v1274, 4
    %v1276 = vadd.f32 %v1274, %v1275
    %v1277 = vrot.slane %v1276, 2
    %v1278 = vadd.f32 %v1276, %v1277
    %v1279 = vrot.slane %v1278, 1
    %v1280 = vadd.f32 %v1278, %v1279
    %v1281 = vmul.f32 %v633, %v1260
    %v1282 = vmul.f32 %v635, %v1261
    %1285 = vrot.lane.b32.xlu0 %v812, 96
    %v1286 = vpop.permute.xlu0 %1285
    %1287 = vrot.lane.b32.xlu0 %v813, 96
    %v1288 = vpop.permute.xlu0 %1287
    %v1291 = vadd.f32 %v1281, %v1286
    %v1292 = vadd.f32 %v1282, %v1288
    %1293 = vset.pattern.permute.xlu0 15
    %1294 = vperm.xlu0 %1293, %v444
    %v1295 = vpop.permute.xlu0 %1294
    %1297 = vset.pattern.permute.xlu0 15
    %1298 = vperm.xlu0 %1297, %v445
    %v1299 = vpop.permute.xlu0 %1298
    %v1301 = vmul.f32 %v1295, %v1291
    %v1302 = vmul.f32 %v1299, %v1292
    %v1303 = vsel %vm319, %v1301, 0.0
    %v1304 = vsel %vm319, %v1302, 0.0
    %v1305 = vadd.f32 %v1303, %v1304
    %v1306 = vrot.slane %v1305, 4
    %v1307 = vadd.f32 %v1305, %v1306
    %v1308 = vrot.slane %v1307, 2
    %v1309 = vadd.f32 %v1307, %v1308
    %v1310 = vrot.slane %v1309, 1
    %v1311 = vadd.f32 %v1309, %v1310
    %v1312 = vsel %vm123, %v846, %v877
    %v1313 = vsel %vm125, %v1312, %v908
    %v1314 = vsel %vm127, %v1313, %v939
    %v1315 = vsel %vm129, %v1314, %v970
    %v1316 = vsel %vm131, %v1315, %v1001
    %v1317 = vsel %vm133, %v1316, %v1032
    %v1318 = vsel %vm135, %v1317, %v1063
    %v1319 = vsel %vm123, %v1094, %v1125
    %v1320 = vsel %vm125, %v1319, %v1156
    %v1321 = vsel %vm127, %v1320, %v1187
    %v1322 = vsel %vm129, %v1321, %v1218
    %v1323 = vsel %vm131, %v1322, %v1249
    %v1324 = vsel %vm133, %v1323, %v1280
    %v1325 = vsel %vm135, %v1324, %v1311
    %1326 = vrot.lane.b32.xlu0 %v309, 64
    %v1327 = vpop.permute.xlu0 %1326
    %1328 = vrot.lane.b32.xlu0 %v310, 64
    %v1329 = vpop.permute.xlu0 %1328
    %v1332 = vmul.f32 %v349, %v1327
    %v1333 = vmul.f32 %v349, %v1329
    %1336 = vrot.lane.b32.xlu0 %v1332, 64
    %v1337 = vpop.permute.xlu0 %1336
    %1338 = vrot.lane.b32.xlu0 %v1333, 64
    %v1339 = vpop.permute.xlu0 %1338
    %v1342 = vadd.f32 %v1318, %v1337
    %v1343 = vadd.f32 %v1325, %v1339
    %v1344 = vsub.f32 0.0, %v250
    %v1345 = vsub.f32 0.0, %v253
    %v1346 = vmul.f32 %v1344, 1.442695
    %v1347 = vpow.pop %v1346
    %v1348 = vmul.f32 %v1345, 1.442695
    %v1349 = vpow.pop %v1348
    %v1350 = vadd.f32 %v1347, 1.0
    %v1351 = vadd.f32 %v1349, 1.0
    %v1352 = vrcp.pop %v1350
    %v1353 = vrcp.pop %v1351
    %v1354 = vmul.f32 %v250, %v1352
    %v1355 = vmul.f32 %v253, %v1353
    %1358 = vrot.lane.b32.xlu0 %v1354, 64
    %v1359 = vpop.permute.xlu0 %1358
    %1360 = vrot.lane.b32.xlu0 %v1355, 64
    %v1361 = vpop.permute.xlu0 %1360
    %v1364 = vmul.f32 %v1342, %v1359
    %v1365 = vmul.f32 %v1343, %v1361
    %v1366 = vld [vmem:[%s4] sm:$0xff]
    %v1367 = vld [vmem:[%s4 + $0x8] sm:$0xff]
    %v1368 = vld [vmem:[%s4 + $0x10] sm:$0xff]
    %v1369 = vld [vmem:[%s4 + $0x18] sm:$0xff]
    %v1370 = vld [vmem:[%s4 + $0x20] sm:$0xff]
    %v1371 = vld [vmem:[%s4 + $0x28] sm:$0xff]
    %v1372 = vld [vmem:[%s4 + $0x30] sm:$0xff]
    %v1373 = vld [vmem:[%s4 + $0x38] sm:$0xff]
    %s1374 = scalar_lea.vmem %s6, 2
    %v1375 = vld [vmem:[%s1374] sm:$0x3]
    %s1376 = scalar_lea.vmem %s5, 24
    %v1377 = vld [vmem:[%s1376] sm:$0xff]
    %v1378 = vld [vmem:[%s1376 + $0x8] sm:$0xff]
    %v1379 = vld [vmem:[%s1376 + $0x10] sm:$0xf]
    %v1381 = vsel %vm319, %v1364, 0
    %v1384 = vsel %vm319, %v1365, 0
    %1386 = vmatpush.msra.mxu0 0.0
    %1387 = vmatpush.msra.mxu0 0.0
    %1388 = vmatpush.msra.mxu0 0.0
    %1389 = vmatpush.msra.mxu0 0.0
    %1390 = vmatpush.msra.mxu0 0.0
    %1391 = vmatpush.msra.mxu0 0.0
    %1392 = vmatpush.msra.mxu0 0.0
    %1393 = vmatpush.msra.mxu0 0.0
    %1394 = vmatpush.msra.mxu0 %v1373
    %1395 = vmatpush.msra.mxu0 %v1372
    %1396 = vmatpush.msra.mxu0 %v1371
    %1397 = vmatpush.msra.mxu0 %v1370
    %1398 = vmatpush.msra.mxu0 %v1369
    %1399 = vmatpush.msra.mxu0 %v1368
    %1400 = vmatpush.msra.mxu0 %v1367
    %1401 = vmatpush.msra.mxu0 %v1366
    %1402 = vmatmul.f32.gmra.mxu0 %v1381
    %v1403 = vpop.f32.mrf.mxu0
    %v1404 = vadd.f32 %v159, %v1403
    %1405 = vmatmul.f32.gmra.mxu0 %v1384
    %v1406 = vpop.f32.mrf.mxu0
    %v1407 = vadd.f32 %v160, %v1406
    %1408 = vdwg.mxu0
    %v1409 = vsel %vm161, %v1404, 0.0
    %1410 = vadd.xlane.f32.xlu0 %v1409
    %v1411 = vpop.xlane.xlu0 %1410
    %v1412 = vsel %vm161, %v1407, 0.0
    %1413 = vadd.xlane.f32.xlu0 %v1412
    %v1414 = vpop.xlane.xlu0 %1413
    %v1415 = vmul.f32 %v1411, %v174
    %v1416 = vmul.f32 %v1414, %v174
    %v1417 = vsub.f32 %v1404, %v1415
    %v1418 = vsub.f32 %v1407, %v1416
    %v1419 = vmul.f32 %v1417, %v1417
    %v1420 = vmul.f32 %v1418, %v1418
    %v1421 = vsel %vm161, %v1419, 0.0
    %1422 = vadd.xlane.f32.xlu0 %v1421
    %v1423 = vpop.xlane.xlu0 %1422
    %v1424 = vsel %vm161, %v1420, 0.0
    %1425 = vadd.xlane.f32.xlu0 %v1424
    %v1426 = vpop.xlane.xlu0 %1425
    %v1427 = vmul.f32 %v1423, %v174
    %v1428 = vmul.f32 %v1426, %v174
    %v1429 = vadd.f32 %v1427, 1e-05
    %v1430 = vadd.f32 %v1428, 1e-05
    %v1431 = vrsqrt.pop %v1429
    %v1432 = vmul.f32 %v1431, %v1429
    %v1433 = vmul.f32 %v1432, %v1431
    %v1434 = vmul.f32 0.5, %v1433
    %v1435 = vsub.f32 1.5, %v1434
    %v1436 = vmul.f32 %v1431, %v1435
    %vm1437 = vweird.f32 %v1429
    %vm1438 = vweird.f32 %v1431
    %vm1439 = vmor %vm1437, %vm1438
    %v1440 = vsel %vm1439, %v1431, %v1436
    %v1441 = vrsqrt.pop %v1430
    %v1442 = vmul.f32 %v1441, %v1430
    %v1443 = vmul.f32 %v1442, %v1441
    %v1444 = vmul.f32 0.5, %v1443
    %v1445 = vsub.f32 1.5, %v1444
    %v1446 = vmul.f32 %v1441, %v1445
    %vm1447 = vweird.f32 %v1430
    %vm1448 = vweird.f32 %v1441
    %vm1449 = vmor %vm1447, %vm1448
    %v1450 = vsel %vm1449, %v1441, %v1446
    %v1451 = vmul.f32 %v1417, %v1440
    %v1452 = vmul.f32 %v1418, %v1450
    %v1453 = vperm.slane %v1375, 0
    %v1454 = vmul.f32 %v1451, %v1453
    %v1455 = vmul.f32 %v1452, %v1453
    %1457 = vrot.lane.b32.xlu0 %v1453, 96
    %v1458 = vpop.permute.xlu0 %1457
    %v1460 = vadd.f32 %v1454, %v1458
    %v1461 = vadd.f32 %v1455, %v1458
    %s1462 = scalar_lea.vmem %s2, 32
    %v1463 = vld [vmem:[%s1462] sm:$0xff]
    %v1464 = vld [vmem:[%s1462 + $0x8] sm:$0xff]
    %v1465 = vld [vmem:[%s1462 + $0x10] sm:$0xff]
    %v1466 = vld [vmem:[%s1462 + $0x18] sm:$0xff]
    %v1468 = vsel %vm161, %v1460, 0
    %v1471 = vsel %vm161, %v1461, 0
    %1473 = vmatpush.msra.mxu0 0.0
    %1474 = vmatpush.msra.mxu0 0.0
    %1475 = vmatpush.msra.mxu0 0.0
    %1476 = vmatpush.msra.mxu0 0.0
    %1477 = vmatpush.msra.mxu0 0.0
    %1478 = vmatpush.msra.mxu0 0.0
    %1479 = vmatpush.msra.mxu0 0.0
    %1480 = vmatpush.msra.mxu0 0.0
    %1481 = vmatpush.msra.mxu0 0.0
    %1482 = vmatpush.msra.mxu0 0.0
    %1483 = vmatpush.msra.mxu0 0.0
    %1484 = vmatpush.msra.mxu0 0.0
    %1485 = vmatpush.msra.mxu0 %v1466
    %1486 = vmatpush.msra.mxu0 %v1465
    %1487 = vmatpush.msra.mxu0 %v1464
    %1488 = vmatpush.msra.mxu0 %v1463
    %1489 = vmatmul.f32.gmra.mxu0 %v1468
    %v1490 = vpop.f32.mrf.mxu0
    %v1491 = vadd.f32 0.0, %v1490
    %1492 = vmatmul.f32.gmra.mxu0 %v1471
    %v1493 = vpop.f32.mrf.mxu0
    %v1494 = vadd.f32 0.0, %v1493
    %1495 = vdwg.mxu0
    %v1496 = vperm.slane %v1379, 3
    %v1497 = vmul.f32 %v1491, %v1496
    %v1498 = vmul.f32 %v1494, %v1496
    %1499 = vrot.lane.b32.xlu0 %v1453, 64
    %v1500 = vpop.permute.xlu0 %1499
    %v1502 = vadd.f32 %v1497, %v1500
    %v1503 = vadd.f32 %v1498, %v1500
    %v1504 = vrot.slane %v1491, 5
    %v1505 = vrot.slane %v1494, 5
    %v1506 = vsel %vm265, %v1504, %v1505
    %v1507 = vsel %vm265, %v1505, %v1504
    %v1508 = vmul.f32 %v1507, %v154
    %v1509 = vmul.f32 %v1506, %v154
    %v1510 = vperm.slane %v1379, 0
    %v1511 = vmul.f32 %v1508, %v1510
    %v1512 = vmul.f32 %v1509, %v1510
    %v1513 = vadd.f32 %v1502, %v1511
    %v1514 = vadd.f32 %v1503, %v1512
    %v1515 = vrot.slane %v1491, 6
    %v1516 = vrot.slane %v1494, 6
    %v1517 = vsel %vm277, %v1515, %v1516
    %v1518 = vsel %vm277, %v1516, %v1515
    %v1519 = vmul.f32 %v1518, %v151
    %v1520 = vmul.f32 %v1517, %v151
    %v1521 = vperm.slane %v1379, 1
    %v1522 = vmul.f32 %v1519, %v1521
    %v1523 = vmul.f32 %v1520, %v1521
    %v1524 = vadd.f32 %v1513, %v1522
    %v1525 = vadd.f32 %v1514, %v1523
    %v1526 = vrot.slane %v1491, 7
    %v1527 = vrot.slane %v1494, 7
    %v1528 = vsel %vm289, %v1526, %v1527
    %v1529 = vsel %vm289, %v1527, %v1526
    %v1530 = vmul.f32 %v1529, %v148
    %v1531 = vmul.f32 %v1528, %v148
    %v1532 = vperm.slane %v1379, 2
    %v1533 = vmul.f32 %v1530, %v1532
    %v1534 = vmul.f32 %v1531, %v1532
    %v1535 = vadd.f32 %v1524, %v1533
    %v1536 = vadd.f32 %v1525, %v1534
    %v1537 = vsub.f32 0.0, %v1535
    %v1538 = vsub.f32 0.0, %v1536
    %v1539 = vmul.f32 %v1537, 1.442695
    %v1540 = vpow.pop %v1539
    %v1541 = vmul.f32 %v1538, 1.442695
    %v1542 = vpow.pop %v1541
    %v1543 = vadd.f32 %v1540, 1.0
    %v1544 = vadd.f32 %v1542, 1.0
    %v1545 = vrcp.pop %v1543
    %v1546 = vrcp.pop %v1544
    %v1547 = vmul.f32 %v1535, %v1545
    %v1548 = vmul.f32 %v1536, %v1546
    %s1549 = scalar_lea.vmem %s3, 64
    %v1550 = vld [vmem:[%s1549] sm:$0xff]
    %v1551 = vld [vmem:[%s1549 + $0x8] sm:$0xff]
    %v1552 = vld [vmem:[%s1549 + $0x10] sm:$0xff]
    %v1553 = vld [vmem:[%s1549 + $0x18] sm:$0xff]
    %v1554 = vld [vmem:[%s1549 + $0x20] sm:$0xff]
    %v1555 = vld [vmem:[%s1549 + $0x28] sm:$0xff]
    %v1556 = vld [vmem:[%s1549 + $0x30] sm:$0xff]
    %v1557 = vld [vmem:[%s1549 + $0x38] sm:$0xff]
    %v1559 = vsel %vm319, %v1547, 0
    %v1562 = vsel %vm319, %v1548, 0
    %1564 = vmatpush.msra.mxu0 0.0
    %1565 = vmatpush.msra.mxu0 0.0
    %1566 = vmatpush.msra.mxu0 0.0
    %1567 = vmatpush.msra.mxu0 0.0
    %1568 = vmatpush.msra.mxu0 0.0
    %1569 = vmatpush.msra.mxu0 0.0
    %1570 = vmatpush.msra.mxu0 0.0
    %1571 = vmatpush.msra.mxu0 0.0
    %1572 = vmatpush.msra.mxu0 %v1557
    %1573 = vmatpush.msra.mxu0 %v1556
    %1574 = vmatpush.msra.mxu0 %v1555
    %1575 = vmatpush.msra.mxu0 %v1554
    %1576 = vmatpush.msra.mxu0 %v1553
    %1577 = vmatpush.msra.mxu0 %v1552
    %1578 = vmatpush.msra.mxu0 %v1551
    %1579 = vmatpush.msra.mxu0 %v1550
    %1580 = vmatmul.f32.gmra.mxu0 %v1559
    %v1581 = vpop.f32.mrf.mxu0
    %v1582 = vadd.f32 0.0, %v1581
    %1583 = vmatmul.f32.gmra.mxu0 %v1562
    %v1584 = vpop.f32.mrf.mxu0
    %v1585 = vadd.f32 0.0, %v1584
    %1586 = vdwg.mxu0
    %v1587 = vperm.slane %v1375, 1
    %1589 = vrot.lane.b32.xlu0 %v1587, 32
    %v1590 = vpop.permute.xlu0 %1589
    %v1592 = vadd.f32 %v1582, %v1590
    %v1593 = vadd.f32 %v1585, %v1590
    %v1594 = vmax.f32 %v1592, 0.0
    %v1595 = vmax.f32 %v1593, 0.0
    %v1596 = vand.u32 2147483647, %v1592
    %v1597 = vand.u32 2147483647, %v1593
    %v1598 = vsub.f32 0.0, %v1596
    %v1599 = vsub.f32 0.0, %v1597
    %v1600 = vmul.f32 %v1598, 1.442695
    %v1601 = vpow.pop %v1600
    %v1602 = vmul.f32 %v1599, 1.442695
    %v1603 = vpow.pop %v1602
    %v1604 = vadd.f32 %v1601, 1.0
    %v1605 = vadd.f32 %v1603, 1.0
    %v1606 = vlog2.pop %v1604
    %v1607 = vmul.f32 %v1606, 0.6931472
    %v1608 = vlog2.pop %v1605
    %v1609 = vmul.f32 %v1608, 0.6931472
    %v1610 = vadd.f32 %v1594, %v1607
    %v1611 = vadd.f32 %v1595, %v1609
    %v1612 = vmul.f32 %v1377, 1.442695
    %v1613 = vpow.pop %v1612
    %v1614 = vmul.f32 %v1378, 1.442695
    %v1615 = vpow.pop %v1614
    %v1616 = vsub.f32 0.0, %v1613
    %v1617 = vsub.f32 0.0, %v1615
    %1618 = vrot.lane.b32.xlu0 %v1547, 32
    %v1619 = vpop.permute.xlu0 %1618
    %1620 = vrot.lane.b32.xlu0 %v1548, 32
    %v1621 = vpop.permute.xlu0 %1620
    %v1624 = vmul.f32 %v1610, %v1619
    %v1625 = vmul.f32 %v1611, %v1621
    %1626 = vxpose.xlu0.b32.start [1/16] %v1582, 128
    %1627 = vxpose.xlu0.b32.cont [2/16] %v1585, 128
    %1628 = vxpose.xlu0.b32.cont [3/16] 0.0, 128
    %1629 = vxpose.xlu0.b32.cont [4/16] 0.0, 128
    %1630 = vxpose.xlu0.b32.cont [5/16] 0.0, 128
    %1631 = vxpose.xlu0.b32.cont [6/16] 0.0, 128
    %1632 = vxpose.xlu0.b32.cont [7/16] 0.0, 128
    %1633 = vxpose.xlu0.b32.cont [8/16] 0.0, 128
    %1634 = vxpose.xlu0.b32.cont [9/16] 0.0, 128
    %1635 = vxpose.xlu0.b32.cont [10/16] 0.0, 128
    %1636 = vxpose.xlu0.b32.cont [11/16] 0.0, 128
    %1637 = vxpose.xlu0.b32.cont [12/16] 0.0, 128
    %1638 = vxpose.xlu0.b32.cont [13/16] 0.0, 128
    %1639 = vxpose.xlu0.b32.cont [14/16] 0.0, 128
    %1640 = vxpose.xlu0.b32.cont [15/16] 0.0, 128
    %1641 = vxpose.xlu0.b32.end [16/16] 0.0, 128
    %v1642 = vpop.trf.xlu0
    %v1643 = vpop.trf.xlu0
    %v1644 = vpop.trf.xlu0
    %v1645 = vpop.trf.xlu0
    %v1646 = vpop.trf.xlu0
    %v1647 = vpop.trf.xlu0
    %v1648 = vpop.trf.xlu0
    %v1649 = vpop.trf.xlu0
    %v1650 = vpop.trf.xlu0
    %v1651 = vpop.trf.xlu0
    %v1652 = vpop.trf.xlu0
    %v1653 = vpop.trf.xlu0
    %v1654 = vpop.trf.xlu0
    %v1655 = vpop.trf.xlu0
    %v1656 = vpop.trf.xlu0
    %v1657 = vpop.trf.xlu0
    %1660 = vrot.lane.b32.xlu0 %v1582, 112
    %v1661 = vpop.permute.xlu0 %1660
    %1662 = vrot.lane.b32.xlu0 %v1585, 112
    %v1663 = vpop.permute.xlu0 %1662
    %1666 = vxpose.xlu0.b32.start [1/16] %v1661, 128
    %1667 = vxpose.xlu0.b32.cont [2/16] %v1663, 128
    %1668 = vxpose.xlu0.b32.cont [3/16] 0.0, 128
    %1669 = vxpose.xlu0.b32.cont [4/16] 0.0, 128
    %1670 = vxpose.xlu0.b32.cont [5/16] 0.0, 128
    %1671 = vxpose.xlu0.b32.cont [6/16] 0.0, 128
    %1672 = vxpose.xlu0.b32.cont [7/16] 0.0, 128
    %1673 = vxpose.xlu0.b32.cont [8/16] 0.0, 128
    %1674 = vxpose.xlu0.b32.cont [9/16] 0.0, 128
    %1675 = vxpose.xlu0.b32.cont [10/16] 0.0, 128
    %1676 = vxpose.xlu0.b32.cont [11/16] 0.0, 128
    %1677 = vxpose.xlu0.b32.cont [12/16] 0.0, 128
    %1678 = vxpose.xlu0.b32.cont [13/16] 0.0, 128
    %1679 = vxpose.xlu0.b32.cont [14/16] 0.0, 128
    %1680 = vxpose.xlu0.b32.cont [15/16] 0.0, 128
    %1681 = vxpose.xlu0.b32.end [16/16] 0.0, 128
    %v1682 = vpop.trf.xlu0
    %v1683 = vpop.trf.xlu0
    %v1684 = vpop.trf.xlu0
    %v1685 = vpop.trf.xlu0
    %v1686 = vpop.trf.xlu0
    %v1687 = vpop.trf.xlu0
    %v1688 = vpop.trf.xlu0
    %v1689 = vpop.trf.xlu0
    %v1690 = vpop.trf.xlu0
    %v1691 = vpop.trf.xlu0
    %v1692 = vpop.trf.xlu0
    %v1693 = vpop.trf.xlu0
    %v1694 = vpop.trf.xlu0
    %v1695 = vpop.trf.xlu0
    %v1696 = vpop.trf.xlu0
    %v1697 = vpop.trf.xlu0
    %v1698 = vperm.slane %v1610, 0
    %1700 = vrot.lane.b32.xlu0 %v1698, 96
    %v1701 = vpop.permute.xlu0 %1700
    %v1703 = vmul.f32 %v1616, %v1701
    %v1704 = vmul.f32 %v1617, %v1701
    %v1705 = vmul.f32 %v1703, 1.442695
    %v1706 = vpow.pop %v1705
    %v1707 = vmul.f32 %v1704, 1.442695
    %v1708 = vpow.pop %v1707
    %v1709 = vperm.slane %v1610, 1
    %1711 = vrot.lane.b32.xlu0 %v1709, 96
    %v1712 = vpop.permute.xlu0 %1711
    %v1714 = vmul.f32 %v1616, %v1712
    %v1715 = vmul.f32 %v1617, %v1712
    %v1716 = vmul.f32 %v1714, 1.442695
    %v1717 = vpow.pop %v1716
    %v1718 = vmul.f32 %v1715, 1.442695
    %v1719 = vpow.pop %v1718
    %v1720 = vperm.slane %v1610, 2
    %1722 = vrot.lane.b32.xlu0 %v1720, 96
    %v1723 = vpop.permute.xlu0 %1722
    %v1725 = vmul.f32 %v1616, %v1723
    %v1726 = vmul.f32 %v1617, %v1723
    %v1727 = vmul.f32 %v1725, 1.442695
    %v1728 = vpow.pop %v1727
    %v1729 = vmul.f32 %v1726, 1.442695
    %v1730 = vpow.pop %v1729
    %v1731 = vperm.slane %v1610, 3
    %1733 = vrot.lane.b32.xlu0 %v1731, 96
    %v1734 = vpop.permute.xlu0 %1733
    %v1736 = vmul.f32 %v1616, %v1734
    %v1737 = vmul.f32 %v1617, %v1734
    %v1738 = vmul.f32 %v1736, 1.442695
    %v1739 = vpow.pop %v1738
    %v1740 = vmul.f32 %v1737, 1.442695
    %v1741 = vpow.pop %v1740
    %v1742 = vperm.slane %v1610, 4
    %1744 = vrot.lane.b32.xlu0 %v1742, 96
    %v1745 = vpop.permute.xlu0 %1744
    %v1747 = vmul.f32 %v1616, %v1745
    %v1748 = vmul.f32 %v1617, %v1745
    %v1749 = vmul.f32 %v1747, 1.442695
    %v1750 = vpow.pop %v1749
    %v1751 = vmul.f32 %v1748, 1.442695
    %v1752 = vpow.pop %v1751
    %v1753 = vperm.slane %v1610, 5
    %1755 = vrot.lane.b32.xlu0 %v1753, 96
    %v1756 = vpop.permute.xlu0 %1755
    %v1758 = vmul.f32 %v1616, %v1756
    %v1759 = vmul.f32 %v1617, %v1756
    %v1760 = vmul.f32 %v1758, 1.442695
    %v1761 = vpow.pop %v1760
    %v1762 = vmul.f32 %v1759, 1.442695
    %v1763 = vpow.pop %v1762
    %v1764 = vperm.slane %v1610, 6
    %1766 = vrot.lane.b32.xlu0 %v1764, 96
    %v1767 = vpop.permute.xlu0 %1766
    %v1769 = vmul.f32 %v1616, %v1767
    %v1770 = vmul.f32 %v1617, %v1767
    %v1771 = vmul.f32 %v1769, 1.442695
    %v1772 = vpow.pop %v1771
    %v1773 = vmul.f32 %v1770, 1.442695
    %v1774 = vpow.pop %v1773
    %v1775 = vperm.slane %v1610, 7
    %1777 = vrot.lane.b32.xlu0 %v1775, 96
    %v1778 = vpop.permute.xlu0 %1777
    %v1780 = vmul.f32 %v1616, %v1778
    %v1781 = vmul.f32 %v1617, %v1778
    %v1782 = vmul.f32 %v1780, 1.442695
    %v1783 = vpow.pop %v1782
    %v1784 = vmul.f32 %v1781, 1.442695
    %v1785 = vpow.pop %v1784
    %v1786 = vperm.slane %v1611, 0
    %1788 = vrot.lane.b32.xlu0 %v1786, 96
    %v1789 = vpop.permute.xlu0 %1788
    %v1791 = vmul.f32 %v1616, %v1789
    %v1792 = vmul.f32 %v1617, %v1789
    %v1793 = vmul.f32 %v1791, 1.442695
    %v1794 = vpow.pop %v1793
    %v1795 = vmul.f32 %v1792, 1.442695
    %v1796 = vpow.pop %v1795
    %v1797 = vperm.slane %v1611, 1
    %1799 = vrot.lane.b32.xlu0 %v1797, 96
    %v1800 = vpop.permute.xlu0 %1799
    %v1802 = vmul.f32 %v1616, %v1800
    %v1803 = vmul.f32 %v1617, %v1800
    %v1804 = vmul.f32 %v1802, 1.442695
    %v1805 = vpow.pop %v1804
    %v1806 = vmul.f32 %v1803, 1.442695
    %v1807 = vpow.pop %v1806
    %v1808 = vperm.slane %v1611, 2
    %1810 = vrot.lane.b32.xlu0 %v1808, 96
    %v1811 = vpop.permute.xlu0 %1810
    %v1813 = vmul.f32 %v1616, %v1811
    %v1814 = vmul.f32 %v1617, %v1811
    %v1815 = vmul.f32 %v1813, 1.442695
    %v1816 = vpow.pop %v1815
    %v1817 = vmul.f32 %v1814, 1.442695
    %v1818 = vpow.pop %v1817
    %v1819 = vperm.slane %v1611, 3
    %1821 = vrot.lane.b32.xlu0 %v1819, 96
    %v1822 = vpop.permute.xlu0 %1821
    %v1824 = vmul.f32 %v1616, %v1822
    %v1825 = vmul.f32 %v1617, %v1822
    %v1826 = vmul.f32 %v1824, 1.442695
    %v1827 = vpow.pop %v1826
    %v1828 = vmul.f32 %v1825, 1.442695
    %v1829 = vpow.pop %v1828
    %v1830 = vperm.slane %v1611, 4
    %1832 = vrot.lane.b32.xlu0 %v1830, 96
    %v1833 = vpop.permute.xlu0 %1832
    %v1835 = vmul.f32 %v1616, %v1833
    %v1836 = vmul.f32 %v1617, %v1833
    %v1837 = vmul.f32 %v1835, 1.442695
    %v1838 = vpow.pop %v1837
    %v1839 = vmul.f32 %v1836, 1.442695
    %v1840 = vpow.pop %v1839
    %v1841 = vperm.slane %v1611, 5
    %1843 = vrot.lane.b32.xlu0 %v1841, 96
    %v1844 = vpop.permute.xlu0 %1843
    %v1846 = vmul.f32 %v1616, %v1844
    %v1847 = vmul.f32 %v1617, %v1844
    %v1848 = vmul.f32 %v1846, 1.442695
    %v1849 = vpow.pop %v1848
    %v1850 = vmul.f32 %v1847, 1.442695
    %v1851 = vpow.pop %v1850
    %v1852 = vperm.slane %v1611, 6
    %1854 = vrot.lane.b32.xlu0 %v1852, 96
    %v1855 = vpop.permute.xlu0 %1854
    %v1857 = vmul.f32 %v1616, %v1855
    %v1858 = vmul.f32 %v1617, %v1855
    %v1859 = vmul.f32 %v1857, 1.442695
    %v1860 = vpow.pop %v1859
    %v1861 = vmul.f32 %v1858, 1.442695
    %v1862 = vpow.pop %v1861
    %v1863 = vperm.slane %v1611, 7
    %1865 = vrot.lane.b32.xlu0 %v1863, 96
    %v1866 = vpop.permute.xlu0 %1865
    %v1868 = vmul.f32 %v1616, %v1866
    %v1869 = vmul.f32 %v1617, %v1866
    %v1870 = vmul.f32 %v1868, 1.442695
    %v1871 = vpow.pop %v1870
    %v1872 = vmul.f32 %v1869, 1.442695
    %v1873 = vpow.pop %v1872
    %1875 = vset.pattern.permute.xlu0 0
    %1876 = vperm.xlu0 %1875, %v1642
    %v1877 = vpop.permute.xlu0 %1876
    %1880 = vset.pattern.permute.xlu0 0
    %1881 = vperm.xlu0 %1880, %v1643
    %v1882 = vpop.permute.xlu0 %1881
    %v1884 = vperm.slane %v1624, 0
    %v1885 = vmul.f32 %v1877, %v1884
    %v1886 = vmul.f32 %v1882, %v1884
    %1887 = vset.pattern.permute.xlu0 1
    %1888 = vperm.xlu0 %1887, %v1642
    %v1889 = vpop.permute.xlu0 %1888
    %1891 = vset.pattern.permute.xlu0 1
    %1892 = vperm.xlu0 %1891, %v1643
    %v1893 = vpop.permute.xlu0 %1892
    %v1895 = vperm.slane %v1624, 1
    %v1896 = vmul.f32 %v1889, %v1895
    %v1897 = vmul.f32 %v1893, %v1895
    %1898 = vset.pattern.permute.xlu0 2
    %1899 = vperm.xlu0 %1898, %v1642
    %v1900 = vpop.permute.xlu0 %1899
    %1902 = vset.pattern.permute.xlu0 2
    %1903 = vperm.xlu0 %1902, %v1643
    %v1904 = vpop.permute.xlu0 %1903
    %v1906 = vperm.slane %v1624, 2
    %v1907 = vmul.f32 %v1900, %v1906
    %v1908 = vmul.f32 %v1904, %v1906
    %1909 = vset.pattern.permute.xlu0 3
    %1910 = vperm.xlu0 %1909, %v1642
    %v1911 = vpop.permute.xlu0 %1910
    %1913 = vset.pattern.permute.xlu0 3
    %1914 = vperm.xlu0 %1913, %v1643
    %v1915 = vpop.permute.xlu0 %1914
    %v1917 = vperm.slane %v1624, 3
    %v1918 = vmul.f32 %v1911, %v1917
    %v1919 = vmul.f32 %v1915, %v1917
    %1920 = vset.pattern.permute.xlu0 4
    %1921 = vperm.xlu0 %1920, %v1642
    %v1922 = vpop.permute.xlu0 %1921
    %1924 = vset.pattern.permute.xlu0 4
    %1925 = vperm.xlu0 %1924, %v1643
    %v1926 = vpop.permute.xlu0 %1925
    %v1928 = vperm.slane %v1624, 4
    %v1929 = vmul.f32 %v1922, %v1928
    %v1930 = vmul.f32 %v1926, %v1928
    %1931 = vset.pattern.permute.xlu0 5
    %1932 = vperm.xlu0 %1931, %v1642
    %v1933 = vpop.permute.xlu0 %1932
    %1935 = vset.pattern.permute.xlu0 5
    %1936 = vperm.xlu0 %1935, %v1643
    %v1937 = vpop.permute.xlu0 %1936
    %v1939 = vperm.slane %v1624, 5
    %v1940 = vmul.f32 %v1933, %v1939
    %v1941 = vmul.f32 %v1937, %v1939
    %1942 = vset.pattern.permute.xlu0 6
    %1943 = vperm.xlu0 %1942, %v1642
    %v1944 = vpop.permute.xlu0 %1943
    %1946 = vset.pattern.permute.xlu0 6
    %1947 = vperm.xlu0 %1946, %v1643
    %v1948 = vpop.permute.xlu0 %1947
    %v1950 = vperm.slane %v1624, 6
    %v1951 = vmul.f32 %v1944, %v1950
    %v1952 = vmul.f32 %v1948, %v1950
    %1953 = vset.pattern.permute.xlu0 7
    %1954 = vperm.xlu0 %1953, %v1642
    %v1955 = vpop.permute.xlu0 %1954
    %1957 = vset.pattern.permute.xlu0 7
    %1958 = vperm.xlu0 %1957, %v1643
    %v1959 = vpop.permute.xlu0 %1958
    %v1961 = vperm.slane %v1624, 7
    %v1962 = vmul.f32 %v1955, %v1961
    %v1963 = vmul.f32 %v1959, %v1961
    %1964 = vset.pattern.permute.xlu0 8
    %1965 = vperm.xlu0 %1964, %v1642
    %v1966 = vpop.permute.xlu0 %1965
    %1968 = vset.pattern.permute.xlu0 8
    %1969 = vperm.xlu0 %1968, %v1643
    %v1970 = vpop.permute.xlu0 %1969
    %v1972 = vperm.slane %v1625, 0
    %v1973 = vmul.f32 %v1966, %v1972
    %v1974 = vmul.f32 %v1970, %v1972
    %1975 = vset.pattern.permute.xlu0 9
    %1976 = vperm.xlu0 %1975, %v1642
    %v1977 = vpop.permute.xlu0 %1976
    %1979 = vset.pattern.permute.xlu0 9
    %1980 = vperm.xlu0 %1979, %v1643
    %v1981 = vpop.permute.xlu0 %1980
    %v1983 = vperm.slane %v1625, 1
    %v1984 = vmul.f32 %v1977, %v1983
    %v1985 = vmul.f32 %v1981, %v1983
    %1986 = vset.pattern.permute.xlu0 10
    %1987 = vperm.xlu0 %1986, %v1642
    %v1988 = vpop.permute.xlu0 %1987
    %1990 = vset.pattern.permute.xlu0 10
    %1991 = vperm.xlu0 %1990, %v1643
    %v1992 = vpop.permute.xlu0 %1991
    %v1994 = vperm.slane %v1625, 2
    %v1995 = vmul.f32 %v1988, %v1994
    %v1996 = vmul.f32 %v1992, %v1994
    %1997 = vset.pattern.permute.xlu0 11
    %1998 = vperm.xlu0 %1997, %v1642
    %v1999 = vpop.permute.xlu0 %1998
    %2001 = vset.pattern.permute.xlu0 11
    %2002 = vperm.xlu0 %2001, %v1643
    %v2003 = vpop.permute.xlu0 %2002
    %v2005 = vperm.slane %v1625, 3
    %v2006 = vmul.f32 %v1999, %v2005
    %v2007 = vmul.f32 %v2003, %v2005
    %2008 = vset.pattern.permute.xlu0 12
    %2009 = vperm.xlu0 %2008, %v1642
    %v2010 = vpop.permute.xlu0 %2009
    %2012 = vset.pattern.permute.xlu0 12
    %2013 = vperm.xlu0 %2012, %v1643
    %v2014 = vpop.permute.xlu0 %2013
    %v2016 = vperm.slane %v1625, 4
    %v2017 = vmul.f32 %v2010, %v2016
    %v2018 = vmul.f32 %v2014, %v2016
    %2019 = vset.pattern.permute.xlu0 13
    %2020 = vperm.xlu0 %2019, %v1642
    %v2021 = vpop.permute.xlu0 %2020
    %2023 = vset.pattern.permute.xlu0 13
    %2024 = vperm.xlu0 %2023, %v1643
    %v2025 = vpop.permute.xlu0 %2024
    %v2027 = vperm.slane %v1625, 5
    %v2028 = vmul.f32 %v2021, %v2027
    %v2029 = vmul.f32 %v2025, %v2027
    %2030 = vset.pattern.permute.xlu0 14
    %2031 = vperm.xlu0 %2030, %v1642
    %v2032 = vpop.permute.xlu0 %2031
    %2034 = vset.pattern.permute.xlu0 14
    %2035 = vperm.xlu0 %2034, %v1643
    %v2036 = vpop.permute.xlu0 %2035
    %v2038 = vperm.slane %v1625, 6
    %v2039 = vmul.f32 %v2032, %v2038
    %v2040 = vmul.f32 %v2036, %v2038
    %2041 = vset.pattern.permute.xlu0 15
    %2042 = vperm.xlu0 %2041, %v1642
    %v2043 = vpop.permute.xlu0 %2042
    %2045 = vset.pattern.permute.xlu0 15
    %2046 = vperm.xlu0 %2045, %v1643
    %v2047 = vpop.permute.xlu0 %2046
    %v2049 = vperm.slane %v1625, 7
    %v2050 = vmul.f32 %v2043, %v2049
    %v2051 = vmul.f32 %v2047, %v2049
    %v2052 = vmul.f32 %v1706, 0.0
    %v2053 = vmul.f32 %v1708, 0.0
    %2056 = vrot.lane.b32.xlu0 %v1885, 96
    %v2057 = vpop.permute.xlu0 %2056
    %2058 = vrot.lane.b32.xlu0 %v1886, 96
    %v2059 = vpop.permute.xlu0 %2058
    %v2062 = vadd.f32 %v2052, %v2057
    %v2063 = vadd.f32 %v2053, %v2059
    %2065 = vset.pattern.permute.xlu0 0
    %2066 = vperm.xlu0 %2065, %v1682
    %v2067 = vpop.permute.xlu0 %2066
    %2070 = vset.pattern.permute.xlu0 0
    %2071 = vperm.xlu0 %2070, %v1683
    %v2072 = vpop.permute.xlu0 %2071
    %v2074 = vmul.f32 %v2067, %v2062
    %v2075 = vmul.f32 %v2072, %v2063
    %v2076 = vsel %vm319, %v2074, 0.0
    %v2077 = vsel %vm319, %v2075, 0.0
    %v2078 = vadd.f32 %v2076, %v2077
    %v2079 = vrot.slane %v2078, 4
    %v2080 = vadd.f32 %v2078, %v2079
    %v2081 = vrot.slane %v2080, 2
    %v2082 = vadd.f32 %v2080, %v2081
    %v2083 = vrot.slane %v2082, 1
    %v2084 = vadd.f32 %v2082, %v2083
    %v2085 = vmul.f32 %v1717, %v2062
    %v2086 = vmul.f32 %v1719, %v2063
    %2089 = vrot.lane.b32.xlu0 %v1896, 96
    %v2090 = vpop.permute.xlu0 %2089
    %2091 = vrot.lane.b32.xlu0 %v1897, 96
    %v2092 = vpop.permute.xlu0 %2091
    %v2095 = vadd.f32 %v2085, %v2090
    %v2096 = vadd.f32 %v2086, %v2092
    %2097 = vset.pattern.permute.xlu0 1
    %2098 = vperm.xlu0 %2097, %v1682
    %v2099 = vpop.permute.xlu0 %2098
    %2101 = vset.pattern.permute.xlu0 1
    %2102 = vperm.xlu0 %2101, %v1683
    %v2103 = vpop.permute.xlu0 %2102
    %v2105 = vmul.f32 %v2099, %v2095
    %v2106 = vmul.f32 %v2103, %v2096
    %v2107 = vsel %vm319, %v2105, 0.0
    %v2108 = vsel %vm319, %v2106, 0.0
    %v2109 = vadd.f32 %v2107, %v2108
    %v2110 = vrot.slane %v2109, 4
    %v2111 = vadd.f32 %v2109, %v2110
    %v2112 = vrot.slane %v2111, 2
    %v2113 = vadd.f32 %v2111, %v2112
    %v2114 = vrot.slane %v2113, 1
    %v2115 = vadd.f32 %v2113, %v2114
    %v2116 = vmul.f32 %v1728, %v2095
    %v2117 = vmul.f32 %v1730, %v2096
    %2120 = vrot.lane.b32.xlu0 %v1907, 96
    %v2121 = vpop.permute.xlu0 %2120
    %2122 = vrot.lane.b32.xlu0 %v1908, 96
    %v2123 = vpop.permute.xlu0 %2122
    %v2126 = vadd.f32 %v2116, %v2121
    %v2127 = vadd.f32 %v2117, %v2123
    %2128 = vset.pattern.permute.xlu0 2
    %2129 = vperm.xlu0 %2128, %v1682
    %v2130 = vpop.permute.xlu0 %2129
    %2132 = vset.pattern.permute.xlu0 2
    %2133 = vperm.xlu0 %2132, %v1683
    %v2134 = vpop.permute.xlu0 %2133
    %v2136 = vmul.f32 %v2130, %v2126
    %v2137 = vmul.f32 %v2134, %v2127
    %v2138 = vsel %vm319, %v2136, 0.0
    %v2139 = vsel %vm319, %v2137, 0.0
    %v2140 = vadd.f32 %v2138, %v2139
    %v2141 = vrot.slane %v2140, 4
    %v2142 = vadd.f32 %v2140, %v2141
    %v2143 = vrot.slane %v2142, 2
    %v2144 = vadd.f32 %v2142, %v2143
    %v2145 = vrot.slane %v2144, 1
    %v2146 = vadd.f32 %v2144, %v2145
    %v2147 = vmul.f32 %v1739, %v2126
    %v2148 = vmul.f32 %v1741, %v2127
    %2151 = vrot.lane.b32.xlu0 %v1918, 96
    %v2152 = vpop.permute.xlu0 %2151
    %2153 = vrot.lane.b32.xlu0 %v1919, 96
    %v2154 = vpop.permute.xlu0 %2153
    %v2157 = vadd.f32 %v2147, %v2152
    %v2158 = vadd.f32 %v2148, %v2154
    %2159 = vset.pattern.permute.xlu0 3
    %2160 = vperm.xlu0 %2159, %v1682
    %v2161 = vpop.permute.xlu0 %2160
    %2163 = vset.pattern.permute.xlu0 3
    %2164 = vperm.xlu0 %2163, %v1683
    %v2165 = vpop.permute.xlu0 %2164
    %v2167 = vmul.f32 %v2161, %v2157
    %v2168 = vmul.f32 %v2165, %v2158
    %v2169 = vsel %vm319, %v2167, 0.0
    %v2170 = vsel %vm319, %v2168, 0.0
    %v2171 = vadd.f32 %v2169, %v2170
    %v2172 = vrot.slane %v2171, 4
    %v2173 = vadd.f32 %v2171, %v2172
    %v2174 = vrot.slane %v2173, 2
    %v2175 = vadd.f32 %v2173, %v2174
    %v2176 = vrot.slane %v2175, 1
    %v2177 = vadd.f32 %v2175, %v2176
    %v2178 = vmul.f32 %v1750, %v2157
    %v2179 = vmul.f32 %v1752, %v2158
    %2182 = vrot.lane.b32.xlu0 %v1929, 96
    %v2183 = vpop.permute.xlu0 %2182
    %2184 = vrot.lane.b32.xlu0 %v1930, 96
    %v2185 = vpop.permute.xlu0 %2184
    %v2188 = vadd.f32 %v2178, %v2183
    %v2189 = vadd.f32 %v2179, %v2185
    %2190 = vset.pattern.permute.xlu0 4
    %2191 = vperm.xlu0 %2190, %v1682
    %v2192 = vpop.permute.xlu0 %2191
    %2194 = vset.pattern.permute.xlu0 4
    %2195 = vperm.xlu0 %2194, %v1683
    %v2196 = vpop.permute.xlu0 %2195
    %v2198 = vmul.f32 %v2192, %v2188
    %v2199 = vmul.f32 %v2196, %v2189
    %v2200 = vsel %vm319, %v2198, 0.0
    %v2201 = vsel %vm319, %v2199, 0.0
    %v2202 = vadd.f32 %v2200, %v2201
    %v2203 = vrot.slane %v2202, 4
    %v2204 = vadd.f32 %v2202, %v2203
    %v2205 = vrot.slane %v2204, 2
    %v2206 = vadd.f32 %v2204, %v2205
    %v2207 = vrot.slane %v2206, 1
    %v2208 = vadd.f32 %v2206, %v2207
    %v2209 = vmul.f32 %v1761, %v2188
    %v2210 = vmul.f32 %v1763, %v2189
    %2213 = vrot.lane.b32.xlu0 %v1940, 96
    %v2214 = vpop.permute.xlu0 %2213
    %2215 = vrot.lane.b32.xlu0 %v1941, 96
    %v2216 = vpop.permute.xlu0 %2215
    %v2219 = vadd.f32 %v2209, %v2214
    %v2220 = vadd.f32 %v2210, %v2216
    %2221 = vset.pattern.permute.xlu0 5
    %2222 = vperm.xlu0 %2221, %v1682
    %v2223 = vpop.permute.xlu0 %2222
    %2225 = vset.pattern.permute.xlu0 5
    %2226 = vperm.xlu0 %2225, %v1683
    %v2227 = vpop.permute.xlu0 %2226
    %v2229 = vmul.f32 %v2223, %v2219
    %v2230 = vmul.f32 %v2227, %v2220
    %v2231 = vsel %vm319, %v2229, 0.0
    %v2232 = vsel %vm319, %v2230, 0.0
    %v2233 = vadd.f32 %v2231, %v2232
    %v2234 = vrot.slane %v2233, 4
    %v2235 = vadd.f32 %v2233, %v2234
    %v2236 = vrot.slane %v2235, 2
    %v2237 = vadd.f32 %v2235, %v2236
    %v2238 = vrot.slane %v2237, 1
    %v2239 = vadd.f32 %v2237, %v2238
    %v2240 = vmul.f32 %v1772, %v2219
    %v2241 = vmul.f32 %v1774, %v2220
    %2244 = vrot.lane.b32.xlu0 %v1951, 96
    %v2245 = vpop.permute.xlu0 %2244
    %2246 = vrot.lane.b32.xlu0 %v1952, 96
    %v2247 = vpop.permute.xlu0 %2246
    %v2250 = vadd.f32 %v2240, %v2245
    %v2251 = vadd.f32 %v2241, %v2247
    %2252 = vset.pattern.permute.xlu0 6
    %2253 = vperm.xlu0 %2252, %v1682
    %v2254 = vpop.permute.xlu0 %2253
    %2256 = vset.pattern.permute.xlu0 6
    %2257 = vperm.xlu0 %2256, %v1683
    %v2258 = vpop.permute.xlu0 %2257
    %v2260 = vmul.f32 %v2254, %v2250
    %v2261 = vmul.f32 %v2258, %v2251
    %v2262 = vsel %vm319, %v2260, 0.0
    %v2263 = vsel %vm319, %v2261, 0.0
    %v2264 = vadd.f32 %v2262, %v2263
    %v2265 = vrot.slane %v2264, 4
    %v2266 = vadd.f32 %v2264, %v2265
    %v2267 = vrot.slane %v2266, 2
    %v2268 = vadd.f32 %v2266, %v2267
    %v2269 = vrot.slane %v2268, 1
    %v2270 = vadd.f32 %v2268, %v2269
    %v2271 = vmul.f32 %v1783, %v2250
    %v2272 = vmul.f32 %v1785, %v2251
    %2275 = vrot.lane.b32.xlu0 %v1962, 96
    %v2276 = vpop.permute.xlu0 %2275
    %2277 = vrot.lane.b32.xlu0 %v1963, 96
    %v2278 = vpop.permute.xlu0 %2277
    %v2281 = vadd.f32 %v2271, %v2276
    %v2282 = vadd.f32 %v2272, %v2278
    %2283 = vset.pattern.permute.xlu0 7
    %2284 = vperm.xlu0 %2283, %v1682
    %v2285 = vpop.permute.xlu0 %2284
    %2287 = vset.pattern.permute.xlu0 7
    %2288 = vperm.xlu0 %2287, %v1683
    %v2289 = vpop.permute.xlu0 %2288
    %v2291 = vmul.f32 %v2285, %v2281
    %v2292 = vmul.f32 %v2289, %v2282
    %v2293 = vsel %vm319, %v2291, 0.0
    %v2294 = vsel %vm319, %v2292, 0.0
    %v2295 = vadd.f32 %v2293, %v2294
    %v2296 = vrot.slane %v2295, 4
    %v2297 = vadd.f32 %v2295, %v2296
    %v2298 = vrot.slane %v2297, 2
    %v2299 = vadd.f32 %v2297, %v2298
    %v2300 = vrot.slane %v2299, 1
    %v2301 = vadd.f32 %v2299, %v2300
    %v2302 = vmul.f32 %v1794, 0.0
    %v2303 = vmul.f32 %v1796, 0.0
    %2306 = vrot.lane.b32.xlu0 %v1973, 96
    %v2307 = vpop.permute.xlu0 %2306
    %2308 = vrot.lane.b32.xlu0 %v1974, 96
    %v2309 = vpop.permute.xlu0 %2308
    %v2312 = vadd.f32 %v2302, %v2307
    %v2313 = vadd.f32 %v2303, %v2309
    %2314 = vset.pattern.permute.xlu0 8
    %2315 = vperm.xlu0 %2314, %v1682
    %v2316 = vpop.permute.xlu0 %2315
    %2318 = vset.pattern.permute.xlu0 8
    %2319 = vperm.xlu0 %2318, %v1683
    %v2320 = vpop.permute.xlu0 %2319
    %v2322 = vmul.f32 %v2316, %v2312
    %v2323 = vmul.f32 %v2320, %v2313
    %v2324 = vsel %vm319, %v2322, 0.0
    %v2325 = vsel %vm319, %v2323, 0.0
    %v2326 = vadd.f32 %v2324, %v2325
    %v2327 = vrot.slane %v2326, 4
    %v2328 = vadd.f32 %v2326, %v2327
    %v2329 = vrot.slane %v2328, 2
    %v2330 = vadd.f32 %v2328, %v2329
    %v2331 = vrot.slane %v2330, 1
    %v2332 = vadd.f32 %v2330, %v2331
    %v2333 = vmul.f32 %v1805, %v2312
    %v2334 = vmul.f32 %v1807, %v2313
    %2337 = vrot.lane.b32.xlu0 %v1984, 96
    %v2338 = vpop.permute.xlu0 %2337
    %2339 = vrot.lane.b32.xlu0 %v1985, 96
    %v2340 = vpop.permute.xlu0 %2339
    %v2343 = vadd.f32 %v2333, %v2338
    %v2344 = vadd.f32 %v2334, %v2340
    %2345 = vset.pattern.permute.xlu0 9
    %2346 = vperm.xlu0 %2345, %v1682
    %v2347 = vpop.permute.xlu0 %2346
    %2349 = vset.pattern.permute.xlu0 9
    %2350 = vperm.xlu0 %2349, %v1683
    %v2351 = vpop.permute.xlu0 %2350
    %v2353 = vmul.f32 %v2347, %v2343
    %v2354 = vmul.f32 %v2351, %v2344
    %v2355 = vsel %vm319, %v2353, 0.0
    %v2356 = vsel %vm319, %v2354, 0.0
    %v2357 = vadd.f32 %v2355, %v2356
    %v2358 = vrot.slane %v2357, 4
    %v2359 = vadd.f32 %v2357, %v2358
    %v2360 = vrot.slane %v2359, 2
    %v2361 = vadd.f32 %v2359, %v2360
    %v2362 = vrot.slane %v2361, 1
    %v2363 = vadd.f32 %v2361, %v2362
    %v2364 = vmul.f32 %v1816, %v2343
    %v2365 = vmul.f32 %v1818, %v2344
    %2368 = vrot.lane.b32.xlu0 %v1995, 96
    %v2369 = vpop.permute.xlu0 %2368
    %2370 = vrot.lane.b32.xlu0 %v1996, 96
    %v2371 = vpop.permute.xlu0 %2370
    %v2374 = vadd.f32 %v2364, %v2369
    %v2375 = vadd.f32 %v2365, %v2371
    %2376 = vset.pattern.permute.xlu0 10
    %2377 = vperm.xlu0 %2376, %v1682
    %v2378 = vpop.permute.xlu0 %2377
    %2380 = vset.pattern.permute.xlu0 10
    %2381 = vperm.xlu0 %2380, %v1683
    %v2382 = vpop.permute.xlu0 %2381
    %v2384 = vmul.f32 %v2378, %v2374
    %v2385 = vmul.f32 %v2382, %v2375
    %v2386 = vsel %vm319, %v2384, 0.0
    %v2387 = vsel %vm319, %v2385, 0.0
    %v2388 = vadd.f32 %v2386, %v2387
    %v2389 = vrot.slane %v2388, 4
    %v2390 = vadd.f32 %v2388, %v2389
    %v2391 = vrot.slane %v2390, 2
    %v2392 = vadd.f32 %v2390, %v2391
    %v2393 = vrot.slane %v2392, 1
    %v2394 = vadd.f32 %v2392, %v2393
    %v2395 = vmul.f32 %v1827, %v2374
    %v2396 = vmul.f32 %v1829, %v2375
    %2399 = vrot.lane.b32.xlu0 %v2006, 96
    %v2400 = vpop.permute.xlu0 %2399
    %2401 = vrot.lane.b32.xlu0 %v2007, 96
    %v2402 = vpop.permute.xlu0 %2401
    %v2405 = vadd.f32 %v2395, %v2400
    %v2406 = vadd.f32 %v2396, %v2402
    %2407 = vset.pattern.permute.xlu0 11
    %2408 = vperm.xlu0 %2407, %v1682
    %v2409 = vpop.permute.xlu0 %2408
    %2411 = vset.pattern.permute.xlu0 11
    %2412 = vperm.xlu0 %2411, %v1683
    %v2413 = vpop.permute.xlu0 %2412
    %v2415 = vmul.f32 %v2409, %v2405
    %v2416 = vmul.f32 %v2413, %v2406
    %v2417 = vsel %vm319, %v2415, 0.0
    %v2418 = vsel %vm319, %v2416, 0.0
    %v2419 = vadd.f32 %v2417, %v2418
    %v2420 = vrot.slane %v2419, 4
    %v2421 = vadd.f32 %v2419, %v2420
    %v2422 = vrot.slane %v2421, 2
    %v2423 = vadd.f32 %v2421, %v2422
    %v2424 = vrot.slane %v2423, 1
    %v2425 = vadd.f32 %v2423, %v2424
    %v2426 = vmul.f32 %v1838, %v2405
    %v2427 = vmul.f32 %v1840, %v2406
    %2430 = vrot.lane.b32.xlu0 %v2017, 96
    %v2431 = vpop.permute.xlu0 %2430
    %2432 = vrot.lane.b32.xlu0 %v2018, 96
    %v2433 = vpop.permute.xlu0 %2432
    %v2436 = vadd.f32 %v2426, %v2431
    %v2437 = vadd.f32 %v2427, %v2433
    %2438 = vset.pattern.permute.xlu0 12
    %2439 = vperm.xlu0 %2438, %v1682
    %v2440 = vpop.permute.xlu0 %2439
    %2442 = vset.pattern.permute.xlu0 12
    %2443 = vperm.xlu0 %2442, %v1683
    %v2444 = vpop.permute.xlu0 %2443
    %v2446 = vmul.f32 %v2440, %v2436
    %v2447 = vmul.f32 %v2444, %v2437
    %v2448 = vsel %vm319, %v2446, 0.0
    %v2449 = vsel %vm319, %v2447, 0.0
    %v2450 = vadd.f32 %v2448, %v2449
    %v2451 = vrot.slane %v2450, 4
    %v2452 = vadd.f32 %v2450, %v2451
    %v2453 = vrot.slane %v2452, 2
    %v2454 = vadd.f32 %v2452, %v2453
    %v2455 = vrot.slane %v2454, 1
    %v2456 = vadd.f32 %v2454, %v2455
    %v2457 = vmul.f32 %v1849, %v2436
    %v2458 = vmul.f32 %v1851, %v2437
    %2461 = vrot.lane.b32.xlu0 %v2028, 96
    %v2462 = vpop.permute.xlu0 %2461
    %2463 = vrot.lane.b32.xlu0 %v2029, 96
    %v2464 = vpop.permute.xlu0 %2463
    %v2467 = vadd.f32 %v2457, %v2462
    %v2468 = vadd.f32 %v2458, %v2464
    %2469 = vset.pattern.permute.xlu0 13
    %2470 = vperm.xlu0 %2469, %v1682
    %v2471 = vpop.permute.xlu0 %2470
    %2473 = vset.pattern.permute.xlu0 13
    %2474 = vperm.xlu0 %2473, %v1683
    %v2475 = vpop.permute.xlu0 %2474
    %v2477 = vmul.f32 %v2471, %v2467
    %v2478 = vmul.f32 %v2475, %v2468
    %v2479 = vsel %vm319, %v2477, 0.0
    %v2480 = vsel %vm319, %v2478, 0.0
    %v2481 = vadd.f32 %v2479, %v2480
    %v2482 = vrot.slane %v2481, 4
    %v2483 = vadd.f32 %v2481, %v2482
    %v2484 = vrot.slane %v2483, 2
    %v2485 = vadd.f32 %v2483, %v2484
    %v2486 = vrot.slane %v2485, 1
    %v2487 = vadd.f32 %v2485, %v2486
    %v2488 = vmul.f32 %v1860, %v2467
    %v2489 = vmul.f32 %v1862, %v2468
    %2492 = vrot.lane.b32.xlu0 %v2039, 96
    %v2493 = vpop.permute.xlu0 %2492
    %2494 = vrot.lane.b32.xlu0 %v2040, 96
    %v2495 = vpop.permute.xlu0 %2494
    %v2498 = vadd.f32 %v2488, %v2493
    %v2499 = vadd.f32 %v2489, %v2495
    %2500 = vset.pattern.permute.xlu0 14
    %2501 = vperm.xlu0 %2500, %v1682
    %v2502 = vpop.permute.xlu0 %2501
    %2504 = vset.pattern.permute.xlu0 14
    %2505 = vperm.xlu0 %2504, %v1683
    %v2506 = vpop.permute.xlu0 %2505
    %v2508 = vmul.f32 %v2502, %v2498
    %v2509 = vmul.f32 %v2506, %v2499
    %v2510 = vsel %vm319, %v2508, 0.0
    %v2511 = vsel %vm319, %v2509, 0.0
    %v2512 = vadd.f32 %v2510, %v2511
    %v2513 = vrot.slane %v2512, 4
    %v2514 = vadd.f32 %v2512, %v2513
    %v2515 = vrot.slane %v2514, 2
    %v2516 = vadd.f32 %v2514, %v2515
    %v2517 = vrot.slane %v2516, 1
    %v2518 = vadd.f32 %v2516, %v2517
    %v2519 = vmul.f32 %v1871, %v2498
    %v2520 = vmul.f32 %v1873, %v2499
    %2523 = vrot.lane.b32.xlu0 %v2050, 96
    %v2524 = vpop.permute.xlu0 %2523
    %2525 = vrot.lane.b32.xlu0 %v2051, 96
    %v2526 = vpop.permute.xlu0 %2525
    %v2529 = vadd.f32 %v2519, %v2524
    %v2530 = vadd.f32 %v2520, %v2526
    %2531 = vset.pattern.permute.xlu0 15
    %2532 = vperm.xlu0 %2531, %v1682
    %v2533 = vpop.permute.xlu0 %2532
    %2535 = vset.pattern.permute.xlu0 15
    %2536 = vperm.xlu0 %2535, %v1683
    %v2537 = vpop.permute.xlu0 %2536
    %v2539 = vmul.f32 %v2533, %v2529
    %v2540 = vmul.f32 %v2537, %v2530
    %v2541 = vsel %vm319, %v2539, 0.0
    %v2542 = vsel %vm319, %v2540, 0.0
    %v2543 = vadd.f32 %v2541, %v2542
    %v2544 = vrot.slane %v2543, 4
    %v2545 = vadd.f32 %v2543, %v2544
    %v2546 = vrot.slane %v2545, 2
    %v2547 = vadd.f32 %v2545, %v2546
    %v2548 = vrot.slane %v2547, 1
    %v2549 = vadd.f32 %v2547, %v2548
    %v2550 = vsel %vm123, %v2084, %v2115
    %v2551 = vsel %vm125, %v2550, %v2146
    %v2552 = vsel %vm127, %v2551, %v2177
    %v2553 = vsel %vm129, %v2552, %v2208
    %v2554 = vsel %vm131, %v2553, %v2239
    %v2555 = vsel %vm133, %v2554, %v2270
    %v2556 = vsel %vm135, %v2555, %v2301
    %v2557 = vsel %vm123, %v2332, %v2363
    %v2558 = vsel %vm125, %v2557, %v2394
    %v2559 = vsel %vm127, %v2558, %v2425
    %v2560 = vsel %vm129, %v2559, %v2456
    %v2561 = vsel %vm131, %v2560, %v2487
    %v2562 = vsel %vm133, %v2561, %v2518
    %v2563 = vsel %vm135, %v2562, %v2549
    %2564 = vrot.lane.b32.xlu0 %v1547, 64
    %v2565 = vpop.permute.xlu0 %2564
    %2566 = vrot.lane.b32.xlu0 %v1548, 64
    %v2567 = vpop.permute.xlu0 %2566
    %v2570 = vmul.f32 %v1587, %v2565
    %v2571 = vmul.f32 %v1587, %v2567
    %2574 = vrot.lane.b32.xlu0 %v2570, 64
    %v2575 = vpop.permute.xlu0 %2574
    %2576 = vrot.lane.b32.xlu0 %v2571, 64
    %v2577 = vpop.permute.xlu0 %2576
    %v2580 = vadd.f32 %v2556, %v2575
    %v2581 = vadd.f32 %v2563, %v2577
    %v2582 = vsub.f32 0.0, %v1491
    %v2583 = vsub.f32 0.0, %v1494
    %v2584 = vmul.f32 %v2582, 1.442695
    %v2585 = vpow.pop %v2584
    %v2586 = vmul.f32 %v2583, 1.442695
    %v2587 = vpow.pop %v2586
    %v2588 = vadd.f32 %v2585, 1.0
    %v2589 = vadd.f32 %v2587, 1.0
    %v2590 = vrcp.pop %v2588
    %v2591 = vrcp.pop %v2589
    %v2592 = vmul.f32 %v1491, %v2590
    %v2593 = vmul.f32 %v1494, %v2591
    %2596 = vrot.lane.b32.xlu0 %v2592, 64
    %v2597 = vpop.permute.xlu0 %2596
    %2598 = vrot.lane.b32.xlu0 %v2593, 64
    %v2599 = vpop.permute.xlu0 %2598
    %v2602 = vmul.f32 %v2580, %v2597
    %v2603 = vmul.f32 %v2581, %v2599
    %s2604 = scalar_lea.vmem %s4, 64
    %v2605 = vld [vmem:[%s2604] sm:$0xff]
    %v2606 = vld [vmem:[%s2604 + $0x8] sm:$0xff]
    %v2607 = vld [vmem:[%s2604 + $0x10] sm:$0xff]
    %v2608 = vld [vmem:[%s2604 + $0x18] sm:$0xff]
    %v2609 = vld [vmem:[%s2604 + $0x20] sm:$0xff]
    %v2610 = vld [vmem:[%s2604 + $0x28] sm:$0xff]
    %v2611 = vld [vmem:[%s2604 + $0x30] sm:$0xff]
    %v2612 = vld [vmem:[%s2604 + $0x38] sm:$0xff]
    %s2613 = scalar_lea.vmem %s6, 4
    %v2614 = vld [vmem:[%s2613] sm:$0x3]
    %v2616 = vsel %vm319, %v2602, 0
    %v2619 = vsel %vm319, %v2603, 0
    %2621 = vmatpush.msra.mxu0 0.0
    %2622 = vmatpush.msra.mxu0 0.0
    %2623 = vmatpush.msra.mxu0 0.0
    %2624 = vmatpush.msra.mxu0 0.0
    %2625 = vmatpush.msra.mxu0 0.0
    %2626 = vmatpush.msra.mxu0 0.0
    %2627 = vmatpush.msra.mxu0 0.0
    %2628 = vmatpush.msra.mxu0 0.0
    %2629 = vmatpush.msra.mxu0 %v2612
    %2630 = vmatpush.msra.mxu0 %v2611
    %2631 = vmatpush.msra.mxu0 %v2610
    %2632 = vmatpush.msra.mxu0 %v2609
    %2633 = vmatpush.msra.mxu0 %v2608
    %2634 = vmatpush.msra.mxu0 %v2607
    %2635 = vmatpush.msra.mxu0 %v2606
    %2636 = vmatpush.msra.mxu0 %v2605
    %2637 = vmatmul.f32.gmra.mxu0 %v2616
    %v2638 = vpop.f32.mrf.mxu0
    %v2639 = vadd.f32 %v1404, %v2638
    %2640 = vmatmul.f32.gmra.mxu0 %v2619
    %v2641 = vpop.f32.mrf.mxu0
    %v2642 = vadd.f32 %v1407, %v2641
    %2643 = vdwg.mxu0
    %v2644 = vsel %vm161, %v2639, 0.0
    %2645 = vadd.xlane.f32.xlu0 %v2644
    %v2646 = vpop.xlane.xlu0 %2645
    %v2647 = vsel %vm161, %v2642, 0.0
    %2648 = vadd.xlane.f32.xlu0 %v2647
    %v2649 = vpop.xlane.xlu0 %2648
    %v2650 = vmul.f32 %v2646, %v174
    %v2651 = vmul.f32 %v2649, %v174
    %v2652 = vsub.f32 %v2639, %v2650
    %v2653 = vsub.f32 %v2642, %v2651
    %v2654 = vmul.f32 %v2652, %v2652
    %v2655 = vmul.f32 %v2653, %v2653
    %v2656 = vsel %vm161, %v2654, 0.0
    %2657 = vadd.xlane.f32.xlu0 %v2656
    %v2658 = vpop.xlane.xlu0 %2657
    %v2659 = vsel %vm161, %v2655, 0.0
    %2660 = vadd.xlane.f32.xlu0 %v2659
    %v2661 = vpop.xlane.xlu0 %2660
    %v2662 = vmul.f32 %v2658, %v174
    %v2663 = vmul.f32 %v2661, %v174
    %v2664 = vadd.f32 %v2662, 1e-05
    %v2665 = vadd.f32 %v2663, 1e-05
    %v2666 = vrsqrt.pop %v2664
    %v2667 = vmul.f32 %v2666, %v2664
    %v2668 = vmul.f32 %v2667, %v2666
    %v2669 = vmul.f32 0.5, %v2668
    %v2670 = vsub.f32 1.5, %v2669
    %v2671 = vmul.f32 %v2666, %v2670
    %vm2672 = vweird.f32 %v2664
    %vm2673 = vweird.f32 %v2666
    %vm2674 = vmor %vm2672, %vm2673
    %v2675 = vsel %vm2674, %v2666, %v2671
    %v2676 = vrsqrt.pop %v2665
    %v2677 = vmul.f32 %v2676, %v2665
    %v2678 = vmul.f32 %v2677, %v2676
    %v2679 = vmul.f32 0.5, %v2678
    %v2680 = vsub.f32 1.5, %v2679
    %v2681 = vmul.f32 %v2676, %v2680
    %vm2682 = vweird.f32 %v2665
    %vm2683 = vweird.f32 %v2676
    %vm2684 = vmor %vm2682, %vm2683
    %v2685 = vsel %vm2684, %v2676, %v2681
    %v2686 = vmul.f32 %v2652, %v2675
    %v2687 = vmul.f32 %v2653, %v2685
    %v2688 = vperm.slane %v2614, 0
    %v2689 = vmul.f32 %v2686, %v2688
    %v2690 = vmul.f32 %v2687, %v2688
    %2692 = vrot.lane.b32.xlu0 %v2688, 96
    %v2693 = vpop.permute.xlu0 %2692
    %v2695 = vadd.f32 %v2689, %v2693
    %v2696 = vadd.f32 %v2690, %v2693
    %v2698 = vrot.slane %v2695, 1
    %2699 = vrot.lane.b32.xlu0 %v2698, 32
    %v2700 = vpop.permute.xlu0 %2699
    %v2702 = vrot.slane %v2695, 2
    %2703 = vrot.lane.b32.xlu0 %v2702, 64
    %v2704 = vpop.permute.xlu0 %2703
    %v2706 = vrot.slane %v2695, 3
    %2707 = vrot.lane.b32.xlu0 %v2706, 96
    %v2708 = vpop.permute.xlu0 %2707
    %v2710 = vrot.slane %v2695, 4
    %v2712 = vrot.slane %v2695, 5
    %2713 = vrot.lane.b32.xlu0 %v2712, 32
    %v2714 = vpop.permute.xlu0 %2713
    %v2716 = vrot.slane %v2695, 6
    %2717 = vrot.lane.b32.xlu0 %v2716, 64
    %v2718 = vpop.permute.xlu0 %2717
    %v2720 = vrot.slane %v2695, 7
    %2721 = vrot.lane.b32.xlu0 %v2720, 96
    %v2722 = vpop.permute.xlu0 %2721
    %v2724 = vsel %vm161, %v2695, %v2700
    %v2725 = vsel %vm319, %v2724, %v2704
    %vm2726 = vcmask 785408
    %v2727 = vsel %vm2726, %v2725, %v2708
    %v2728 = vsel %vm161, %v2710, %v2714
    %v2729 = vsel %vm319, %v2728, %v2718
    %v2730 = vsel %vm2726, %v2729, %v2722
    %v2732 = vrot.slane %v2696, 1
    %2733 = vrot.lane.b32.xlu0 %v2732, 32
    %v2734 = vpop.permute.xlu0 %2733
    %v2736 = vrot.slane %v2696, 2
    %2737 = vrot.lane.b32.xlu0 %v2736, 64
    %v2738 = vpop.permute.xlu0 %2737
    %v2740 = vrot.slane %v2696, 3
    %2741 = vrot.lane.b32.xlu0 %v2740, 96
    %v2742 = vpop.permute.xlu0 %2741
    %v2744 = vrot.slane %v2696, 4
    %v2746 = vrot.slane %v2696, 5
    %2747 = vrot.lane.b32.xlu0 %v2746, 32
    %v2748 = vpop.permute.xlu0 %2747
    %v2750 = vrot.slane %v2696, 6
    %2751 = vrot.lane.b32.xlu0 %v2750, 64
    %v2752 = vpop.permute.xlu0 %2751
    %v2754 = vrot.slane %v2696, 7
    %2755 = vrot.lane.b32.xlu0 %v2754, 96
    %v2756 = vpop.permute.xlu0 %2755
    %v2758 = vsel %vm161, %v2696, %v2734
    %v2759 = vsel %vm319, %v2758, %v2738
    %v2760 = vsel %vm2726, %v2759, %v2742
    %v2761 = vsel %vm161, %v2744, %v2748
    %v2762 = vsel %vm319, %v2761, %v2752
    %v2763 = vsel %vm2726, %v2762, %v2756
    %v2766 = vrot.slane %v2760, 7
    %v2767 = vrot.slane %v2763, 7
    %v2770 = vsel %vm123, %v2727, %v2766
    %v2771 = vsel %vm123, %v2730, %v2767
    %v2774 = vrot.slane %v2771, 6
    %v2775 = vsel %vm125, %v2770, %v2774
    %2777 = vst [vmem:[#allocation4] sm:$0xf] %v2775
    // Predicated region
    $region26: #{tpu_custom_call.1} parent=1 // pred_check
      _
    $region27: #{tpu_custom_call.1} parent=1 // pred_check_branch
      %2779 = sbr.rel (0) target = $region29
    $region28: #{tpu_custom_call.1} parent=1 // pred_region
      %2781 = vsyncadd [#allocation5], 0
      %s2783 = sshll.u32 [#allocation4], 4
      %s2784 = int_to_ptr.vmem [resolvable:$true] %s2783
      %s2785 = sshll.u32 %s7, 4
      %s2786 = int_to_ptr.hbm [resolvable:$true] %s2785
      %2788 = dma.vmem_to_hbm [thread:$0]  %s2784, 64, %s2786, [#allocation5]
    $region29: #{tpu_custom_call.1} parent=1 // pred_fallthru
      _
    // Predicated region
    $region30: #{tpu_custom_call.1} parent=1 // pred_check
      _
    $region31: #{tpu_custom_call.1} parent=1 // pred_check_branch
      %2790 = sbr.rel (0) target = $region33
    $region32: #{tpu_custom_call.1} parent=1 // pred_region
      %2792 = dma.done [#allocation5], 64
    $region33: #{tpu_custom_call.1} parent=1 // pred_fallthru
      _
    %2793 = vsyncpa [#allocation5], 1

</llo_original>
